<compile_context>
chip_gen: v7x
topology: tpu7x:2x2x1
jax: 0.10.0
libtpu: 0.0.40
codegen_flags: <defaults>
</compile_context>

<pallas_src>
import functools

import jax
import jax.numpy as jnp
from jax.experimental import pallas as pl
from jax.experimental.pallas import tpu as pltpu


# ----------------------------------------------------------------------------
# Trace-time weight preparation (runs once under jit; pure XLA, tiny tensors)
# ----------------------------------------------------------------------------
def _fold_bn(b, bn_tuple, use_bn, eps):
    """Fold inference BatchNorm into a per-channel (scale, bias)."""
    if use_bn:
        gamma, beta, mean, var = bn_tuple
        s = gamma * jax.lax.rsqrt(var + eps)
        return s, b * s + beta - mean * s
    return jnp.ones_like(b), b


def _band_conv_weight(w_pt, scale, W, K):
    """PyTorch conv weight (Cout, Cin, K, K) + per-Cout scale ->
    (K, (W+pad)*Cin, W*Cout) block-banded matmul weights, one per kernel row kh.

    Row kh multiplies the padded activation rows laid out as (rows, (W+pad)*Cin):
    columns [0, W*Cin) hold the data, the trailing block is the right zero pad;
    the left padding contributes zero (one_hot maps index -1 to a zero row)."""
    Cout, Cin = w_pt.shape[0], w_pt.shape[1]
    pad = (K - 1) // 2
    WB = W + pad
    w_hat = jnp.transpose(w_pt, (2, 3, 1, 0)) * scale[None, None, None, :]  # (K,K,Cin,Cout)
    shift = jnp.arange(W)[None, :] + jnp.arange(K)[:, None] - pad           # (K, W)
    onehot = jax.nn.one_hot(shift, WB, dtype=w_pt.dtype)                    # (K, W, WB)
    m = jnp.einsum('kjp,hkio->hpijo', onehot, w_hat)                        # (K, WB, Cin, W, Cout)
    return m.reshape(K, WB * Cin, W * Cout)


def _parity_cols(W):
    """Output lane index q = a*2W + 2j + b for parity a, input col j, offset b."""
    return (jnp.arange(2)[:, None, None] * (2 * W)
            + 2 * jnp.arange(W)[None, :, None]
            + jnp.arange(2)[None, None, :])                                 # (2, W, 2)


def _tconv_comb_weight(wt_pt, W):
    """ConvTranspose2d(k=2,s=2) weight (Cin, Cout, 2, 2) -> (W*Cin, 4W*Cout):
    ONE matmul produces both output-row parities, lanes ordered (2, 2W, Cout)
    so the stored (H, 4W*Cout) slab is exactly the (2H, 2W, Cout) image."""
    Cin, Cout = wt_pt.shape[0], wt_pt.shape[1]
    onehot = jax.nn.one_hot(_parity_cols(W), 4 * W, dtype=wt_pt.dtype)      # (2,W,2,4W)
    m = jnp.einsum('ajbq,ioab->jiqo', onehot, wt_pt)                        # (W,Cin,4W,Cout)
    return m.reshape(W * Cin, 4 * W * Cout)


def _conv3_fused_weight(wt_pt, w3_pt, s3, W):
    """Fuse the 1x1 conv3 (Ch -> 1, BN-scaled) THROUGH the transposed conv:
    (W*Cin, 4W) so y comes from one bf16 matmul on the conv2 activations."""
    Cin = wt_pt.shape[0]
    w3hat = w3_pt[0, :, 0, 0] * s3[0]                                       # (Cout,)
    c3 = jnp.einsum('ioab,o->iab', wt_pt, w3hat)                            # (Cin, 2, 2)
    onehot = jax.nn.one_hot(_parity_cols(W), 4 * W, dtype=wt_pt.dtype)      # (2,W,2,4W)
    m = jnp.einsum('ajbq,iab->jiq', onehot, c3)                             # (W, Cin, 4W)
    return m.reshape(W * Cin, 4 * W)


# ----------------------------------------------------------------------------
# Fused D_Module kernel (one grid step == B_TILE batch elements)
# ----------------------------------------------------------------------------
def _dmodule_kernel(x_ref, w1_ref, b1_ref, w2_ref, b2_ref, wt_ref, bt_ref,
                    *rest, H, W, C, Ch, B, is_out, relu3):
    if is_out:
        w3_ref, b3_ref, xo_ref, yo_ref, xp1, xp2 = rest
    else:
        xo_ref, xp1, xp2 = rest
        w3_ref = b3_ref = yo_ref = None

    WC = W * C
    WBC = xp1.shape[1]          # (W + 1) * C  (data + right-pad block)
    Hp = H + 2
    R = B * Hp                  # stacked padded rows (B images, each with halo)
    M = R - 2                   # rows fed to every matmul
    f32 = jnp.float32

    # ---- zero ONLY the halo cells: top/bottom padding row of every image and
    #      the right-pad column block.  Interior is overwritten just below.
    #      Re-done every step so megacore grid splitting stays correct. -------
    pad_cols = jnp.zeros((R, WBC - WC), xp1.dtype)
    xp1[:, WC:] = pad_cols
    xp2[:, WC:] = pad_cols
    zrow = jnp.zeros((1, WC), xp1.dtype)
    for b in range(B):
        top, bot = b * Hp, b * Hp + H + 1
        xp1[top:top + 1, 0:WC] = zrow
        xp1[bot:bot + 1, 0:WC] = zrow
        xp2[top:top + 1, 0:WC] = zrow
        xp2[bot:bot + 1, 0:WC] = zrow

    # ---- conv1: 3x3, C -> C, BN folded, ReLU --------------------------------
    for b in range(B):
        xp1[b * Hp + 1:b * Hp + 1 + H, 0:WC] = x_ref[b]            # (H, W*C) bf16
    acc1 = (jnp.dot(xp1[0:M, :], w1_ref[0], preferred_element_type=f32)
            + jnp.dot(xp1[1:M + 1, :], w1_ref[1], preferred_element_type=f32)
            + jnp.dot(xp1[2:M + 2, :], w1_ref[2], preferred_element_type=f32))
    t1 = jnp.maximum(acc1 + b1_ref[...], 0.0)                      # (M, W*C) f32

    # ---- conv2: 3x3, C -> C/2, BN folded, ReLU ------------------------------
    for b in range(B):
        xp2[b * Hp + 1:b * Hp + 1 + H, 0:WC] = \
            t1[b * Hp:b * Hp + H].astype(xp2.dtype)
    acc2 = (jnp.dot(xp2[0:M, :], w2_ref[0], preferred_element_type=f32)
            + jnp.dot(xp2[1:M + 1, :], w2_ref[1], preferred_element_type=f32)
            + jnp.dot(xp2[2:M + 2, :], w2_ref[2], preferred_element_type=f32))
    t2 = jnp.maximum(acc2 + b2_ref[...], 0.0).astype(jnp.bfloat16)  # (M, W*Ch)

    # ---- ConvTranspose2d(k=2, s=2): ONE matmul, both parities interleaved ---
    up = jnp.dot(t2, wt_ref[...], preferred_element_type=f32) + bt_ref[...]
    for b in range(B):                                              # (H, 4W*Ch) == (2H,2W,Ch)
        xo_ref[b] = up[b * Hp:b * Hp + H].astype(xo_ref.dtype)

    if is_out:
        # ---- conv3 (1x1, Ch->1, BN folded) fused through the tconv: one bf16
        #      matmul; each stored (H, 4W) slab is exactly the (2H, 2W) map ---
        y = jnp.dot(t2, w3_ref[...], preferred_element_type=f32) + b3_ref[...]
        if relu3:
            y = jnp.maximum(y, 0.0)
        for b in range(B):
            yo_ref[b * H:(b + 1) * H, :] = y[b * Hp:b * Hp + H]


# ----------------------------------------------------------------------------
# Fused forward on the native lane-dense NHWC layout (no transposes)
# ----------------------------------------------------------------------------
def _d_module_forward_nhwc(x_nhwc, params, *, bn, eps, is_out, NL):
    p = params
    N, H, W, C = x_nhwc.shape
    Ch = C // 2
    WB = W + 1
    Hp = H + 2

    # How many images share one grid step: target ~256 padded rows per matmul
    # (fills the v6e/v7x MXU; v5e just sees two 128-row passes), but keep >= 2
    # grid steps when N >= 2 so both v7x TensorCores get work.
    b_ideal = max(1, 256 // Hp)
    num_tiles = max(-(-N // b_ideal), min(N, 2))
    B_TILE = -(-N // num_tiles)
    num_tiles = -(-N // B_TILE)
    N_pad = num_tiles * B_TILE

    # BN folding + fused weight construction (trace time, cached by jit)
    s1, b1 = _fold_bn(p['b1'], p['bn1'], bn, eps)
    s2, b2 = _fold_bn(p['b2'], p['bn2'], bn, eps)
    w1_rows = _band_conv_weight(p['w1'], s1, W, 3).astype(jnp.bfloat16)  # (3, WB*C, W*C)
    w2_rows = _band_conv_weight(p['w2'], s2, W, 3).astype(jnp.bfloat16)  # (3, WB*C, W*Ch)
    wt_comb = _tconv_comb_weight(p['wt'], W).astype(jnp.bfloat16)        # (W*Ch, 4W*Ch)
    b1_row = jnp.tile(b1, W)[None, :]                                    # (1, W*C)
    b2_row = jnp.tile(b2, W)[None, :]                                    # (1, W*Ch)
    bt_row = jnp.tile(p['bt'], 4 * W)[None, :]                           # (1, 4W*Ch)

    # lane-dense rows (free reshape from NHWC) + batch padding to N_pad
    x_rows = x_nhwc.reshape(N, H, W * C).astype(jnp.bfloat16)
    if N_pad != N:
        x_rows = jnp.concatenate(
            [x_rows, jnp.zeros((N_pad - N, H, W * C), jnp.bfloat16)], axis=0)

    inputs = [x_rows, w1_rows, b1_row, w2_rows, b2_row, wt_comb, bt_row]
    in_specs = [
        pl.BlockSpec((B_TILE, H, W * C), lambda n: (n, 0, 0)),
        pl.BlockSpec((3, WB * C, W * C), lambda n: (0, 0, 0)),
        pl.BlockSpec((1, W * C), lambda n: (0, 0)),
        pl.BlockSpec((3, WB * C, W * Ch), lambda n: (0, 0, 0)),
        pl.BlockSpec((1, W * Ch), lambda n: (0, 0)),
        pl.BlockSpec((W * Ch, 4 * W * Ch), lambda n: (0, 0)),
        pl.BlockSpec((1, 4 * W * Ch), lambda n: (0, 0)),
    ]
    out_shapes = [jax.ShapeDtypeStruct((N_pad, H, 4 * W * Ch), jnp.bfloat16)]
    out_specs = [pl.BlockSpec((B_TILE, H, 4 * W * Ch), lambda n: (n, 0, 0))]

    relu3 = (NL == 'relu')
    if is_out:
        s3, b3f = _fold_bn(p['b3'], p['bn3'], bn, eps)
        w3c = _conv3_fused_weight(p['wt'], p['w3'], s3, W).astype(jnp.bfloat16)
        w3hat = p['w3'][0, :, 0, 0] * s3[0]
        by = jnp.dot(p['bt'], w3hat) + b3f[0]
        b3_row = jnp.full((1, 4 * W), by, jnp.float32)
        inputs += [w3c, b3_row]
        in_specs += [pl.BlockSpec((W * Ch, 4 * W), lambda n: (0, 0)),
                     pl.BlockSpec((1, 4 * W), lambda n: (0, 0))]
        # density map stored as contiguous (N_pad*H, 4W) rows == (N_pad, 2H, 2W)
        out_shapes.append(jax.ShapeDtypeStruct((N_pad * H, 4 * W), jnp.float32))
        out_specs.append(pl.BlockSpec((B_TILE * H, 4 * W), lambda n: (n, 0)))

    # explicit VMEM budget: double-buffered blocks + scratch, never below the
    # default, capped to stay v7x-friendly (64 MiB physical).
    bf16b, f32b = 2, 4
    vmem_est = 2 * (B_TILE * H * W * C * bf16b
                    + 3 * WB * C * W * C * bf16b
                    + 3 * WB * C * W * Ch * bf16b
                    + W * Ch * 4 * W * Ch * bf16b
                    + (W * C + W * Ch + 4 * W * Ch) * f32b
                    + B_TILE * H * 4 * W * Ch * bf16b)
    if is_out:
        vmem_est += 2 * (W * Ch * 4 * W * bf16b + 4 * W * f32b
                         + B_TILE * H * 4 * W * f32b)
    vmem_est += 2 * B_TILE * Hp * WB * C * bf16b
    vmem_limit = int(min(max(2 * vmem_est, 32 << 20), 64 << 20))

    kern = functools.partial(_dmodule_kernel, H=H, W=W, C=C, Ch=Ch, B=B_TILE,
                             is_out=is_out, relu3=relu3)
    outs = pl.pallas_call(
        kern,
        out_shape=tuple(out_shapes) if is_out else out_shapes[0],
        grid_spec=pltpu.PrefetchScalarGridSpec(
            num_scalar_prefetch=0,
            grid=(num_tiles,),
            in_specs=in_specs,
            out_specs=tuple(out_specs) if is_out else out_specs[0],
            scratch_shapes=[pltpu.VMEM((B_TILE * Hp, WB * C), jnp.bfloat16),
                            pltpu.VMEM((B_TILE * Hp, WB * C), jnp.bfloat16)],
        ),
        compiler_params=pltpu.CompilerParams(
            dimension_semantics=("parallel",),
            vmem_limit_bytes=vmem_limit),
    )(*inputs)

    if is_out:
        xo, yo = outs
    else:
        xo = outs

    # Free metadata reshapes (the slabs are already row-major NHWC bytes).
    x_out = xo[:N].reshape(N, 2 * H, 2 * W, Ch)                     # bf16 NHWC
    if is_out:
        y_out = yo.reshape(N_pad, 2 * H, 2 * W, 1)[:N]              # f32 NHWC
    else:
        y_out = x_out
    return x_out, y_out


# ----------------------------------------------------------------------------
# D_Module
# ----------------------------------------------------------------------------
class DModulePallas:
    """Pallas/TPU implementation of MSCANet's D_Module (inference mode)."""

    def __init__(self, in_planes, is_dilation=False, bn=True, is_out=False,
                 bilinear=False, NL='None', *, key):
        if is_dilation:
            # TODO(synk): dilated conv variant (self.dr == 2) not implemented.
            raise NotImplementedError("is_dilation=True not supported")
        if bilinear:
            # TODO(synk): nn.Upsample(scale=2, bilinear, align_corners=True) path not implemented.
            raise NotImplementedError("bilinear upsample not supported")
        if NL not in ('None', 'relu'):
            # TODO(synk): PReLU output nonlinearity not implemented.
            raise NotImplementedError(f"NL={NL!r} not supported")
        self.in_planes = in_planes
        self.bn = bn
        self.is_out = is_out
        self.NL = NL
        self.eps = 1e-5

        C, Ch = in_planes, in_planes // 2
        ks = list(jax.random.split(key, 11))

        def w_init(k, shape, fan_in):
            return jax.random.normal(k, shape, jnp.float32) / jnp.sqrt(fan_in)

        def bn_init(k, c):
            k1, k2, k3, k4 = jax.random.split(k, 4)
            gamma = 1.0 + 0.1 * jax.random.normal(k1, (c,), jnp.float32)
            beta = 0.1 * jax.random.normal(k2, (c,), jnp.float32)
            mean = 0.1 * jax.random.normal(k3, (c,), jnp.float32)
            var = 1.0 + 0.1 * jnp.abs(jax.random.normal(k4, (c,), jnp.float32))
            return gamma, beta, mean, var

        p = {}
        p['w1'] = w_init(ks[0], (C, C, 3, 3), C * 9)
        p['b1'] = 0.1 * jax.random.normal(ks[1], (C,), jnp.float32)
        p['bn1'] = bn_init(ks[2], C)
        p['w2'] = w_init(ks[3], (Ch, C, 3, 3), C * 9)
        p['b2'] = 0.1 * jax.random.normal(ks[4], (Ch,), jnp.float32)
        p['bn2'] = bn_init(ks[5], Ch)
        # ConvTranspose2d weight layout (Cin, Cout, kH, kW)
        p['wt'] = w_init(ks[6], (Ch, Ch, 2, 2), Ch * 4)
        p['bt'] = 0.1 * jax.random.normal(ks[7], (Ch,), jnp.float32)
        if is_out:
            p['w3'] = w_init(ks[8], (1, Ch, 1, 1), Ch)
            p['b3'] = 0.1 * jax.random.normal(ks[9], (1,), jnp.float32)
            p['bn3'] = bn_init(ks[10], 1)
        self.params = p

        self._fwd_nhwc = jax.jit(functools.partial(
            _d_module_forward_nhwc, bn=self.bn, eps=self.eps,
            is_out=self.is_out, NL=self.NL))

    def forward_nhwc(self, x_nhwc):
        """Native lane-dense path: NHWC in, (bf16 NHWC x, f32 NHWC y) out.
        Use this between chained D_Modules to avoid HBM layout transposes."""
        return self._fwd_nhwc(x_nhwc, self.params)

    def __call__(self, x_nchw):
        """PyTorch-compatible NCHW API (pays one layout transpose each way)."""
        x_nhwc = jnp.transpose(x_nchw.astype(jnp.float32), (0, 2, 3, 1))
        xo, yo = self.forward_nhwc(x_nhwc)
        x_out = jnp.transpose(xo, (0, 3, 1, 2)).astype(jnp.float32)
        y_out = jnp.transpose(yo, (0, 3, 1, 2)).astype(jnp.float32)
        return x_out, y_out


# ----------------------------------------------------------------------------
# Plain-JAX f32 reference (sanity check only)
# ----------------------------------------------------------------------------
def _ref_conv_bn_act(x, w_pt, b, bn_tuple, use_bn, eps, K, relu):
    pad = (K - 1) // 2
    out = jax.lax.conv_general_dilated(
        x, jnp.transpose(w_pt, (2, 3, 1, 0)),
        window_strides=(1, 1),
        padding=[(pad, pad), (pad, pad)],
        dimension_numbers=('NHWC', 'HWIO', 'NHWC'))
    out = out + b
    if use_bn:
        gamma, beta, mean, var = bn_tuple
        out = (out - mean) / jnp.sqrt(var + eps) * gamma + beta
    if relu:
        out = jnp.maximum(out, 0.0)
    return out


def ref_forward(mod, x_nchw):
    p = mod.params
    x = jnp.transpose(x_nchw, (0, 2, 3, 1)).astype(jnp.float32)
    x = _ref_conv_bn_act(x, p['w1'], p['b1'], p['bn1'], mod.bn, mod.eps, 3, True)
    x = _ref_conv_bn_act(x, p['w2'], p['b2'], p['bn2'], mod.bn, mod.eps, 3, True)
    N, H, W, _ = x.shape
    Co = p['wt'].shape[1]
    up = jnp.zeros((N, 2 * H, 2 * W, Co), jnp.float32)
    for a in range(2):
        for c in range(2):
            up = up.at[:, a::2, c::2, :].set(
                jnp.einsum('nhwi,io->nhwo', x, p['wt'][:, :, a, c]) + p['bt'])
    x = up
    if mod.is_out:
        y = _ref_conv_bn_act(x, p['w3'], p['b3'], p['bn3'], mod.bn, mod.eps, 1,
                             mod.NL == 'relu')
    else:
        y = x
    return jnp.transpose(x, (0, 3, 1, 2)), jnp.transpose(y, (0, 3, 1, 2))


if __name__ == "__main__":
    key = jax.random.PRNGKey(0)
    kparam, kx = jax.random.split(key)
    # N=5 exercises the batched grid step (B_TILE=3), batch padding, and a
    # 2-long "parallel" grid (both v7x TensorCores get work).
    N, C, H, W = 5, 8, 16, 16

    mod = DModulePallas(in_planes=C, is_dilation=False, bn=True, is_out=True,
                        bilinear=False, NL='None', key=kparam)
    x = jax.random.normal(kx, (N, C, H, W), jnp.float32)

    x_out, y_out = mod(x)
    (x_out, y_out) = jax.block_until_ready((x_out, y_out))

    assert x_out.shape == (N, C // 2, 2 * H, 2 * W)
    assert y_out.shape == (N, 1, 2 * H, 2 * W)

    # numerical sanity check against the plain-JAX f32 reference
    # (kernel uses bf16 matmul operands + bf16 feature-map writeback,
    #  f32 accumulation -> 5e-2 tolerance)
    x_ref, y_ref = ref_forward(mod, x)
    assert jnp.allclose(x_out, x_ref, rtol=5e-2, atol=5e-2), "x mismatch"
    assert jnp.allclose(y_out, y_ref, rtol=5e-2, atol=5e-2), "y mismatch"

    print("KERNEL_OK")
</pallas_src>

<mosaic_0001>
module attributes {stable_mosaic.version = 11 : i64} {
  func.func @_dmodule_kernel(%arg0: i32, %arg1: memref<3x16x128xbf16, #tpu.memory_space<vmem>>, %arg2: memref<3x136x128xbf16, #tpu.memory_space<vmem>>, %arg3: memref<1x128xf32, #tpu.memory_space<vmem>>, %arg4: memref<3x136x64xbf16, #tpu.memory_space<vmem>>, %arg5: memref<1x64xf32, #tpu.memory_space<vmem>>, %arg6: memref<64x256xbf16, #tpu.memory_space<vmem>>, %arg7: memref<1x256xf32, #tpu.memory_space<vmem>>, %arg8: memref<64x64xbf16, #tpu.memory_space<vmem>>, %arg9: memref<1x64xf32, #tpu.memory_space<vmem>>, %arg10: memref<3x16x256xbf16, #tpu.memory_space<vmem>>, %arg11: memref<48x64xf32, #tpu.memory_space<vmem>>, %arg12: memref<54x136xbf16, #tpu.memory_space<vmem>>, %arg13: memref<54x136xbf16, #tpu.memory_space<vmem>>) attributes {dimension_semantics = [#tpu.dimension_semantics<parallel>], iteration_bounds = array<i64: 2>, scalar_prefetch = 0 : i64, scratch_operands = 2 : i64, tpu.core_type = #tpu.core_type<tc>, window_params = [{transform_indices = @transform_0, window_bounds = array<i64: 3, 16, 128>}, {pipeline_mode = #tpu.pipeline_mode<synchronous>, transform_indices = @transform_1, window_bounds = array<i64: 3, 136, 128>}, {pipeline_mode = #tpu.pipeline_mode<synchronous>, transform_indices = @transform_2, window_bounds = array<i64: 1, 128>}, {pipeline_mode = #tpu.pipeline_mode<synchronous>, transform_indices = @transform_3, window_bounds = array<i64: 3, 136, 64>}, {pipeline_mode = #tpu.pipeline_mode<synchronous>, transform_indices = @transform_4, window_bounds = array<i64: 1, 64>}, {pipeline_mode = #tpu.pipeline_mode<synchronous>, transform_indices = @transform_5, window_bounds = array<i64: 64, 256>}, {pipeline_mode = #tpu.pipeline_mode<synchronous>, transform_indices = @transform_6, window_bounds = array<i64: 1, 256>}, {pipeline_mode = #tpu.pipeline_mode<synchronous>, transform_indices = @transform_7, window_bounds = array<i64: 64, 64>}, {pipeline_mode = #tpu.pipeline_mode<synchronous>, transform_indices = @transform_8, window_bounds = array<i64: 1, 64>}, {transform_indices = @transform_9, window_bounds = array<i64: 3, 16, 256>}, {transform_indices = @transform_10, window_bounds = array<i64: 48, 64>}]} {
    %cst = arith.constant 0.000000e+00 : bf16
    %0 = vector.broadcast %cst : bf16 to vector<54x8xbf16>
    %c0 = arith.constant 0 : index
    %c128 = arith.constant 128 : index
    %1 = vector.load %arg12[%c0, %c128] : memref<54x136xbf16, #tpu.memory_space<vmem>>, vector<54x8xbf16>
    tpu.vector_store %arg12[%c0, %c128], %0 {strides = array<i32>} : memref<54x136xbf16, #tpu.memory_space<vmem>>, vector<54x8xbf16>,
    %c0_0 = arith.constant 0 : index
    %c128_1 = arith.constant 128 : index
    %2 = vector.load %arg13[%c0_0, %c128_1] : memref<54x136xbf16, #tpu.memory_space<vmem>>, vector<54x8xbf16>
    tpu.vector_store %arg13[%c0_0, %c128_1], %0 {strides = array<i32>} : memref<54x136xbf16, #tpu.memory_space<vmem>>, vector<54x8xbf16>,
    %cst_2 = arith.constant 0.000000e+00 : bf16
    %3 = vector.broadcast %cst_2 : bf16 to vector<1x128xbf16>
    %c0_3 = arith.constant 0 : index
    %c0_4 = arith.constant 0 : index
    %4 = vector.load %arg12[%c0_3, %c0_4] : memref<54x136xbf16, #tpu.memory_space<vmem>>, vector<1x128xbf16>
    tpu.vector_store %arg12[%c0_3, %c0_4], %3 {strides = array<i32>} : memref<54x136xbf16, #tpu.memory_space<vmem>>, vector<1x128xbf16>,
    %c17 = arith.constant 17 : index
    %c0_5 = arith.constant 0 : index
    %5 = vector.load %arg12[%c17, %c0_5] : memref<54x136xbf16, #tpu.memory_space<vmem>>, vector<1x128xbf16>
    tpu.vector_store %arg12[%c17, %c0_5], %3 {strides = array<i32>} : memref<54x136xbf16, #tpu.memory_space<vmem>>, vector<1x128xbf16>,
    %c0_6 = arith.constant 0 : index
    %c0_7 = arith.constant 0 : index
    %6 = vector.load %arg13[%c0_6, %c0_7] : memref<54x136xbf16, #tpu.memory_space<vmem>>, vector<1x128xbf16>
    tpu.vector_store %arg13[%c0_6, %c0_7], %3 {strides = array<i32>} : memref<54x136xbf16, #tpu.memory_space<vmem>>, vector<1x128xbf16>,
    %c17_8 = arith.constant 17 : index
    %c0_9 = arith.constant 0 : index
    %7 = vector.load %arg13[%c17_8, %c0_9] : memref<54x136xbf16, #tpu.memory_space<vmem>>, vector<1x128xbf16>
    tpu.vector_store %arg13[%c17_8, %c0_9], %3 {strides = array<i32>} : memref<54x136xbf16, #tpu.memory_space<vmem>>, vector<1x128xbf16>,
    %c18 = arith.constant 18 : index
    %c0_10 = arith.constant 0 : index
    %8 = vector.load %arg12[%c18, %c0_10] : memref<54x136xbf16, #tpu.memory_space<vmem>>, vector<1x128xbf16>
    tpu.vector_store %arg12[%c18, %c0_10], %3 {strides = array<i32>} : memref<54x136xbf16, #tpu.memory_space<vmem>>, vector<1x128xbf16>,
    %c35 = arith.constant 35 : index
    %c0_11 = arith.constant 0 : index
    %9 = vector.load %arg12[%c35, %c0_11] : memref<54x136xbf16, #tpu.memory_space<vmem>>, vector<1x128xbf16>
    tpu.vector_store %arg12[%c35, %c0_11], %3 {strides = array<i32>} : memref<54x136xbf16, #tpu.memory_space<vmem>>, vector<1x128xbf16>,
    %c18_12 = arith.constant 18 : index
    %c0_13 = arith.constant 0 : index
    %10 = vector.load %arg13[%c18_12, %c0_13] : memref<54x136xbf16, #tpu.memory_space<vmem>>, vector<1x128xbf16>
    tpu.vector_store %arg13[%c18_12, %c0_13], %3 {strides = array<i32>} : memref<54x136xbf16, #tpu.memory_space<vmem>>, vector<1x128xbf16>,
    %c35_14 = arith.constant 35 : index
    %c0_15 = arith.constant 0 : index
    %11 = vector.load %arg13[%c35_14, %c0_15] : memref<54x136xbf16, #tpu.memory_space<vmem>>, vector<1x128xbf16>
    tpu.vector_store %arg13[%c35_14, %c0_15], %3 {strides = array<i32>} : memref<54x136xbf16, #tpu.memory_space<vmem>>, vector<1x128xbf16>,
    %c36 = arith.constant 36 : index
    %c0_16 = arith.constant 0 : index
    %12 = vector.load %arg12[%c36, %c0_16] : memref<54x136xbf16, #tpu.memory_space<vmem>>, vector<1x128xbf16>
    tpu.vector_store %arg12[%c36, %c0_16], %3 {strides = array<i32>} : memref<54x136xbf16, #tpu.memory_space<vmem>>, vector<1x128xbf16>,
    %c53 = arith.constant 53 : index
    %c0_17 = arith.constant 0 : index
    %13 = vector.load %arg12[%c53, %c0_17] : memref<54x136xbf16, #tpu.memory_space<vmem>>, vector<1x128xbf16>
    tpu.vector_store %arg12[%c53, %c0_17], %3 {strides = array<i32>} : memref<54x136xbf16, #tpu.memory_space<vmem>>, vector<1x128xbf16>,
    %c36_18 = arith.constant 36 : index
    %c0_19 = arith.constant 0 : index
    %14 = vector.load %arg13[%c36_18, %c0_19] : memref<54x136xbf16, #tpu.memory_space<vmem>>, vector<1x128xbf16>
    tpu.vector_store %arg13[%c36_18, %c0_19], %3 {strides = array<i32>} : memref<54x136xbf16, #tpu.memory_space<vmem>>, vector<1x128xbf16>,
    %c53_20 = arith.constant 53 : index
    %c0_21 = arith.constant 0 : index
    %15 = vector.load %arg13[%c53_20, %c0_21] : memref<54x136xbf16, #tpu.memory_space<vmem>>, vector<1x128xbf16>
    tpu.vector_store %arg13[%c53_20, %c0_21], %3 {strides = array<i32>} : memref<54x136xbf16, #tpu.memory_space<vmem>>, vector<1x128xbf16>,
    %c0_22 = arith.constant 0 : index
    %c0_23 = arith.constant 0 : index
    %c0_24 = arith.constant 0 : index
    %16 = vector.load %arg1[%c0_22, %c0_23, %c0_24] : memref<3x16x128xbf16, #tpu.memory_space<vmem>>, vector<1x16x128xbf16>
    %17 = vector.shape_cast %16 : vector<1x16x128xbf16> to vector<16x128xbf16>
    %c1 = arith.constant 1 : index
    %c0_25 = arith.constant 0 : index
    %18 = vector.load %arg12[%c1, %c0_25] : memref<54x136xbf16, #tpu.memory_space<vmem>>, vector<16x128xbf16>
    tpu.vector_store %arg12[%c1, %c0_25], %17 {strides = array<i32>} : memref<54x136xbf16, #tpu.memory_space<vmem>>, vector<16x128xbf16>,
    %c1_26 = arith.constant 1 : index
    %c0_27 = arith.constant 0 : index
    %c0_28 = arith.constant 0 : index
    %19 = vector.load %arg1[%c1_26, %c0_27, %c0_28] : memref<3x16x128xbf16, #tpu.memory_space<vmem>>, vector<1x16x128xbf16>
    %20 = vector.shape_cast %19 : vector<1x16x128xbf16> to vector<16x128xbf16>
    %c19 = arith.constant 19 : index
    %c0_29 = arith.constant 0 : index
    %21 = vector.load %arg12[%c19, %c0_29] : memref<54x136xbf16, #tpu.memory_space<vmem>>, vector<16x128xbf16>
    tpu.vector_store %arg12[%c19, %c0_29], %20 {strides = array<i32>} : memref<54x136xbf16, #tpu.memory_space<vmem>>, vector<16x128xbf16>,
    %c2 = arith.constant 2 : index
    %c0_30 = arith.constant 0 : index
    %c0_31 = arith.constant 0 : index
    %22 = vector.load %arg1[%c2, %c0_30, %c0_31] : memref<3x16x128xbf16, #tpu.memory_space<vmem>>, vector<1x16x128xbf16>
    %23 = vector.shape_cast %22 : vector<1x16x128xbf16> to vector<16x128xbf16>
    %c37 = arith.constant 37 : index
    %c0_32 = arith.constant 0 : index
    %24 = vector.load %arg12[%c37, %c0_32] : memref<54x136xbf16, #tpu.memory_space<vmem>>, vector<16x128xbf16>
    tpu.vector_store %arg12[%c37, %c0_32], %23 {strides = array<i32>} : memref<54x136xbf16, #tpu.memory_space<vmem>>, vector<16x128xbf16>,
    %c0_33 = arith.constant 0 : index
    %c0_34 = arith.constant 0 : index
    %25 = vector.load %arg12[%c0_33, %c0_34] : memref<54x136xbf16, #tpu.memory_space<vmem>>, vector<52x136xbf16>
    %c0_35 = arith.constant 0 : index
    %c0_36 = arith.constant 0 : index
    %c0_37 = arith.constant 0 : index
    %26 = vector.load %arg2[%c0_35, %c0_36, %c0_37] : memref<3x136x128xbf16, #tpu.memory_space<vmem>>, vector<1x136x128xbf16>
    %27 = vector.shape_cast %26 : vector<1x136x128xbf16> to vector<136x128xbf16>
    %cst_38 = arith.constant dense<0.000000e+00> : vector<52x128xf32>
    %28 = tpu.matmul %25, %27, %cst_38 {dimension_numbers = #tpu.dot_dimension_numbers<[1], [0], [0], [1], [0, 0, 1, 1], [], []>} : vector<52x136xbf16>, vector<136x128xbf16>, vector<52x128xf32> -> vector<52x128xf32>
    %c1_39 = arith.constant 1 : index
    %c0_40 = arith.constant 0 : index
    %29 = vector.load %arg12[%c1_39, %c0_40] : memref<54x136xbf16, #tpu.memory_space<vmem>>, vector<52x136xbf16>
    %c1_41 = arith.constant 1 : index
    %c0_42 = arith.constant 0 : index
    %c0_43 = arith.constant 0 : index
    %30 = vector.load %arg2[%c1_41, %c0_42, %c0_43] : memref<3x136x128xbf16, #tpu.memory_space<vmem>>, vector<1x136x128xbf16>
    %31 = vector.shape_cast %30 : vector<1x136x128xbf16> to vector<136x128xbf16>
    %cst_44 = arith.constant dense<0.000000e+00> : vector<52x128xf32>
    %32 = tpu.matmul %29, %31, %cst_44 {dimension_numbers = #tpu.dot_dimension_numbers<[1], [0], [0], [1], [0, 0, 1, 1], [], []>} : vector<52x136xbf16>, vector<136x128xbf16>, vector<52x128xf32> -> vector<52x128xf32>
    %33 = arith.addf %28, %32 : vector<52x128xf32>
    %c2_45 = arith.constant 2 : index
    %c0_46 = arith.constant 0 : index
    %34 = vector.load %arg12[%c2_45, %c0_46] : memref<54x136xbf16, #tpu.memory_space<vmem>>, vector<52x136xbf16>
    %c2_47 = arith.constant 2 : index
    %c0_48 = arith.constant 0 : index
    %c0_49 = arith.constant 0 : index
    %35 = vector.load %arg2[%c2_47, %c0_48, %c0_49] : memref<3x136x128xbf16, #tpu.memory_space<vmem>>, vector<1x136x128xbf16>
    %36 = vector.shape_cast %35 : vector<1x136x128xbf16> to vector<136x128xbf16>
    %cst_50 = arith.constant dense<0.000000e+00> : vector<52x128xf32>
    %37 = tpu.matmul %34, %36, %cst_50 {dimension_numbers = #tpu.dot_dimension_numbers<[1], [0], [0], [1], [0, 0, 1, 1], [], []>} : vector<52x136xbf16>, vector<136x128xbf16>, vector<52x128xf32> -> vector<52x128xf32>
    %38 = arith.addf %33, %37 : vector<52x128xf32>
    %c0_51 = arith.constant 0 : index
    %c0_52 = arith.constant 0 : index
    %39 = vector.load %arg3[%c0_51, %c0_52] : memref<1x128xf32, #tpu.memory_space<vmem>>, vector<1x128xf32>
    %40 = vector.broadcast %39 : vector<1x128xf32> to vector<52x128xf32>
    %41 = arith.addf %38, %40 : vector<52x128xf32>
    %cst_53 = arith.constant 0.000000e+00 : f32
    %42 = vector.broadcast %cst_53 : f32 to vector<52x128xf32>
    %43 = arith.maximumf %41, %42 : vector<52x128xf32>
    %44 = vector.extract_strided_slice %43 {offsets = [0, 0], sizes = [16, 128], strides = [1, 1]} : vector<52x128xf32> to vector<16x128xf32>
    %45 = arith.truncf %44 : vector<16x128xf32> to vector<16x128xbf16>
    %c1_54 = arith.constant 1 : index
    %c0_55 = arith.constant 0 : index
    %46 = vector.load %arg13[%c1_54, %c0_55] : memref<54x136xbf16, #tpu.memory_space<vmem>>, vector<16x128xbf16>
    tpu.vector_store %arg13[%c1_54, %c0_55], %45 {strides = array<i32>} : memref<54x136xbf16, #tpu.memory_space<vmem>>, vector<16x128xbf16>,
    %47 = vector.extract_strided_slice %43 {offsets = [18, 0], sizes = [16, 128], strides = [1, 1]} : vector<52x128xf32> to vector<16x128xf32>
    %48 = arith.truncf %47 : vector<16x128xf32> to vector<16x128xbf16>
    %c19_56 = arith.constant 19 : index
    %c0_57 = arith.constant 0 : index
    %49 = vector.load %arg13[%c19_56, %c0_57] : memref<54x136xbf16, #tpu.memory_space<vmem>>, vector<16x128xbf16>
    tpu.vector_store %arg13[%c19_56, %c0_57], %48 {strides = array<i32>} : memref<54x136xbf16, #tpu.memory_space<vmem>>, vector<16x128xbf16>,
    %50 = vector.extract_strided_slice %43 {offsets = [36, 0], sizes = [16, 128], strides = [1, 1]} : vector<52x128xf32> to vector<16x128xf32>
    %51 = arith.truncf %50 : vector<16x128xf32> to vector<16x128xbf16>
    %c37_58 = arith.constant 37 : index
    %c0_59 = arith.constant 0 : index
    %52 = vector.load %arg13[%c37_58, %c0_59] : memref<54x136xbf16, #tpu.memory_space<vmem>>, vector<16x128xbf16>
    tpu.vector_store %arg13[%c37_58, %c0_59], %51 {strides = array<i32>} : memref<54x136xbf16, #tpu.memory_space<vmem>>, vector<16x128xbf16>,
    %c0_60 = arith.constant 0 : index
    %c0_61 = arith.constant 0 : index
    %53 = vector.load %arg13[%c0_60, %c0_61] : memref<54x136xbf16, #tpu.memory_space<vmem>>, vector<52x136xbf16>
    %c0_62 = arith.constant 0 : index
    %c0_63 = arith.constant 0 : index
    %c0_64 = arith.constant 0 : index
    %54 = vector.load %arg4[%c0_62, %c0_63, %c0_64] : memref<3x136x64xbf16, #tpu.memory_space<vmem>>, vector<1x136x64xbf16>
    %55 = vector.shape_cast %54 : vector<1x136x64xbf16> to vector<136x64xbf16>
    %cst_65 = arith.constant dense<0.000000e+00> : vector<52x64xf32>
    %56 = tpu.matmul %53, %55, %cst_65 {dimension_numbers = #tpu.dot_dimension_numbers<[1], [0], [0], [1], [0, 0, 1, 1], [], []>} : vector<52x136xbf16>, vector<136x64xbf16>, vector<52x64xf32> -> vector<52x64xf32>
    %c1_66 = arith.constant 1 : index
    %c0_67 = arith.constant 0 : index
    %57 = vector.load %arg13[%c1_66, %c0_67] : memref<54x136xbf16, #tpu.memory_space<vmem>>, vector<52x136xbf16>
    %c1_68 = arith.constant 1 : index
    %c0_69 = arith.constant 0 : index
    %c0_70 = arith.constant 0 : index
    %58 = vector.load %arg4[%c1_68, %c0_69, %c0_70] : memref<3x136x64xbf16, #tpu.memory_space<vmem>>, vector<1x136x64xbf16>
    %59 = vector.shape_cast %58 : vector<1x136x64xbf16> to vector<136x64xbf16>
    %cst_71 = arith.constant dense<0.000000e+00> : vector<52x64xf32>
    %60 = tpu.matmul %57, %59, %cst_71 {dimension_numbers = #tpu.dot_dimension_numbers<[1], [0], [0], [1], [0, 0, 1, 1], [], []>} : vector<52x136xbf16>, vector<136x64xbf16>, vector<52x64xf32> -> vector<52x64xf32>
    %61 = arith.addf %56, %60 : vector<52x64xf32>
    %c2_72 = arith.constant 2 : index
    %c0_73 = arith.constant 0 : index
    %62 = vector.load %arg13[%c2_72, %c0_73] : memref<54x136xbf16, #tpu.memory_space<vmem>>, vector<52x136xbf16>
    %c2_74 = arith.constant 2 : index
    %c0_75 = arith.constant 0 : index
    %c0_76 = arith.constant 0 : index
    %63 = vector.load %arg4[%c2_74, %c0_75, %c0_76] : memref<3x136x64xbf16, #tpu.memory_space<vmem>>, vector<1x136x64xbf16>
    %64 = vector.shape_cast %63 : vector<1x136x64xbf16> to vector<136x64xbf16>
    %cst_77 = arith.constant dense<0.000000e+00> : vector<52x64xf32>
    %65 = tpu.matmul %62, %64, %cst_77 {dimension_numbers = #tpu.dot_dimension_numbers<[1], [0], [0], [1], [0, 0, 1, 1], [], []>} : vector<52x136xbf16>, vector<136x64xbf16>, vector<52x64xf32> -> vector<52x64xf32>
    %66 = arith.addf %61, %65 : vector<52x64xf32>
    %c0_78 = arith.constant 0 : index
    %c0_79 = arith.constant 0 : index
    %67 = vector.load %arg5[%c0_78, %c0_79] : memref<1x64xf32, #tpu.memory_space<vmem>>, vector<1x64xf32>
    %68 = vector.broadcast %67 : vector<1x64xf32> to vector<52x64xf32>
    %69 = arith.addf %66, %68 : vector<52x64xf32>
    %cst_80 = arith.constant 0.000000e+00 : f32
    %70 = vector.broadcast %cst_80 : f32 to vector<52x64xf32>
    %71 = arith.maximumf %69, %70 : vector<52x64xf32>
    %72 = arith.truncf %71 : vector<52x64xf32> to vector<52x64xbf16>
    %c0_81 = arith.constant 0 : index
    %c0_82 = arith.constant 0 : index
    %73 = vector.load %arg6[%c0_81, %c0_82] : memref<64x256xbf16, #tpu.memory_space<vmem>>, vector<64x256xbf16>
    %cst_83 = arith.constant dense<0.000000e+00> : vector<52x256xf32>
    %74 = tpu.matmul %72, %73, %cst_83 {dimension_numbers = #tpu.dot_dimension_numbers<[1], [0], [0], [1], [0, 0, 1, 1], [], []>} : vector<52x64xbf16>, vector<64x256xbf16>, vector<52x256xf32> -> vector<52x256xf32>
    %c0_84 = arith.constant 0 : index
    %c0_85 = arith.constant 0 : index
    %75 = vector.load %arg7[%c0_84, %c0_85] : memref<1x256xf32, #tpu.memory_space<vmem>>, vector<1x256xf32>
    %76 = vector.broadcast %75 : vector<1x256xf32> to vector<52x256xf32>
    %77 = arith.addf %74, %76 : vector<52x256xf32>
    %78 = vector.extract_strided_slice %77 {offsets = [0, 0], sizes = [16, 256], strides = [1, 1]} : vector<52x256xf32> to vector<16x256xf32>
    %79 = arith.truncf %78 : vector<16x256xf32> to vector<16x256xbf16>
    %c0_86 = arith.constant 0 : index
    %c0_87 = arith.constant 0 : index
    %c0_88 = arith.constant 0 : index
    %80 = vector.load %arg10[%c0_86, %c0_87, %c0_88] : memref<3x16x256xbf16, #tpu.memory_space<vmem>>, vector<1x16x256xbf16>
    %81 = vector.shape_cast %80 : vector<1x16x256xbf16> to vector<16x256xbf16>
    %82 = vector.shape_cast %79 : vector<16x256xbf16> to vector<1x16x256xbf16>
    tpu.vector_store %arg10[%c0_86, %c0_87, %c0_88], %82 {strides = array<i32>} : memref<3x16x256xbf16, #tpu.memory_space<vmem>>, vector<1x16x256xbf16>,
    %83 = vector.extract_strided_slice %77 {offsets = [18, 0], sizes = [16, 256], strides = [1, 1]} : vector<52x256xf32> to vector<16x256xf32>
    %84 = arith.truncf %83 : vector<16x256xf32> to vector<16x256xbf16>
    %c1_89 = arith.constant 1 : index
    %c0_90 = arith.constant 0 : index
    %c0_91 = arith.constant 0 : index
    %85 = vector.load %arg10[%c1_89, %c0_90, %c0_91] : memref<3x16x256xbf16, #tpu.memory_space<vmem>>, vector<1x16x256xbf16>
    %86 = vector.shape_cast %85 : vector<1x16x256xbf16> to vector<16x256xbf16>
    %87 = vector.shape_cast %84 : vector<16x256xbf16> to vector<1x16x256xbf16>
    tpu.vector_store %arg10[%c1_89, %c0_90, %c0_91], %87 {strides = array<i32>} : memref<3x16x256xbf16, #tpu.memory_space<vmem>>, vector<1x16x256xbf16>,
    %88 = vector.extract_strided_slice %77 {offsets = [36, 0], sizes = [16, 256], strides = [1, 1]} : vector<52x256xf32> to vector<16x256xf32>
    %89 = arith.truncf %88 : vector<16x256xf32> to vector<16x256xbf16>
    %c2_92 = arith.constant 2 : index
    %c0_93 = arith.constant 0 : index
    %c0_94 = arith.constant 0 : index
    %90 = vector.load %arg10[%c2_92, %c0_93, %c0_94] : memref<3x16x256xbf16, #tpu.memory_space<vmem>>, vector<1x16x256xbf16>
    %91 = vector.shape_cast %90 : vector<1x16x256xbf16> to vector<16x256xbf16>
    %92 = vector.shape_cast %89 : vector<16x256xbf16> to vector<1x16x256xbf16>
    tpu.vector_store %arg10[%c2_92, %c0_93, %c0_94], %92 {strides = array<i32>} : memref<3x16x256xbf16, #tpu.memory_space<vmem>>, vector<1x16x256xbf16>,
    %c0_95 = arith.constant 0 : index
    %c0_96 = arith.constant 0 : index
    %93 = vector.load %arg8[%c0_95, %c0_96] : memref<64x64xbf16, #tpu.memory_space<vmem>>, vector<64x64xbf16>
    %cst_97 = arith.constant dense<0.000000e+00> : vector<52x64xf32>
    %94 = tpu.matmul %72, %93, %cst_97 {dimension_numbers = #tpu.dot_dimension_numbers<[1], [0], [0], [1], [0, 0, 1, 1], [], []>} : vector<52x64xbf16>, vector<64x64xbf16>, vector<52x64xf32> -> vector<52x64xf32>
    %c0_98 = arith.constant 0 : index
    %c0_99 = arith.constant 0 : index
    %95 = vector.load %arg9[%c0_98, %c0_99] : memref<1x64xf32, #tpu.memory_space<vmem>>, vector<1x64xf32>
    %96 = vector.broadcast %95 : vector<1x64xf32> to vector<52x64xf32>
    %97 = arith.addf %94, %96 : vector<52x64xf32>
    %98 = vector.extract_strided_slice %97 {offsets = [0, 0], sizes = [16, 64], strides = [1, 1]} : vector<52x64xf32> to vector<16x64xf32>
    %c0_100 = arith.constant 0 : index
    %c0_101 = arith.constant 0 : index
    %99 = vector.load %arg11[%c0_100, %c0_101] : memref<48x64xf32, #tpu.memory_space<vmem>>, vector<16x64xf32>
    tpu.vector_store %arg11[%c0_100, %c0_101], %98 {strides = array<i32>} : memref<48x64xf32, #tpu.memory_space<vmem>>, vector<16x64xf32>,
    %100 = vector.extract_strided_slice %97 {offsets = [18, 0], sizes = [16, 64], strides = [1, 1]} : vector<52x64xf32> to vector<16x64xf32>
    %c16 = arith.constant 16 : index
    %c0_102 = arith.constant 0 : index
    %101 = vector.load %arg11[%c16, %c0_102] : memref<48x64xf32, #tpu.memory_space<vmem>>, vector<16x64xf32>
    tpu.vector_store %arg11[%c16, %c0_102], %100 {strides = array<i32>} : memref<48x64xf32, #tpu.memory_space<vmem>>, vector<16x64xf32>,
    %102 = vector.extract_strided_slice %97 {offsets = [36, 0], sizes = [16, 64], strides = [1, 1]} : vector<52x64xf32> to vector<16x64xf32>
    %c32 = arith.constant 32 : index
    %c0_103 = arith.constant 0 : index
    %103 = vector.load %arg11[%c32, %c0_103] : memref<48x64xf32, #tpu.memory_space<vmem>>, vector<16x64xf32>
    tpu.vector_store %arg11[%c32, %c0_103], %102 {strides = array<i32>} : memref<48x64xf32, #tpu.memory_space<vmem>>, vector<16x64xf32>,
    return
  }
  func.func @transform_0(%arg0: i32) -> (i32, i32, i32) {
    %c0_i32 = arith.constant 0 : i32
    %c0_i32_0 = arith.constant 0 : i32
    %c0_i32_1 = arith.constant 0 : i32
    return %arg0, %c0_i32, %c0_i32_0 : i32, i32, i32
  }
  func.func @transform_1(%arg0: i32) -> (i32, i32, i32) {
    %c0_i32 = arith.constant 0 : i32
    %c0_i32_0 = arith.constant 0 : i32
    %c0_i32_1 = arith.constant 0 : i32
    %c0_i32_2 = arith.constant 0 : i32
    return %c0_i32, %c0_i32_0, %c0_i32_1 : i32, i32, i32
  }
  func.func @transform_2(%arg0: i32) -> (i32, i32) {
    %c0_i32 = arith.constant 0 : i32
    %c0_i32_0 = arith.constant 0 : i32
    %c0_i32_1 = arith.constant 0 : i32
    return %c0_i32, %c0_i32_0 : i32, i32
  }
  func.func @transform_3(%arg0: i32) -> (i32, i32, i32) {
    %c0_i32 = arith.constant 0 : i32
    %c0_i32_0 = arith.constant 0 : i32
    %c0_i32_1 = arith.constant 0 : i32
    %c0_i32_2 = arith.constant 0 : i32
    return %c0_i32, %c0_i32_0, %c0_i32_1 : i32, i32, i32
  }
  func.func @transform_4(%arg0: i32) -> (i32, i32) {
    %c0_i32 = arith.constant 0 : i32
    %c0_i32_0 = arith.constant 0 : i32
    %c0_i32_1 = arith.constant 0 : i32
    return %c0_i32, %c0_i32_0 : i32, i32
  }
  func.func @transform_5(%arg0: i32) -> (i32, i32) {
    %c0_i32 = arith.constant 0 : i32
    %c0_i32_0 = arith.constant 0 : i32
    %c0_i32_1 = arith.constant 0 : i32
    return %c0_i32, %c0_i32_0 : i32, i32
  }
  func.func @transform_6(%arg0: i32) -> (i32, i32) {
    %c0_i32 = arith.constant 0 : i32
    %c0_i32_0 = arith.constant 0 : i32
    %c0_i32_1 = arith.constant 0 : i32
    return %c0_i32, %c0_i32_0 : i32, i32
  }
  func.func @transform_7(%arg0: i32) -> (i32, i32) {
    %c0_i32 = arith.constant 0 : i32
    %c0_i32_0 = arith.constant 0 : i32
    %c0_i32_1 = arith.constant 0 : i32
    return %c0_i32, %c0_i32_0 : i32, i32
  }
  func.func @transform_8(%arg0: i32) -> (i32, i32) {
    %c0_i32 = arith.constant 0 : i32
    %c0_i32_0 = arith.constant 0 : i32
    %c0_i32_1 = arith.constant 0 : i32
    return %c0_i32, %c0_i32_0 : i32, i32
  }
  func.func @transform_9(%arg0: i32) -> (i32, i32, i32) {
    %c0_i32 = arith.constant 0 : i32
    %c0_i32_0 = arith.constant 0 : i32
    %c0_i32_1 = arith.constant 0 : i32
    return %arg0, %c0_i32, %c0_i32_0 : i32, i32, i32
  }
  func.func @transform_10(%arg0: i32) -> (i32, i32) {
    %c0_i32 = arith.constant 0 : i32
    %c0_i32_0 = arith.constant 0 : i32
    return %arg0, %c0_i32 : i32, i32
  }
}

</mosaic_0001>

<llo_original>
// kernel: tile.18
$region0: #{tile.18}
  #allocation0 [shape = 's32[1]{0}', space=sflag, size = 0x4, scoped, tag = 'scoped memory for tile.18']
  %s0 = inlined_call_operand.vmem [shape: f32[8], index: 0, kind: input, shape index: {}]
  %s1 = inlined_call_operand.vmem [shape: f32[16,8], index: 1, kind: output, shape index: {}]
  // Predicated region
  $region2: #{tile.18} parent=0 // pred_check
    _
  $region3: #{tile.18} parent=0 // pred_check_branch
    %3 = sbr.rel (0) target = $region5
  $region4: #{tile.18} parent=0 // pred_region
    _
  $region5: #{tile.18} parent=0 // pred_fallthru
    _
  %v4 = vld [vmem:[%s0] ss:$0 sm:$0xff]
  %5 = vst [vmem:[%s1] sm:$0xff] %v4
  %s6 = scalar_lea.vmem %s1, 8
  %7 = vst [vmem:[%s6] sm:$0xff] %v4

// kernel: tile.19
$region0: #{tile.19}
  %s0 = inlined_call_operand.vmem [shape: f32[16,8], index: 0, kind: input, shape index: {}]
  %s1 = inlined_call_operand.vmem [shape: f32[1,128], index: 1, kind: output, shape index: {}]
  $region1: #{tile.19} parent=0
    #allocation0 [shape = 'u8[4096]{0}', space=vmem, size = 0x1000, scoped, tag = 'scoped mem for output reshape']
    %v2 = vld [vmem:[%s0] sm:$0x1]
    %vm3 = vcmask 64512
    %4 = vst.msk [vmem:[#allocation0] sm:$0x1] %vm3, %v2
    %s5 = scalar_lea.vmem %s0, 15
    %v6 = vld [vmem:[%s5] sm:$0x1]
    %7 = vrot.lane.b32.xlu0 %v6, 120
    %v8 = vpop.permute.xlu0 %7
    %vm9 = vcmask 1048512
    %10 = vst.msk [vmem:[#allocation0] sm:$0x1] %vm9, %v8
    %s11 = scalar_lea.vmem %s0, 14
    %v12 = vld [vmem:[%s11] sm:$0x1]
    %13 = vrot.lane.b32.xlu0 %v12, 112
    %v14 = vpop.permute.xlu0 %13
    %vm15 = vcmask 982912
    %16 = vst.msk [vmem:[#allocation0] sm:$0x1] %vm15, %v14
    %s17 = scalar_lea.vmem %s0, 13
    %v18 = vld [vmem:[%s17] sm:$0x1]
    %19 = vrot.lane.b32.xlu0 %v18, 104
    %v20 = vpop.permute.xlu0 %19
    %vm21 = vcmask 917312
    %22 = vst.msk [vmem:[#allocation0] sm:$0x1] %vm21, %v20
    %s23 = scalar_lea.vmem %s0, 12
    %v24 = vld [vmem:[%s23] sm:$0x1]
    %25 = vrot.lane.b32.xlu0 %v24, 96
    %v26 = vpop.permute.xlu0 %25
    %vm27 = vcmask 851712
    %28 = vst.msk [vmem:[#allocation0] sm:$0x1] %vm27, %v26
    %s29 = scalar_lea.vmem %s0, 11
    %v30 = vld [vmem:[%s29] sm:$0x1]
    %31 = vrot.lane.b32.xlu0 %v30, 88
    %v32 = vpop.permute.xlu0 %31
    %vm33 = vcmask 786112
    %34 = vst.msk [vmem:[#allocation0] sm:$0x1] %vm33, %v32
    %s35 = scalar_lea.vmem %s0, 10
    %v36 = vld [vmem:[%s35] sm:$0x1]
    %37 = vrot.lane.b32.xlu0 %v36, 80
    %v38 = vpop.permute.xlu0 %37
    %vm39 = vcmask 720512
    %40 = vst.msk [vmem:[#allocation0] sm:$0x1] %vm39, %v38
    %s41 = scalar_lea.vmem %s0, 9
    %v42 = vld [vmem:[%s41] sm:$0x1]
    %43 = vrot.lane.b32.xlu0 %v42, 72
    %v44 = vpop.permute.xlu0 %43
    %vm45 = vcmask 654912
    %46 = vst.msk [vmem:[#allocation0] sm:$0x1] %vm45, %v44
    %s47 = scalar_lea.vmem %s0, 8
    %v48 = vld [vmem:[%s47] sm:$0x1]
    %49 = vrot.lane.b32.xlu0 %v48, 64
    %v50 = vpop.permute.xlu0 %49
    %vm51 = vcmask 589312
    %52 = vst.msk [vmem:[#allocation0] sm:$0x1] %vm51, %v50
    %s53 = scalar_lea.vmem %s0, 7
    %v54 = vld [vmem:[%s53] sm:$0x1]
    %55 = vrot.lane.b32.xlu0 %v54, 56
    %v56 = vpop.permute.xlu0 %55
    %vm57 = vcmask 523712
    %58 = vst.msk [vmem:[#allocation0] sm:$0x1] %vm57, %v56
    %s59 = scalar_lea.vmem %s0, 6
    %v60 = vld [vmem:[%s59] sm:$0x1]
    %61 = vrot.lane.b32.xlu0 %v60, 48
    %v62 = vpop.permute.xlu0 %61
    %vm63 = vcmask 458112
    %64 = vst.msk [vmem:[#allocation0] sm:$0x1] %vm63, %v62
    %s65 = scalar_lea.vmem %s0, 5
    %v66 = vld [vmem:[%s65] sm:$0x1]
    %67 = vrot.lane.b32.xlu0 %v66, 40
    %v68 = vpop.permute.xlu0 %67
    %vm69 = vcmask 392512
    %70 = vst.msk [vmem:[#allocation0] sm:$0x1] %vm69, %v68
    %s71 = scalar_lea.vmem %s0, 4
    %v72 = vld [vmem:[%s71] sm:$0x1]
    %73 = vrot.lane.b32.xlu0 %v72, 32
    %v74 = vpop.permute.xlu0 %73
    %vm75 = vcmask 326912
    %76 = vst.msk [vmem:[#allocation0] sm:$0x1] %vm75, %v74
    %s77 = scalar_lea.vmem %s0, 3
    %v78 = vld [vmem:[%s77] sm:$0x1]
    %79 = vrot.lane.b32.xlu0 %v78, 24
    %v80 = vpop.permute.xlu0 %79
    %vm81 = vcmask 261312
    %82 = vst.msk [vmem:[#allocation0] sm:$0x1] %vm81, %v80
    %s83 = scalar_lea.vmem %s0, 2
    %v84 = vld [vmem:[%s83] sm:$0x1]
    %85 = vrot.lane.b32.xlu0 %v84, 16
    %v86 = vpop.permute.xlu0 %85
    %vm87 = vcmask 195712
    %88 = vst.msk [vmem:[#allocation0] sm:$0x1] %vm87, %v86
    %s89 = scalar_lea.vmem %s0, 1
    %v90 = vld [vmem:[%s89] sm:$0x1]
    %91 = vrot.lane.b32.xlu0 %v90, 8
    %v92 = vpop.permute.xlu0 %91
    %vm93 = vcmask 130112
    %94 = vst.msk [vmem:[#allocation0] sm:$0x1] %vm93, %v92
    %s96 = sshllo.u32 0, 1
    %v98 = vld [vmem:[#allocation0] sm:%s96]
    %s99 = sshllo.u32 0, 1
    %100 = vst [vmem:[%s1] sm:%s99] %v98

// kernel: tile.23
$region0: #{tile.23}
  #allocation0 [shape = 's32[1]{0}', space=sflag, size = 0x4, scoped, tag = 'scoped memory for tile.23']
  %s0 = inlined_call_operand.vmem [shape: f32[4], index: 0, kind: input, shape index: {}]
  %s1 = inlined_call_operand.vmem [shape: f32[16,4], index: 1, kind: output, shape index: {}]
  // Predicated region
  $region2: #{tile.23} parent=0 // pred_check
    _
  $region3: #{tile.23} parent=0 // pred_check_branch
    %3 = sbr.rel (0) target = $region5
  $region4: #{tile.23} parent=0 // pred_region
    _
  $region5: #{tile.23} parent=0 // pred_fallthru
    _
  %v4 = vld [vmem:[%s0] ss:$0 sm:$0xff]
  %5 = vst [vmem:[%s1] sm:$0xff] %v4
  %s6 = scalar_lea.vmem %s1, 8
  %7 = vst [vmem:[%s6] sm:$0xff] %v4

// kernel: tile.24
$region0: #{tile.24}
  %s0 = inlined_call_operand.vmem [shape: f32[16,4], index: 0, kind: input, shape index: {}]
  %s1 = inlined_call_operand.vmem [shape: f32[1,64], index: 1, kind: output, shape index: {}]
  $region1: #{tile.24} parent=0
    #allocation0 [shape = 'u8[4096]{0}', space=vmem, size = 0x1000, scoped, tag = 'scoped mem for output reshape']
    %v2 = vld [vmem:[%s0] sm:$0x1]
    %vm3 = vcmask 31744
    %4 = vst.msk [vmem:[#allocation0] sm:$0x1] %vm3, %v2
    %s5 = scalar_lea.vmem %s0, 15
    %v6 = vld [vmem:[%s5] sm:$0x1]
    %7 = vrot.lane.b32.xlu0 %v6, 60
    %v8 = vpop.permute.xlu0 %7
    %vm9 = vcmask 523744
    %10 = vst.msk [vmem:[#allocation0] sm:$0x1] %vm9, %v8
    %s11 = scalar_lea.vmem %s0, 14
    %v12 = vld [vmem:[%s11] sm:$0x1]
    %13 = vrot.lane.b32.xlu0 %v12, 56
    %v14 = vpop.permute.xlu0 %13
    %vm15 = vcmask 490944
    %16 = vst.msk [vmem:[#allocation0] sm:$0x1] %vm15, %v14
    %s17 = scalar_lea.vmem %s0, 13
    %v18 = vld [vmem:[%s17] sm:$0x1]
    %19 = vrot.lane.b32.xlu0 %v18, 52
    %v20 = vpop.permute.xlu0 %19
    %vm21 = vcmask 458144
    %22 = vst.msk [vmem:[#allocation0] sm:$0x1] %vm21, %v20
    %s23 = scalar_lea.vmem %s0, 12
    %v24 = vld [vmem:[%s23] sm:$0x1]
    %25 = vrot.lane.b32.xlu0 %v24, 48
    %v26 = vpop.permute.xlu0 %25
    %vm27 = vcmask 425344
    %28 = vst.msk [vmem:[#allocation0] sm:$0x1] %vm27, %v26
    %s29 = scalar_lea.vmem %s0, 11
    %v30 = vld [vmem:[%s29] sm:$0x1]
    %31 = vrot.lane.b32.xlu0 %v30, 44
    %v32 = vpop.permute.xlu0 %31
    %vm33 = vcmask 392544
    %34 = vst.msk [vmem:[#allocation0] sm:$0x1] %vm33, %v32
    %s35 = scalar_lea.vmem %s0, 10
    %v36 = vld [vmem:[%s35] sm:$0x1]
    %37 = vrot.lane.b32.xlu0 %v36, 40
    %v38 = vpop.permute.xlu0 %37
    %vm39 = vcmask 359744
    %40 = vst.msk [vmem:[#allocation0] sm:$0x1] %vm39, %v38
    %s41 = scalar_lea.vmem %s0, 9
    %v42 = vld [vmem:[%s41] sm:$0x1]
    %43 = vrot.lane.b32.xlu0 %v42, 36
    %v44 = vpop.permute.xlu0 %43
    %vm45 = vcmask 326944
    %46 = vst.msk [vmem:[#allocation0] sm:$0x1] %vm45, %v44
    %s47 = scalar_lea.vmem %s0, 8
    %v48 = vld [vmem:[%s47] sm:$0x1]
    %49 = vrot.lane.b32.xlu0 %v48, 32
    %v50 = vpop.permute.xlu0 %49
    %vm51 = vcmask 294144
    %52 = vst.msk [vmem:[#allocation0] sm:$0x1] %vm51, %v50
    %s53 = scalar_lea.vmem %s0, 7
    %v54 = vld [vmem:[%s53] sm:$0x1]
    %55 = vrot.lane.b32.xlu0 %v54, 28
    %v56 = vpop.permute.xlu0 %55
    %vm57 = vcmask 261344
    %58 = vst.msk [vmem:[#allocation0] sm:$0x1] %vm57, %v56
    %s59 = scalar_lea.vmem %s0, 6
    %v60 = vld [vmem:[%s59] sm:$0x1]
    %61 = vrot.lane.b32.xlu0 %v60, 24
    %v62 = vpop.permute.xlu0 %61
    %vm63 = vcmask 228544
    %64 = vst.msk [vmem:[#allocation0] sm:$0x1] %vm63, %v62
    %s65 = scalar_lea.vmem %s0, 5
    %v66 = vld [vmem:[%s65] sm:$0x1]
    %67 = vrot.lane.b32.xlu0 %v66, 20
    %v68 = vpop.permute.xlu0 %67
    %vm69 = vcmask 195744
    %70 = vst.msk [vmem:[#allocation0] sm:$0x1] %vm69, %v68
    %s71 = scalar_lea.vmem %s0, 4
    %v72 = vld [vmem:[%s71] sm:$0x1]
    %73 = vrot.lane.b32.xlu0 %v72, 16
    %v74 = vpop.permute.xlu0 %73
    %vm75 = vcmask 162944
    %76 = vst.msk [vmem:[#allocation0] sm:$0x1] %vm75, %v74
    %s77 = scalar_lea.vmem %s0, 3
    %v78 = vld [vmem:[%s77] sm:$0x1]
    %79 = vrot.lane.b32.xlu0 %v78, 12
    %v80 = vpop.permute.xlu0 %79
    %vm81 = vcmask 130144
    %82 = vst.msk [vmem:[#allocation0] sm:$0x1] %vm81, %v80
    %s83 = scalar_lea.vmem %s0, 2
    %v84 = vld [vmem:[%s83] sm:$0x1]
    %85 = vrot.lane.b32.xlu0 %v84, 8
    %v86 = vpop.permute.xlu0 %85
    %vm87 = vcmask 97344
    %88 = vst.msk [vmem:[#allocation0] sm:$0x1] %vm87, %v86
    %s89 = scalar_lea.vmem %s0, 1
    %v90 = vld [vmem:[%s89] sm:$0x1]
    %91 = vrot.lane.b32.xlu0 %v90, 4
    %v92 = vpop.permute.xlu0 %91
    %vm93 = vcmask 64544
    %94 = vst.msk [vmem:[#allocation0] sm:$0x1] %vm93, %v92
    %s96 = sshllo.u32 0, 1
    %v98 = vld [vmem:[#allocation0] sm:%s96]
    %s99 = sshllo.u32 0, 1
    %100 = vst [vmem:[%s1] sm:%s99] %v98

// kernel: tile.28
$region0: #{tile.28}
  #allocation0 [shape = 's32[1]{0}', space=sflag, size = 0x4, scoped, tag = 'scoped memory for tile.28']
  %s0 = inlined_call_operand.vmem [shape: f32[4], index: 0, kind: input, shape index: {}]
  %s1 = inlined_call_operand.vmem [shape: f32[64,4], index: 1, kind: output, shape index: {}]
  // Predicated region
  $region2: #{tile.28} parent=0 // pred_check
    _
  $region3: #{tile.28} parent=0 // pred_check_branch
    %3 = sbr.rel (0) target = $region5
  $region4: #{tile.28} parent=0 // pred_region
    _
  $region5: #{tile.28} parent=0 // pred_fallthru
    _
  %v4 = vld [vmem:[%s0] ss:$0 sm:$0xff]
  %5 = vst [vmem:[%s1] sm:$0xff] %v4
  %s6 = scalar_lea.vmem %s1, 8
  %7 = vst [vmem:[%s6] sm:$0xff] %v4
  %s8 = scalar_lea.vmem %s1, 16
  %9 = vst [vmem:[%s8] sm:$0xff] %v4
  %s10 = scalar_lea.vmem %s1, 24
  %11 = vst [vmem:[%s10] sm:$0xff] %v4
  %s12 = scalar_lea.vmem %s1, 32
  %13 = vst [vmem:[%s12] sm:$0xff] %v4
  %s14 = scalar_lea.vmem %s1, 40
  %15 = vst [vmem:[%s14] sm:$0xff] %v4
  %s16 = scalar_lea.vmem %s1, 48
  %17 = vst [vmem:[%s16] sm:$0xff] %v4
  %s18 = scalar_lea.vmem %s1, 56
  %19 = vst [vmem:[%s18] sm:$0xff] %v4

// kernel: tile.29
$region0: #{tile.29}
  %s0 = inlined_call_operand.vmem [shape: f32[64,4], index: 0, kind: input, shape index: {}]
  %s1 = inlined_call_operand.vmem [shape: f32[1,256], index: 1, kind: output, shape index: {}]
  $region1: #{tile.29} parent=0
    #allocation0 [shape = 'u8[8192]{0}', space=vmem, size = 0x2000, scoped, tag = 'scoped mem for output reshape']
    %v2 = vld [vmem:[%s0] sm:$0x1]
    %s3 = scalar_lea.vmem %s0, 31
    %v4 = vld [vmem:[%s3] sm:$0x2]
    %vm5 = vcmask 1041409
    %v6 = vsel %vm5, %v4, %v2
    %vm7 = vcmask 31744
    %8 = vst.msk [vmem:[#allocation0] ss:$8 sm:$0x3] %vm7, %v6
    %s9 = scalar_lea.vmem %s0, 31
    %v10 = vld [vmem:[%s9] sm:$0x1]
    %s11 = scalar_lea.vmem %s0, 62
    %v12 = vld [vmem:[%s11] sm:$0x2]
    %vm13 = vcmask 1041409
    %v14 = vsel %vm13, %v12, %v10
    %15 = vrot.lane.b32.xlu0 %v14, 124
    %v16 = vpop.permute.xlu0 %15
    %vm17 = vcmask 1048544
    %18 = vst.msk [vmem:[#allocation0] ss:$8 sm:$0x3] %vm17, %v16
    %s19 = scalar_lea.vmem %s0, 30
    %v20 = vld [vmem:[%s19] sm:$0x1]
    %s21 = scalar_lea.vmem %s0, 61
    %v22 = vld [vmem:[%s21] sm:$0x2]
    %vm23 = vcmask 1041409
    %v24 = vsel %vm23, %v22, %v20
    %25 = vrot.lane.b32.xlu0 %v24, 120
    %v26 = vpop.permute.xlu0 %25
    %vm27 = vcmask 1015744
    %28 = vst.msk [vmem:[#allocation0] ss:$8 sm:$0x3] %vm27, %v26
    %s29 = scalar_lea.vmem %s0, 29
    %v30 = vld [vmem:[%s29] sm:$0x1]
    %s31 = scalar_lea.vmem %s0, 60
    %v32 = vld [vmem:[%s31] sm:$0x2]
    %vm33 = vcmask 1041409
    %v34 = vsel %vm33, %v32, %v30
    %35 = vrot.lane.b32.xlu0 %v34, 116
    %v36 = vpop.permute.xlu0 %35
    %vm37 = vcmask 982944
    %38 = vst.msk [vmem:[#allocation0] ss:$8 sm:$0x3] %vm37, %v36
    %s39 = scalar_lea.vmem %s0, 28
    %v40 = vld [vmem:[%s39] sm:$0x1]
    %s41 = scalar_lea.vmem %s0, 59
    %v42 = vld [vmem:[%s41] sm:$0x2]
    %vm43 = vcmask 1041409
    %v44 = vsel %vm43, %v42, %v40
    %45 = vrot.lane.b32.xlu0 %v44, 112
    %v46 = vpop.permute.xlu0 %45
    %vm47 = vcmask 950144
    %48 = vst.msk [vmem:[#allocation0] ss:$8 sm:$0x3] %vm47, %v46
    %s49 = scalar_lea.vmem %s0, 27
    %v50 = vld [vmem:[%s49] sm:$0x1]
    %s51 = scalar_lea.vmem %s0, 58
    %v52 = vld [vmem:[%s51] sm:$0x2]
    %vm53 = vcmask 1041409
    %v54 = vsel %vm53, %v52, %v50
    %55 = vrot.lane.b32.xlu0 %v54, 108
    %v56 = vpop.permute.xlu0 %55
    %vm57 = vcmask 917344
    %58 = vst.msk [vmem:[#allocation0] ss:$8 sm:$0x3] %vm57, %v56
    %s59 = scalar_lea.vmem %s0, 26
    %v60 = vld [vmem:[%s59] sm:$0x1]
    %s61 = scalar_lea.vmem %s0, 57
    %v62 = vld [vmem:[%s61] sm:$0x2]
    %vm63 = vcmask 1041409
    %v64 = vsel %vm63, %v62, %v60
    %65 = vrot.lane.b32.xlu0 %v64, 104
    %v66 = vpop.permute.xlu0 %65
    %vm67 = vcmask 884544
    %68 = vst.msk [vmem:[#allocation0] ss:$8 sm:$0x3] %vm67, %v66
    %s69 = scalar_lea.vmem %s0, 25
    %v70 = vld [vmem:[%s69] sm:$0x1]
    %s71 = scalar_lea.vmem %s0, 56
    %v72 = vld [vmem:[%s71] sm:$0x2]
    %vm73 = vcmask 1041409
    %v74 = vsel %vm73, %v72, %v70
    %75 = vrot.lane.b32.xlu0 %v74, 100
    %v76 = vpop.permute.xlu0 %75
    %vm77 = vcmask 851744
    %78 = vst.msk [vmem:[#allocation0] ss:$8 sm:$0x3] %vm77, %v76
    %s79 = scalar_lea.vmem %s0, 24
    %v80 = vld [vmem:[%s79] sm:$0x1]
    %s81 = scalar_lea.vmem %s0, 55
    %v82 = vld [vmem:[%s81] sm:$0x2]
    %vm83 = vcmask 1041409
    %v84 = vsel %vm83, %v82, %v80
    %85 = vrot.lane.b32.xlu0 %v84, 96
    %v86 = vpop.permute.xlu0 %85
    %vm87 = vcmask 818944
    %88 = vst.msk [vmem:[#allocation0] ss:$8 sm:$0x3] %vm87, %v86
    %s89 = scalar_lea.vmem %s0, 23
    %v90 = vld [vmem:[%s89] sm:$0x1]
    %s91 = scalar_lea.vmem %s0, 54
    %v92 = vld [vmem:[%s91] sm:$0x2]
    %vm93 = vcmask 1041409
    %v94 = vsel %vm93, %v92, %v90
    %95 = vrot.lane.b32.xlu0 %v94, 92
    %v96 = vpop.permute.xlu0 %95
    %vm97 = vcmask 786144
    %98 = vst.msk [vmem:[#allocation0] ss:$8 sm:$0x3] %vm97, %v96
    %s99 = scalar_lea.vmem %s0, 22
    %v100 = vld [vmem:[%s99] sm:$0x1]
    %s101 = scalar_lea.vmem %s0, 53
    %v102 = vld [vmem:[%s101] sm:$0x2]
    %vm103 = vcmask 1041409
    %v104 = vsel %vm103, %v102, %v100
    %105 = vrot.lane.b32.xlu0 %v104, 88
    %v106 = vpop.permute.xlu0 %105
    %vm107 = vcmask 753344
    %108 = vst.msk [vmem:[#allocation0] ss:$8 sm:$0x3] %vm107, %v106
    %s109 = scalar_lea.vmem %s0, 21
    %v110 = vld [vmem:[%s109] sm:$0x1]
    %s111 = scalar_lea.vmem %s0, 52
    %v112 = vld [vmem:[%s111] sm:$0x2]
    %vm113 = vcmask 1041409
    %v114 = vsel %vm113, %v112, %v110
    %115 = vrot.lane.b32.xlu0 %v114, 84
    %v116 = vpop.permute.xlu0 %115
    %vm117 = vcmask 720544
    %118 = vst.msk [vmem:[#allocation0] ss:$8 sm:$0x3] %vm117, %v116
    %s119 = scalar_lea.vmem %s0, 20
    %v120 = vld [vmem:[%s119] sm:$0x1]
    %s121 = scalar_lea.vmem %s0, 51
    %v122 = vld [vmem:[%s121] sm:$0x2]
    %vm123 = vcmask 1041409
    %v124 = vsel %vm123, %v122, %v120
    %125 = vrot.lane.b32.xlu0 %v124, 80
    %v126 = vpop.permute.xlu0 %125
    %vm127 = vcmask 687744
    %128 = vst.msk [vmem:[#allocation0] ss:$8 sm:$0x3] %vm127, %v126
    %s129 = scalar_lea.vmem %s0, 19
    %v130 = vld [vmem:[%s129] sm:$0x1]
    %s131 = scalar_lea.vmem %s0, 50
    %v132 = vld [vmem:[%s131] sm:$0x2]
    %vm133 = vcmask 1041409
    %v134 = vsel %vm133, %v132, %v130
    %135 = vrot.lane.b32.xlu0 %v134, 76
    %v136 = vpop.permute.xlu0 %135
    %vm137 = vcmask 654944
    %138 = vst.msk [vmem:[#allocation0] ss:$8 sm:$0x3] %vm137, %v136
    %s139 = scalar_lea.vmem %s0, 18
    %v140 = vld [vmem:[%s139] sm:$0x1]
    %s141 = scalar_lea.vmem %s0, 49
    %v142 = vld [vmem:[%s141] sm:$0x2]
    %vm143 = vcmask 1041409
    %v144 = vsel %vm143, %v142, %v140
    %145 = vrot.lane.b32.xlu0 %v144, 72
    %v146 = vpop.permute.xlu0 %145
    %vm147 = vcmask 622144
    %148 = vst.msk [vmem:[#allocation0] ss:$8 sm:$0x3] %vm147, %v146
    %s149 = scalar_lea.vmem %s0, 17
    %v150 = vld [vmem:[%s149] sm:$0x1]
    %s151 = scalar_lea.vmem %s0, 48
    %v152 = vld [vmem:[%s151] sm:$0x2]
    %vm153 = vcmask 1041409
    %v154 = vsel %vm153, %v152, %v150
    %155 = vrot.lane.b32.xlu0 %v154, 68
    %v156 = vpop.permute.xlu0 %155
    %vm157 = vcmask 589344
    %158 = vst.msk [vmem:[#allocation0] ss:$8 sm:$0x3] %vm157, %v156
    %s159 = scalar_lea.vmem %s0, 16
    %v160 = vld [vmem:[%s159] sm:$0x1]
    %s161 = scalar_lea.vmem %s0, 47
    %v162 = vld [vmem:[%s161] sm:$0x2]
    %vm163 = vcmask 1041409
    %v164 = vsel %vm163, %v162, %v160
    %165 = vrot.lane.b32.xlu0 %v164, 64
    %v166 = vpop.permute.xlu0 %165
    %vm167 = vcmask 556544
    %168 = vst.msk [vmem:[#allocation0] ss:$8 sm:$0x3] %vm167, %v166
    %s169 = scalar_lea.vmem %s0, 15
    %v170 = vld [vmem:[%s169] sm:$0x1]
    %s171 = scalar_lea.vmem %s0, 46
    %v172 = vld [vmem:[%s171] sm:$0x2]
    %vm173 = vcmask 1041409
    %v174 = vsel %vm173, %v172, %v170
    %175 = vrot.lane.b32.xlu0 %v174, 60
    %v176 = vpop.permute.xlu0 %175
    %vm177 = vcmask 523744
    %178 = vst.msk [vmem:[#allocation0] ss:$8 sm:$0x3] %vm177, %v176
    %s179 = scalar_lea.vmem %s0, 14
    %v180 = vld [vmem:[%s179] sm:$0x1]
    %s181 = scalar_lea.vmem %s0, 45
    %v182 = vld [vmem:[%s181] sm:$0x2]
    %vm183 = vcmask 1041409
    %v184 = vsel %vm183, %v182, %v180
    %185 = vrot.lane.b32.xlu0 %v184, 56
    %v186 = vpop.permute.xlu0 %185
    %vm187 = vcmask 490944
    %188 = vst.msk [vmem:[#allocation0] ss:$8 sm:$0x3] %vm187, %v186
    %s189 = scalar_lea.vmem %s0, 13
    %v190 = vld [vmem:[%s189] sm:$0x1]
    %s191 = scalar_lea.vmem %s0, 44
    %v192 = vld [vmem:[%s191] sm:$0x2]
    %vm193 = vcmask 1041409
    %v194 = vsel %vm193, %v192, %v190
    %195 = vrot.lane.b32.xlu0 %v194, 52
    %v196 = vpop.permute.xlu0 %195
    %vm197 = vcmask 458144
    %198 = vst.msk [vmem:[#allocation0] ss:$8 sm:$0x3] %vm197, %v196
    %s199 = scalar_lea.vmem %s0, 12
    %v200 = vld [vmem:[%s199] sm:$0x1]
    %s201 = scalar_lea.vmem %s0, 43
    %v202 = vld [vmem:[%s201] sm:$0x2]
    %vm203 = vcmask 1041409
    %v204 = vsel %vm203, %v202, %v200
    %205 = vrot.lane.b32.xlu0 %v204, 48
    %v206 = vpop.permute.xlu0 %205
    %vm207 = vcmask 425344
    %208 = vst.msk [vmem:[#allocation0] ss:$8 sm:$0x3] %vm207, %v206
    %s209 = scalar_lea.vmem %s0, 11
    %v210 = vld [vmem:[%s209] sm:$0x1]
    %s211 = scalar_lea.vmem %s0, 42
    %v212 = vld [vmem:[%s211] sm:$0x2]
    %vm213 = vcmask 1041409
    %v214 = vsel %vm213, %v212, %v210
    %215 = vrot.lane.b32.xlu0 %v214, 44
    %v216 = vpop.permute.xlu0 %215
    %vm217 = vcmask 392544
    %218 = vst.msk [vmem:[#allocation0] ss:$8 sm:$0x3] %vm217, %v216
    %s219 = scalar_lea.vmem %s0, 10
    %v220 = vld [vmem:[%s219] sm:$0x1]
    %s221 = scalar_lea.vmem %s0, 41
    %v222 = vld [vmem:[%s221] sm:$0x2]
    %vm223 = vcmask 1041409
    %v224 = vsel %vm223, %v222, %v220
    %225 = vrot.lane.b32.xlu0 %v224, 40
    %v226 = vpop.permute.xlu0 %225
    %vm227 = vcmask 359744
    %228 = vst.msk [vmem:[#allocation0] ss:$8 sm:$0x3] %vm227, %v226
    %s229 = scalar_lea.vmem %s0, 9
    %v230 = vld [vmem:[%s229] sm:$0x1]
    %s231 = scalar_lea.vmem %s0, 40
    %v232 = vld [vmem:[%s231] sm:$0x2]
    %vm233 = vcmask 1041409
    %v234 = vsel %vm233, %v232, %v230
    %235 = vrot.lane.b32.xlu0 %v234, 36
    %v236 = vpop.permute.xlu0 %235
    %vm237 = vcmask 326944
    %238 = vst.msk [vmem:[#allocation0] ss:$8 sm:$0x3] %vm237, %v236
    %s239 = scalar_lea.vmem %s0, 8
    %v240 = vld [vmem:[%s239] sm:$0x1]
    %s241 = scalar_lea.vmem %s0, 39
    %v242 = vld [vmem:[%s241] sm:$0x2]
    %vm243 = vcmask 1041409
    %v244 = vsel %vm243, %v242, %v240
    %245 = vrot.lane.b32.xlu0 %v244, 32
    %v246 = vpop.permute.xlu0 %245
    %vm247 = vcmask 294144
    %248 = vst.msk [vmem:[#allocation0] ss:$8 sm:$0x3] %vm247, %v246
    %s249 = scalar_lea.vmem %s0, 7
    %v250 = vld [vmem:[%s249] sm:$0x1]
    %s251 = scalar_lea.vmem %s0, 38
    %v252 = vld [vmem:[%s251] sm:$0x2]
    %vm253 = vcmask 1041409
    %v254 = vsel %vm253, %v252, %v250
    %255 = vrot.lane.b32.xlu0 %v254, 28
    %v256 = vpop.permute.xlu0 %255
    %vm257 = vcmask 261344
    %258 = vst.msk [vmem:[#allocation0] ss:$8 sm:$0x3] %vm257, %v256
    %s259 = scalar_lea.vmem %s0, 6
    %v260 = vld [vmem:[%s259] sm:$0x1]
    %s261 = scalar_lea.vmem %s0, 37
    %v262 = vld [vmem:[%s261] sm:$0x2]
    %vm263 = vcmask 1041409
    %v264 = vsel %vm263, %v262, %v260
    %265 = vrot.lane.b32.xlu0 %v264, 24
    %v266 = vpop.permute.xlu0 %265
    %vm267 = vcmask 228544
    %268 = vst.msk [vmem:[#allocation0] ss:$8 sm:$0x3] %vm267, %v266
    %s269 = scalar_lea.vmem %s0, 5
    %v270 = vld [vmem:[%s269] sm:$0x1]
    %s271 = scalar_lea.vmem %s0, 36
    %v272 = vld [vmem:[%s271] sm:$0x2]
    %vm273 = vcmask 1041409
    %v274 = vsel %vm273, %v272, %v270
    %275 = vrot.lane.b32.xlu0 %v274, 20
    %v276 = vpop.permute.xlu0 %275
    %vm277 = vcmask 195744
    %278 = vst.msk [vmem:[#allocation0] ss:$8 sm:$0x3] %vm277, %v276
    %s279 = scalar_lea.vmem %s0, 4
    %v280 = vld [vmem:[%s279] sm:$0x1]
    %s281 = scalar_lea.vmem %s0, 35
    %v282 = vld [vmem:[%s281] sm:$0x2]
    %vm283 = vcmask 1041409
    %v284 = vsel %vm283, %v282, %v280
    %285 = vrot.lane.b32.xlu0 %v284, 16
    %v286 = vpop.permute.xlu0 %285
    %vm287 = vcmask 162944
    %288 = vst.msk [vmem:[#allocation0] ss:$8 sm:$0x3] %vm287, %v286
    %s289 = scalar_lea.vmem %s0, 3
    %v290 = vld [vmem:[%s289] sm:$0x1]
    %s291 = scalar_lea.vmem %s0, 34
    %v292 = vld [vmem:[%s291] sm:$0x2]
    %vm293 = vcmask 1041409
    %v294 = vsel %vm293, %v292, %v290
    %295 = vrot.lane.b32.xlu0 %v294, 12
    %v296 = vpop.permute.xlu0 %295
    %vm297 = vcmask 130144
    %298 = vst.msk [vmem:[#allocation0] ss:$8 sm:$0x3] %vm297, %v296
    %s299 = scalar_lea.vmem %s0, 2
    %v300 = vld [vmem:[%s299] sm:$0x1]
    %s301 = scalar_lea.vmem %s0, 33
    %v302 = vld [vmem:[%s301] sm:$0x2]
    %vm303 = vcmask 1041409
    %v304 = vsel %vm303, %v302, %v300
    %305 = vrot.lane.b32.xlu0 %v304, 8
    %v306 = vpop.permute.xlu0 %305
    %vm307 = vcmask 97344
    %308 = vst.msk [vmem:[#allocation0] ss:$8 sm:$0x3] %vm307, %v306
    %s309 = scalar_lea.vmem %s0, 1
    %v310 = vld [vmem:[%s309] sm:$0x1]
    %s311 = scalar_lea.vmem %s0, 32
    %v312 = vld [vmem:[%s311] sm:$0x2]
    %vm313 = vcmask 1041409
    %v314 = vsel %vm313, %v312, %v310
    %315 = vrot.lane.b32.xlu0 %v314, 4
    %v316 = vpop.permute.xlu0 %315
    %vm317 = vcmask 64544
    %318 = vst.msk [vmem:[#allocation0] ss:$8 sm:$0x3] %vm317, %v316
    %s320 = sshllo.u32 0, 1
    %v322 = vld [vmem:[#allocation0] sm:%s320]
    %s323 = sshllo.u32 0, 1
    %324 = vst [vmem:[%s1] sm:%s323] %v322
    %s325 = scalar_lea.vmem [#allocation0], 8
    %v326 = vld [vmem:[%s325] sm:%s320]
    %s327 = sshllo.u32 0, 1
    %s328 = scalar_lea.vmem %s1, 1
    %329 = vst [vmem:[%s328] sm:%s327] %v326

// kernel: _d_module_forward_nhwc.1
$region0: #{_d_module_forward_nhwc.1}
  #allocation0 [shape = 'u32[]', space=smem, size = 0x4, offset = 0x4, fixed_abs, tag = 'smem constant byte address 0x4 - core index']
  #allocation1 [shape = 'u32[144,128]{1,0:T(1,128)}', space=vmem, size = 0x12000, scoped, tag = 'internal scratch']
  #allocation2 [shape = 'bf16[54,136]{1,0:T(8,128)(2,1)}', space=vmem, size = 0x7000, scoped, tag = 'scratch operand']
  #allocation3 [shape = 'bf16[54,136]{1,0:T(8,128)(2,1)}', space=vmem, size = 0x7000, scoped, tag = 'scratch operand']
  %s0 = inlined_call_operand.vmem [shape: bf16[6,16,128], index: 0, kind: input, shape index: {}]
  %s1 = inlined_call_operand.vmem [shape: bf16[3,136,128], index: 1, kind: input, shape index: {}]
  %s2 = inlined_call_operand.vmem [shape: f32[1,128], index: 2, kind: input, shape index: {}]
  %s3 = inlined_call_operand.vmem [shape: bf16[3,136,64], index: 3, kind: input, shape index: {}]
  %s4 = inlined_call_operand.vmem [shape: f32[1,64], index: 4, kind: input, shape index: {}]
  %s5 = inlined_call_operand.vmem [shape: bf16[64,256], index: 5, kind: input, shape index: {}]
  %s6 = inlined_call_operand.vmem [shape: f32[1,256], index: 6, kind: input, shape index: {}]
  %s7 = inlined_call_operand.vmem [shape: bf16[64,64], index: 7, kind: input, shape index: {}]
  %s8 = inlined_call_operand.vmem [shape: f32[1,64], index: 8, kind: input, shape index: {}]
  %s9 = inlined_call_operand.vmem [shape: bf16[6,16,256], index: 9, kind: output, shape index: {0}]
  %s10 = inlined_call_operand.vmem [shape: f32[96,64], index: 10, kind: output, shape index: {1}]
  %11 = xla_tuple %s9, %s10
  %s12 = sld [smem:[#allocation0]]
  $region77: #{_d_module_forward_nhwc.1} parent=0
    _
  %s14 = ssub.s32 1, %s12
  %s15 = scalar_select 0, %s14, %s12
  loop: start=0, step=1, limit=4
  $region2: #{_d_module_forward_nhwc.1} parent=0 // loop_pre_header
    _
  $region3: #{_d_module_forward_nhwc.1} parent=0 // loop_header
    %s17 = sphi 0, %s21
    %p18 = scmp.ge.s32.totalorder %s17, 4
    %s27 = sphi 0, %s29
    %s30 = sphi 0, %s27
    %s31 = sphi 0, %s30
    %s47 = sphi 0, %s31
    %s51 = sphi 0, %s51
    %s53 = sphi 0, %s51
    %s54 = sphi 0, %s53
    %s68 = sphi 0, %s54
    %s72 = sphi 0, %s72
    %s74 = sphi 0, %s72
    %s75 = sphi 0, %s74
    %s89 = sphi 0, %s75
    %s93 = sphi 0, %s93
    %s95 = sphi 0, %s93
    %s96 = sphi 0, %s95
    %s110 = sphi 0, %s96
    %s114 = sphi 0, %s114
    %s116 = sphi 0, %s114
    %s117 = sphi 0, %s116
    %s131 = sphi 0, %s117
    %s135 = sphi 0, %s135
    %s137 = sphi 0, %s135
    %s138 = sphi 0, %s137
    %s152 = sphi 0, %s138
    %s156 = sphi 0, %s156
    %s158 = sphi 0, %s156
    %s159 = sphi 0, %s158
    %s173 = sphi 0, %s159
    %s177 = sphi 0, %s177
    %s179 = sphi 0, %s177
    %s180 = sphi 0, %s179
    %s194 = sphi 0, %s180
    %s198 = sphi 0, %s198
    %s200 = sphi 0, %s198
    %s201 = sphi 0, %s200
    %s215 = sphi 0, %s201
    %s221 = sphi 0, %s223
    %s224 = sphi 0, %s221
    %s225 = sphi 0, %s224
    %s241 = sphi 0, %s225
    %s247 = sphi 0, %s249
    %s250 = sphi 0, %s247
    %s251 = sphi 0, %s250
    %s267 = sphi 0, %s251
  $region4: #{_d_module_forward_nhwc.1} parent=0 // loop_header_branch
    %20 = sbr.rel (%p18) target = $region8
  $region5: #{_d_module_forward_nhwc.1} parent=0 // loop_body
    %s22 = ssub.s32 %s17, 1
    %s23 = ssub.s32 %s17, 2
    %s24 = sadd.s32 %s17, 1
    %s25 = ssub.s32 %s17, %s24
    %p26 = scmp.eq.s32.totalorder %s25, 0
    %s28 = sadd.s32 %s27, 1
    %s29 = scalar_select %p26, %s27, %s28
    %p32 = pneg %p26
    %p33 = scmp.eq.s32.totalorder %s17, 1
    %p34 = por %p32, %p33
    %p35 = scmp.ne.s32.totalorder %s27, %s30
    %p36 = scmp.eq.s32.totalorder %s17, 0
    %p37 = por %p35, %p36
    %p38 = scmp.ne.s32.totalorder %s27, %s30
    %p39 = scmp.eq.s32.totalorder %s22, 1
    %p40 = por %p38, %p39
    %p41 = scmp.ne.s32.totalorder %s30, %s31
    %p42 = scmp.eq.s32.totalorder %s22, 0
    %p43 = por %p41, %p42
    %p44 = scmp.ne.s32.totalorder %s30, %s31
    %p45 = scmp.eq.s32.totalorder %s23, 1
    %p46 = por %p44, %p45
    %p48 = scmp.ne.s32.totalorder %s31, %s47
    %p49 = scmp.eq.s32.totalorder %s23, 0
    %p50 = por %p48, %p49
    %s52 = sadd.s32 %s51, 1
    %p55 = scmp.eq.s32.totalorder %s17, 1
    %p56 = scmp.ne.s32.totalorder %s51, %s53
    %p57 = scmp.eq.s32.totalorder %s17, 0
    %p58 = por %p56, %p57
    %p59 = scmp.ne.s32.totalorder %s51, %s53
    %p60 = scmp.eq.s32.totalorder %s22, 1
    %p61 = por %p59, %p60
    %p62 = scmp.ne.s32.totalorder %s53, %s54
    %p63 = scmp.eq.s32.totalorder %s22, 0
    %p64 = por %p62, %p63
    %p65 = scmp.ne.s32.totalorder %s53, %s54
    %p66 = scmp.eq.s32.totalorder %s23, 1
    %p67 = por %p65, %p66
    %p69 = scmp.ne.s32.totalorder %s54, %s68
    %p70 = scmp.eq.s32.totalorder %s23, 0
    %p71 = por %p69, %p70
    %s73 = sadd.s32 %s72, 1
    %p76 = scmp.eq.s32.totalorder %s17, 1
    %p77 = scmp.ne.s32.totalorder %s72, %s74
    %p78 = scmp.eq.s32.totalorder %s17, 0
    %p79 = por %p77, %p78
    %p80 = scmp.ne.s32.totalorder %s72, %s74
    %p81 = scmp.eq.s32.totalorder %s22, 1
    %p82 = por %p80, %p81
    %p83 = scmp.ne.s32.totalorder %s74, %s75
    %p84 = scmp.eq.s32.totalorder %s22, 0
    %p85 = por %p83, %p84
    %p86 = scmp.ne.s32.totalorder %s74, %s75
    %p87 = scmp.eq.s32.totalorder %s23, 1
    %p88 = por %p86, %p87
    %p90 = scmp.ne.s32.totalorder %s75, %s89
    %p91 = scmp.eq.s32.totalorder %s23, 0
    %p92 = por %p90, %p91
    %s94 = sadd.s32 %s93, 1
    %p97 = scmp.eq.s32.totalorder %s17, 1
    %p98 = scmp.ne.s32.totalorder %s93, %s95
    %p99 = scmp.eq.s32.totalorder %s17, 0
    %p100 = por %p98, %p99
    %p101 = scmp.ne.s32.totalorder %s93, %s95
    %p102 = scmp.eq.s32.totalorder %s22, 1
    %p103 = por %p101, %p102
    %p104 = scmp.ne.s32.totalorder %s95, %s96
    %p105 = scmp.eq.s32.totalorder %s22, 0
    %p106 = por %p104, %p105
    %p107 = scmp.ne.s32.totalorder %s95, %s96
    %p108 = scmp.eq.s32.totalorder %s23, 1
    %p109 = por %p107, %p108
    %p111 = scmp.ne.s32.totalorder %s96, %s110
    %p112 = scmp.eq.s32.totalorder %s23, 0
    %p113 = por %p111, %p112
    %s115 = sadd.s32 %s114, 1
    %p118 = scmp.eq.s32.totalorder %s17, 1
    %p119 = scmp.ne.s32.totalorder %s114, %s116
    %p120 = scmp.eq.s32.totalorder %s17, 0
    %p121 = por %p119, %p120
    %p122 = scmp.ne.s32.totalorder %s114, %s116
    %p123 = scmp.eq.s32.totalorder %s22, 1
    %p124 = por %p122, %p123
    %p125 = scmp.ne.s32.totalorder %s116, %s117
    %p126 = scmp.eq.s32.totalorder %s22, 0
    %p127 = por %p125, %p126
    %p128 = scmp.ne.s32.totalorder %s116, %s117
    %p129 = scmp.eq.s32.totalorder %s23, 1
    %p130 = por %p128, %p129
    %p132 = scmp.ne.s32.totalorder %s117, %s131
    %p133 = scmp.eq.s32.totalorder %s23, 0
    %p134 = por %p132, %p133
    %s136 = sadd.s32 %s135, 1
    %p139 = scmp.eq.s32.totalorder %s17, 1
    %p140 = scmp.ne.s32.totalorder %s135, %s137
    %p141 = scmp.eq.s32.totalorder %s17, 0
    %p142 = por %p140, %p141
    %p143 = scmp.ne.s32.totalorder %s135, %s137
    %p144 = scmp.eq.s32.totalorder %s22, 1
    %p145 = por %p143, %p144
    %p146 = scmp.ne.s32.totalorder %s137, %s138
    %p147 = scmp.eq.s32.totalorder %s22, 0
    %p148 = por %p146, %p147
    %p149 = scmp.ne.s32.totalorder %s137, %s138
    %p150 = scmp.eq.s32.totalorder %s23, 1
    %p151 = por %p149, %p150
    %p153 = scmp.ne.s32.totalorder %s138, %s152
    %p154 = scmp.eq.s32.totalorder %s23, 0
    %p155 = por %p153, %p154
    %s157 = sadd.s32 %s156, 1
    %p160 = scmp.eq.s32.totalorder %s17, 1
    %p161 = scmp.ne.s32.totalorder %s156, %s158
    %p162 = scmp.eq.s32.totalorder %s17, 0
    %p163 = por %p161, %p162
    %p164 = scmp.ne.s32.totalorder %s156, %s158
    %p165 = scmp.eq.s32.totalorder %s22, 1
    %p166 = por %p164, %p165
    %p167 = scmp.ne.s32.totalorder %s158, %s159
    %p168 = scmp.eq.s32.totalorder %s22, 0
    %p169 = por %p167, %p168
    %p170 = scmp.ne.s32.totalorder %s158, %s159
    %p171 = scmp.eq.s32.totalorder %s23, 1
    %p172 = por %p170, %p171
    %p174 = scmp.ne.s32.totalorder %s159, %s173
    %p175 = scmp.eq.s32.totalorder %s23, 0
    %p176 = por %p174, %p175
    %s178 = sadd.s32 %s177, 1
    %p181 = scmp.eq.s32.totalorder %s17, 1
    %p182 = scmp.ne.s32.totalorder %s177, %s179
    %p183 = scmp.eq.s32.totalorder %s17, 0
    %p184 = por %p182, %p183
    %p185 = scmp.ne.s32.totalorder %s177, %s179
    %p186 = scmp.eq.s32.totalorder %s22, 1
    %p187 = por %p185, %p186
    %p188 = scmp.ne.s32.totalorder %s179, %s180
    %p189 = scmp.eq.s32.totalorder %s22, 0
    %p190 = por %p188, %p189
    %p191 = scmp.ne.s32.totalorder %s179, %s180
    %p192 = scmp.eq.s32.totalorder %s23, 1
    %p193 = por %p191, %p192
    %p195 = scmp.ne.s32.totalorder %s180, %s194
    %p196 = scmp.eq.s32.totalorder %s23, 0
    %p197 = por %p195, %p196
    %s199 = sadd.s32 %s198, 1
    %p202 = scmp.eq.s32.totalorder %s17, 1
    %p203 = scmp.ne.s32.totalorder %s198, %s200
    %p204 = scmp.eq.s32.totalorder %s17, 0
    %p205 = por %p203, %p204
    %p206 = scmp.ne.s32.totalorder %s198, %s200
    %p207 = scmp.eq.s32.totalorder %s22, 1
    %p208 = por %p206, %p207
    %p209 = scmp.ne.s32.totalorder %s200, %s201
    %p210 = scmp.eq.s32.totalorder %s22, 0
    %p211 = por %p209, %p210
    %p212 = scmp.ne.s32.totalorder %s200, %s201
    %p213 = scmp.eq.s32.totalorder %s23, 1
    %p214 = por %p212, %p213
    %p216 = scmp.ne.s32.totalorder %s201, %s215
    %p217 = scmp.eq.s32.totalorder %s23, 0
    %p218 = por %p216, %p217
    %s219 = ssub.s32 %s17, %s24
    %p220 = scmp.eq.s32.totalorder %s219, 0
    %s222 = sadd.s32 %s221, 1
    %s223 = scalar_select %p220, %s221, %s222
    %p226 = pneg %p220
    %p227 = scmp.eq.s32.totalorder %s17, 1
    %p228 = por %p226, %p227
    %p229 = scmp.ne.s32.totalorder %s221, %s224
    %p230 = scmp.eq.s32.totalorder %s17, 0
    %p231 = por %p229, %p230
    %p232 = scmp.ne.s32.totalorder %s221, %s224
    %p233 = scmp.eq.s32.totalorder %s22, 1
    %p234 = por %p232, %p233
    %p235 = scmp.ne.s32.totalorder %s224, %s225
    %p236 = scmp.eq.s32.totalorder %s22, 0
    %p237 = por %p235, %p236
    %p238 = scmp.ne.s32.totalorder %s224, %s225
    %p239 = scmp.eq.s32.totalorder %s23, 1
    %p240 = por %p238, %p239
    %p242 = scmp.ne.s32.totalorder %s225, %s241
    %p243 = scmp.eq.s32.totalorder %s23, 0
    %p244 = por %p242, %p243
    %s245 = ssub.s32 %s17, %s24
    %p246 = scmp.eq.s32.totalorder %s245, 0
    %s248 = sadd.s32 %s247, 1
    %s249 = scalar_select %p246, %s247, %s248
    %p252 = pneg %p246
    %p253 = scmp.eq.s32.totalorder %s17, 1
    %p254 = por %p252, %p253
    %p255 = scmp.ne.s32.totalorder %s247, %s250
    %p256 = scmp.eq.s32.totalorder %s17, 0
    %p257 = por %p255, %p256
    %p258 = scmp.ne.s32.totalorder %s247, %s250
    %p259 = scmp.eq.s32.totalorder %s22, 1
    %p260 = por %p258, %p259
    %p261 = scmp.ne.s32.totalorder %s250, %s251
    %p262 = scmp.eq.s32.totalorder %s22, 0
    %p263 = por %p261, %p262
    %p264 = scmp.ne.s32.totalorder %s250, %s251
    %p265 = scmp.eq.s32.totalorder %s23, 1
    %p266 = por %p264, %p265
    %p268 = scmp.ne.s32.totalorder %s251, %s267
    %p269 = scmp.eq.s32.totalorder %s23, 0
    %p270 = por %p268, %p269
    %p271 = scmp.le.s32.totalorder 1, %s17
    %p272 = scmp.lt.s32.totalorder %s17, 3
    %p273 = pnand %p271, %p272
    %p274 = pneg %p273
    // Predicated region
    $region9: #{_d_module_forward_nhwc.1} parent=5 // pred_check
      _
    $region10: #{_d_module_forward_nhwc.1} parent=5 // pred_check_branch
      %276 = sbr.rel (%p273) target = $region12
    $region11: #{_d_module_forward_nhwc.1} parent=5 // pred_region
      %s277 = ssub.s32 %s17, 1
      // Predicated region
      $region13: #{_d_module_forward_nhwc.1} parent=11 // pred_check
        %p278 = pneg %p64
      $region14: #{_d_module_forward_nhwc.1} parent=11 // pred_check_branch
        %280 = sbr.rel (%p278) target = $region16
      $region15: #{_d_module_forward_nhwc.1} parent=11 // pred_region
        _
      $region16: #{_d_module_forward_nhwc.1} parent=11 // pred_fallthru
        _
      // Predicated region
      $region17: #{_d_module_forward_nhwc.1} parent=11 // pred_check
        %p281 = pneg %p85
      $region18: #{_d_module_forward_nhwc.1} parent=11 // pred_check_branch
        %283 = sbr.rel (%p281) target = $region20
      $region19: #{_d_module_forward_nhwc.1} parent=11 // pred_region
        _
      $region20: #{_d_module_forward_nhwc.1} parent=11 // pred_fallthru
        _
      // Predicated region
      $region21: #{_d_module_forward_nhwc.1} parent=11 // pred_check
        %p284 = pneg %p106
      $region22: #{_d_module_forward_nhwc.1} parent=11 // pred_check_branch
        %286 = sbr.rel (%p284) target = $region24
      $region23: #{_d_module_forward_nhwc.1} parent=11 // pred_region
        _
      $region24: #{_d_module_forward_nhwc.1} parent=11 // pred_fallthru
        _
      // Predicated region
      $region25: #{_d_module_forward_nhwc.1} parent=11 // pred_check
        %p287 = pneg %p127
      $region26: #{_d_module_forward_nhwc.1} parent=11 // pred_check_branch
        %289 = sbr.rel (%p287) target = $region28
      $region27: #{_d_module_forward_nhwc.1} parent=11 // pred_region
        _
      $region28: #{_d_module_forward_nhwc.1} parent=11 // pred_fallthru
        _
      // Predicated region
      $region29: #{_d_module_forward_nhwc.1} parent=11 // pred_check
        %p290 = pneg %p148
      $region30: #{_d_module_forward_nhwc.1} parent=11 // pred_check_branch
        %292 = sbr.rel (%p290) target = $region32
      $region31: #{_d_module_forward_nhwc.1} parent=11 // pred_region
        _
      $region32: #{_d_module_forward_nhwc.1} parent=11 // pred_fallthru
        _
      // Predicated region
      $region33: #{_d_module_forward_nhwc.1} parent=11 // pred_check
        %p293 = pneg %p169
      $region34: #{_d_module_forward_nhwc.1} parent=11 // pred_check_branch
        %295 = sbr.rel (%p293) target = $region36
      $region35: #{_d_module_forward_nhwc.1} parent=11 // pred_region
        _
      $region36: #{_d_module_forward_nhwc.1} parent=11 // pred_fallthru
        _
      // Predicated region
      $region37: #{_d_module_forward_nhwc.1} parent=11 // pred_check
        %p296 = pneg %p190
      $region38: #{_d_module_forward_nhwc.1} parent=11 // pred_check_branch
        %298 = sbr.rel (%p296) target = $region40
      $region39: #{_d_module_forward_nhwc.1} parent=11 // pred_region
        _
      $region40: #{_d_module_forward_nhwc.1} parent=11 // pred_fallthru
        _
      // Predicated region
      $region41: #{_d_module_forward_nhwc.1} parent=11 // pred_check
        %p299 = pneg %p211
      $region42: #{_d_module_forward_nhwc.1} parent=11 // pred_check_branch
        %301 = sbr.rel (%p299) target = $region44
      $region43: #{_d_module_forward_nhwc.1} parent=11 // pred_region
        _
      $region44: #{_d_module_forward_nhwc.1} parent=11 // pred_fallthru
        _
    $region12: #{_d_module_forward_nhwc.1} parent=5 // pred_fallthru
      _
    %p302 = scmp.lt.s32.totalorder %s17, 2
    // Predicated region
    $region45: #{_d_module_forward_nhwc.1} parent=5 // pred_check
      %p303 = pneg %p302
    $region46: #{_d_module_forward_nhwc.1} parent=5 // pred_check_branch
      %305 = sbr.rel (%p303) target = $region48
    $region47: #{_d_module_forward_nhwc.1} parent=5 // pred_region
      // Predicated region
      $region49: #{_d_module_forward_nhwc.1} parent=47 // pred_check
        %p306 = pneg %p37
      $region50: #{_d_module_forward_nhwc.1} parent=47 // pred_check_branch
        %308 = sbr.rel (%p306) target = $region52
      $region51: #{_d_module_forward_nhwc.1} parent=47 // pred_region
        %s309 = smul.u32 3, %s17
        %p310 = scmp.lt.s32.totalorder %s309, 5
        %s311 = scalar_select %p310, %s309, 5
        %s312 = smul.addr %s311, 2
        %s313 = smul.addr %s312, 4
        %s314 = scalar_lea.vmem %s0, %s313
        %s315 = smul.u32 3, %s17
      $region52: #{_d_module_forward_nhwc.1} parent=47 // pred_fallthru
        _
    $region48: #{_d_module_forward_nhwc.1} parent=5 // pred_fallthru
      _
    %p316 = scmp.le.s32.totalorder 1, %s17
    %p317 = scmp.lt.s32.totalorder %s17, 3
    %p318 = pnand %p316, %p317
    %p319 = pneg %p318
    // Predicated region
    $region53: #{_d_module_forward_nhwc.1} parent=5 // pred_check
      _
    $region54: #{_d_module_forward_nhwc.1} parent=5 // pred_check_branch
      %321 = sbr.rel (%p318) target = $region56
    $region55: #{_d_module_forward_nhwc.1} parent=5 // pred_region
      %s322 = ssub.s32 %s17, 1
      %s323 = smul.u32 3, %s22
      %p324 = scmp.lt.s32.totalorder %s323, 5
      %s325 = scalar_select %p324, %s323, 5
      %s326 = smul.addr %s325, 2
      %s327 = smul.addr %s326, 4
      %s328 = scalar_lea.vmem %s0, %s327
      %p329 = pneg %p43
      %p330 = pneg %p40
      %p331 = pneg %p64
      %p332 = pneg %p61
      %p333 = pneg %p85
      %p334 = pneg %p82
      %p335 = pneg %p106
      %p336 = pneg %p103
      %p337 = pneg %p127
      %p338 = pneg %p124
      %p339 = pneg %p148
      %p340 = pneg %p145
      %p341 = pneg %p169
      %p342 = pneg %p166
      %p343 = pneg %p190
      %p344 = pneg %p187
      %p345 = pneg %p211
      %p346 = pneg %p208
      %p347 = pneg %p237
      %p348 = pneg %p234
      %s349 = smul.u32 3, %s22
      %p350 = scmp.lt.s32.totalorder %s349, 5
      %s351 = scalar_select %p350, %s349, 5
      %s352 = smul.addr %s351, 4
      %s353 = smul.addr %s352, 4
      %s354 = scalar_lea.vmem %s9, %s353
      %p355 = pneg %p263
      %p356 = pneg %p260
      %s357 = smul.u32 6, %s22
      %p358 = scmp.lt.s32.totalorder %s357, 11
      %s359 = scalar_select %p358, %s357, 11
      %s360 = smul.addr %s359, 8
      %s361 = scalar_lea.vmem %s10, %s360
      %s362 = smul.u32 3, %s22
      %p363 = scmp.lt.s32.totalorder %s362, 5
      %s364 = scalar_select %p363, %s362, 5
      %s365 = smul.addr %s364, 2
      %s366 = smul.addr %s365, 4
      %s367 = scalar_lea.vmem %s0, %s366
      %s368 = smul.u32 3, %s22
      %s369 = smul.u32 3, %s22
      %p370 = scmp.lt.s32.totalorder %s369, 5
      %s371 = scalar_select %p370, %s369, 5
      %s372 = smul.addr %s371, 4
      %s373 = smul.addr %s372, 4
      %s374 = scalar_lea.vmem %s9, %s373
      %s375 = smul.u32 3, %s22
      %s376 = smul.u32 6, %s22
      %p377 = scmp.lt.s32.totalorder %s376, 11
      %s378 = scalar_select %p377, %s376, 11
      %s379 = smul.addr %s378, 8
      %s380 = scalar_lea.vmem %s10, %s379
      %s381 = smul.u32 6, %s22
      %vm383 = vcmask 60416
      %384 = vst.msk [vmem:[#allocation2 + $0x4] sm:$0xf] %vm383, 0
      %385 = vst.msk [vmem:[#allocation2 + $0xc] sm:$0xf] %vm383, 0
      %386 = vst.msk [vmem:[#allocation2 + $0x14] sm:$0xf] %vm383, 0
      %387 = vst.msk [vmem:[#allocation2 + $0x1c] sm:$0xf] %vm383, 0
      %388 = vst.msk [vmem:[#allocation2 + $0x24] sm:$0xf] %vm383, 0
      %389 = vst.msk [vmem:[#allocation2 + $0x2c] sm:$0xf] %vm383, 0
      %vm390 = vcmask 59392
      %391 = vst.msk [vmem:[#allocation2 + $0x34] sm:$0x7] %vm390, 0
      %392 = vst.msk [vmem:[#allocation3 + $0x4] sm:$0xf] %vm383, 0
      %393 = vst.msk [vmem:[#allocation3 + $0xc] sm:$0xf] %vm383, 0
      %394 = vst.msk [vmem:[#allocation3 + $0x14] sm:$0xf] %vm383, 0
      %395 = vst.msk [vmem:[#allocation3 + $0x1c] sm:$0xf] %vm383, 0
      %396 = vst.msk [vmem:[#allocation3 + $0x24] sm:$0xf] %vm383, 0
      %397 = vst.msk [vmem:[#allocation3 + $0x2c] sm:$0xf] %vm383, 0
      %398 = vst.msk [vmem:[#allocation3 + $0x34] sm:$0x7] %vm390, 0
      %vm399 = vcmask 1040384
      %vm400 = vsmask.f32 256
      %vm401 = vmand %vm399, %vm400
      %v402 = vld [vmem:[#allocation2] sm:$0x1]
      %v403 = vsel %vm401, 0, %v402
      %404 = vst [vmem:[#allocation2] sm:$0x1] %v403
      %vm405 = vsmask.f32 7938
      %vm406 = vmand %vm399, %vm405
      %v407 = vld [vmem:[#allocation2 + $0x10] sm:$0x1]
      %v408 = vsel %vm406, 0, %v407
      %409 = vst [vmem:[#allocation2 + $0x10] sm:$0x1] %v408
      %v410 = vld [vmem:[#allocation3] sm:$0x1]
      %v411 = vsel %vm401, 0, %v410
      %412 = vst [vmem:[#allocation3] sm:$0x1] %v411
      %v413 = vld [vmem:[#allocation3 + $0x10] sm:$0x1]
      %v414 = vsel %vm406, 0, %v413
      %415 = vst [vmem:[#allocation3 + $0x10] sm:$0x1] %v414
      %vm416 = vcmask 1041409
      %vm417 = vsmask.f32 1280
      %vm418 = vmand %vm416, %vm417
      %v419 = vld [vmem:[#allocation2 + $0x10] sm:$0x2]
      %v420 = vsel %vm418, 0, %v419
      %421 = vst [vmem:[#allocation2 + $0x10] sm:$0x2] %v420
      %vm422 = vsmask.f32 7942
      %vm423 = vmand %vm416, %vm422
      %v424 = vld [vmem:[#allocation2 + $0x20] sm:$0x2]
      %v425 = vsel %vm423, 0, %v424
      %426 = vst [vmem:[#allocation2 + $0x20] sm:$0x2] %v425
      %v427 = vld [vmem:[#allocation3 + $0x10] sm:$0x2]
      %v428 = vsel %vm418, 0, %v427
      %429 = vst [vmem:[#allocation3 + $0x10] sm:$0x2] %v428
      %v430 = vld [vmem:[#allocation3 + $0x20] sm:$0x2]
      %v431 = vsel %vm423, 0, %v430
      %432 = vst [vmem:[#allocation3 + $0x20] sm:$0x2] %v431
      %vm433 = vcmask 1042434
      %vm434 = vsmask.f32 2304
      %vm435 = vmand %vm433, %vm434
      %v436 = vld [vmem:[#allocation2 + $0x20] sm:$0x4]
      %v437 = vsel %vm435, 0, %v436
      %438 = vst [vmem:[#allocation2 + $0x20] sm:$0x4] %v437
      %vm439 = vsmask.f32 7946
      %vm440 = vmand %vm433, %vm439
      %v441 = vld [vmem:[#allocation2 + $0x30] sm:$0x4]
      %v442 = vsel %vm440, 0, %v441
      %443 = vst [vmem:[#allocation2 + $0x30] sm:$0x4] %v442
      %v444 = vld [vmem:[#allocation3 + $0x20] sm:$0x4]
      %v445 = vsel %vm435, 0, %v444
      %446 = vst [vmem:[#allocation3 + $0x20] sm:$0x4] %v445
      %v447 = vld [vmem:[#allocation3 + $0x30] sm:$0x4]
      %v448 = vsel %vm440, 0, %v447
      %449 = vst [vmem:[#allocation3 + $0x30] sm:$0x4] %v448
      %v450 = vld [vmem:[%s367] sm:$0xf]
      %v451 = vld [vmem:[%s367 + $0x4] sm:$0xf]
      %vm452 = vsmask.f32 4368
      %vm453 = vmor %vm400, %vm452
      %v455 = vshrl.u32 %v450, 16
      %v457 = vrot.slane %v455, 7
      %v458 = vshll.u32 %v450, 16
      %v460 = vor.u32 %v457, %v458
      %v461 = vrot.slane %v457, 4
      %v463 = vshrl.u32 %v451, 16
      %v465 = vrot.slane %v463, 7
      %v466 = vshll.u32 %v451, 16
      %v468 = vor.u32 %v465, %v466
      %v469 = vsel %vm453, %v461, %v468
      %v470 = vrot.slane %v465, 4
      %vm474 = vcmask 1043456
      %vm475 = vmand %vm474, %vm405
      %v476 = vld [vmem:[#allocation2] sm:$0xf]
      %v477 = vsel %vm475, %v460, %v476
      %478 = vst [vmem:[#allocation2] sm:$0xf] %v477
      %479 = vst [vmem:[#allocation2 + $0x8] sm:$0xf] %v469
      %v480 = vld [vmem:[#allocation2 + $0x10] sm:$0x1]
      %v481 = vsel %vm401, %v470, %v480
      %482 = vst [vmem:[#allocation2 + $0x10] sm:$0x1] %v481
      %s483 = scalar_lea.vmem %s367, 8
      %v484 = vld [vmem:[%s483] sm:$0xf]
      %v485 = vld [vmem:[%s483 + $0x4] sm:$0xf]
      %vm486 = vsmask.f32 5392
      %vm487 = vmor %vm417, %vm486
      %v489 = vshrl.u32 %v484, 16
      %v491 = vrot.slane %v489, 6
      %v492 = vshll.u32 %v484, 16
      %v494 = vrot.slane %v492, 7
      %v495 = vor.u32 %v491, %v494
      %v496 = vrot.slane %v495, 4
      %v498 = vshrl.u32 %v485, 16
      %v500 = vrot.slane %v498, 6
      %v501 = vshll.u32 %v485, 16
      %v503 = vrot.slane %v501, 7
      %v504 = vor.u32 %v500, %v503
      %v505 = vsel %vm487, %v496, %v504
      %v506 = vrot.slane %v504, 4
      %vm510 = vcmask 1043457
      %vm511 = vmand %vm510, %vm422
      %v512 = vld [vmem:[#allocation2 + $0x10] sm:$0xe]
      %v513 = vsel %vm511, %v495, %v512
      %514 = vst [vmem:[#allocation2 + $0x10] sm:$0xe] %v513
      %515 = vst [vmem:[#allocation2 + $0x18] sm:$0xf] %v505
      %vm516 = vcmask 1041408
      %vm517 = vmand %vm516, %vm417
      %v518 = vld [vmem:[#allocation2 + $0x20] sm:$0x3]
      %v519 = vsel %vm517, %v506, %v518
      %520 = vst [vmem:[#allocation2 + $0x20] sm:$0x3] %v519
      %s521 = scalar_lea.vmem %s367, 16
      %v522 = vld [vmem:[%s521] sm:$0xf]
      %v523 = vld [vmem:[%s521 + $0x4] sm:$0xf]
      %vm524 = vsmask.f32 6416
      %vm525 = vmor %vm434, %vm524
      %v527 = vshrl.u32 %v522, 16
      %v529 = vrot.slane %v527, 5
      %v530 = vshll.u32 %v522, 16
      %v532 = vrot.slane %v530, 6
      %v533 = vor.u32 %v529, %v532
      %v534 = vrot.slane %v533, 4
      %v536 = vshrl.u32 %v523, 16
      %v538 = vrot.slane %v536, 5
      %v539 = vshll.u32 %v523, 16
      %v541 = vrot.slane %v539, 6
      %v542 = vor.u32 %v538, %v541
      %v543 = vsel %vm525, %v534, %v542
      %v544 = vrot.slane %v542, 4
      %vm548 = vcmask 1043458
      %vm549 = vmand %vm548, %vm439
      %v550 = vld [vmem:[#allocation2 + $0x20] sm:$0xc]
      %v551 = vsel %vm549, %v533, %v550
      %552 = vst [vmem:[#allocation2 + $0x20] sm:$0xc] %v551
      %553 = vst [vmem:[#allocation2 + $0x28] sm:$0xf] %v543
      %vm554 = vcmask 1042432
      %vm555 = vmand %vm554, %vm434
      %v556 = vld [vmem:[#allocation2 + $0x30] sm:$0x7]
      %v557 = vsel %vm555, %v544, %v556
      %558 = vst [vmem:[#allocation2 + $0x30] sm:$0x7] %v557
      %v559 = vld [vmem:[#allocation2] sm:$0xff]
      %v560 = vld [vmem:[#allocation2 + $0x8] sm:$0xff]
      %v561 = vld [vmem:[#allocation2 + $0x10] sm:$0xff]
      %v562 = vld [vmem:[#allocation2 + $0x18] sm:$0xff]
      %v563 = vld [vmem:[#allocation2 + $0x20] sm:$0xff]
      %v564 = vld [vmem:[#allocation2 + $0x28] sm:$0xff]
      %v565 = vld [vmem:[#allocation2 + $0x30] sm:$0x33]
      %v566 = vld [vmem:[%s1] sm:$0xf]
      %v567 = vld [vmem:[%s1 + $0x4] sm:$0xf]
      %v568 = vld [vmem:[%s1 + $0x8] sm:$0xf]
      %v569 = vld [vmem:[%s1 + $0xc] sm:$0xf]
      %v570 = vld [vmem:[%s1 + $0x10] sm:$0xf]
      %v571 = vld [vmem:[%s1 + $0x14] sm:$0xf]
      %v572 = vld [vmem:[%s1 + $0x18] sm:$0xf]
      %v573 = vld [vmem:[%s1 + $0x1c] sm:$0xf]
      %v574 = vld [vmem:[%s1 + $0x20] sm:$0xf]
      %v575 = vld [vmem:[%s1 + $0x24] sm:$0xf]
      %v576 = vld [vmem:[%s1 + $0x28] sm:$0xf]
      %v577 = vld [vmem:[%s1 + $0x2c] sm:$0xf]
      %v578 = vld [vmem:[%s1 + $0x30] sm:$0xf]
      %v579 = vld [vmem:[%s1 + $0x34] sm:$0xf]
      %v580 = vld [vmem:[%s1 + $0x38] sm:$0xf]
      %v581 = vld [vmem:[%s1 + $0x3c] sm:$0xf]
      %v582 = vld [vmem:[%s1 + $0x40] sm:$0xf]
      %v583 = vld [vmem:[#allocation2 + $0x30] sm:$0x77]
      %s584 = scalar_lea.vmem %s1, 68
      %v585 = vld [vmem:[%s584] sm:$0xf]
      %v586 = vld [vmem:[%s584 + $0x4] sm:$0xf]
      %v587 = vld [vmem:[%s584 + $0x8] sm:$0xf]
      %v588 = vld [vmem:[%s584 + $0xc] sm:$0xf]
      %v589 = vld [vmem:[%s584 + $0x10] sm:$0xf]
      %v590 = vld [vmem:[%s584 + $0x14] sm:$0xf]
      %v591 = vld [vmem:[%s584 + $0x18] sm:$0xf]
      %v592 = vld [vmem:[%s584 + $0x1c] sm:$0xf]
      %v593 = vld [vmem:[%s584 + $0x20] sm:$0xf]
      %v594 = vld [vmem:[%s584 + $0x24] sm:$0xf]
      %v595 = vld [vmem:[%s584 + $0x28] sm:$0xf]
      %v596 = vld [vmem:[%s584 + $0x2c] sm:$0xf]
      %v597 = vld [vmem:[%s584 + $0x30] sm:$0xf]
      %v598 = vld [vmem:[%s584 + $0x34] sm:$0xf]
      %v599 = vld [vmem:[%s584 + $0x38] sm:$0xf]
      %v600 = vld [vmem:[%s584 + $0x3c] sm:$0xf]
      %v601 = vld [vmem:[%s584 + $0x40] sm:$0xf]
      %v609 = vunpack.c.l.b16 %v559
      %v610 = vunpack.c.h.b16 %v559
      %v611 = vunpack.c.l.b16 %v560
      %v612 = vunpack.c.h.b16 %v560
      %v613 = vunpack.c.l.b16 %v561
      %v614 = vunpack.c.h.b16 %v561
      %v615 = vunpack.c.l.b16 %v562
      %v616 = vunpack.c.h.b16 %v562
      %v617 = vunpack.c.l.b16 %v563
      %v618 = vunpack.c.h.b16 %v563
      %v619 = vunpack.c.l.b16 %v564
      %v620 = vunpack.c.h.b16 %v564
      %v621 = vunpack.c.l.b16 %v583
      %v622 = vunpack.c.h.b16 %v583
      %v623 = vpack.c.b16 %v611, %v609
      %v624 = vpack.c.b16 %v612, %v610
      %v625 = vpack.c.b16 %v615, %v613
      %v626 = vpack.c.b16 %v616, %v614
      %v627 = vpack.c.b16 %v619, %v617
      %v628 = vpack.c.b16 %v620, %v618
      %v629 = vpack.c.b16 %v621, %v621
      %v630 = vpack.c.b16 %v622, %v622
      %vm631 = vsmask.f32 7424
      %v633 = vshrl.u32 %v623, 16
      %v635 = vshll.u32 %v623, 16
      %v637 = vrot.slane %v635, 1
      %v638 = vor.u32 %v633, %v637
      %v640 = vshll.u32 %v625, 16
      %v642 = vrot.slane %v640, 1
      %v643 = vsel %vm631, %v638, %v642
      %v645 = vshrl.u32 %v624, 16
      %v647 = vshll.u32 %v624, 16
      %v649 = vrot.slane %v647, 1
      %v650 = vor.u32 %v645, %v649
      %v652 = vshll.u32 %v626, 16
      %v654 = vrot.slane %v652, 1
      %v655 = vsel %vm631, %v650, %v654
      %v656 = vshrl.u32 %v625, 16
      %v658 = vor.u32 %v656, %v642
      %v660 = vshll.u32 %v627, 16
      %v662 = vrot.slane %v660, 1
      %v663 = vsel %vm631, %v658, %v662
      %v664 = vshrl.u32 %v626, 16
      %v666 = vor.u32 %v664, %v654
      %v668 = vshll.u32 %v628, 16
      %v670 = vrot.slane %v668, 1
      %v671 = vsel %vm631, %v666, %v670
      %v672 = vshrl.u32 %v627, 16
      %v674 = vor.u32 %v672, %v662
      %v676 = vshll.u32 %v629, 16
      %v678 = vrot.slane %v676, 1
      %v679 = vsel %vm631, %v674, %v678
      %v680 = vshrl.u32 %v628, 16
      %v682 = vor.u32 %v680, %v670
      %v684 = vshll.u32 %v630, 16
      %v686 = vrot.slane %v684, 1
      %v687 = vsel %vm631, %v682, %v686
      %v688 = vshrl.u32 %v629, 16
      %v690 = vor.u32 %v688, %v678
      %v691 = vshrl.u32 %v630, 16
      %v693 = vor.u32 %v691, %v686
      %v715 = vunpack.c.l.b16 %v585
      %v716 = vunpack.c.l.b16 %v586
      %v717 = vunpack.c.l.b16 %v587
      %v718 = vunpack.c.l.b16 %v588
      %v719 = vunpack.c.l.b16 %v589
      %v720 = vunpack.c.l.b16 %v590
      %v721 = vunpack.c.l.b16 %v591
      %v722 = vunpack.c.l.b16 %v592
      %v723 = vunpack.c.l.b16 %v593
      %v724 = vunpack.c.l.b16 %v594
      %v725 = vunpack.c.l.b16 %v595
      %v726 = vunpack.c.l.b16 %v596
      %v727 = vunpack.c.l.b16 %v597
      %v728 = vunpack.c.l.b16 %v598
      %v729 = vunpack.c.l.b16 %v599
      %v730 = vunpack.c.l.b16 %v600
      %v731 = vunpack.c.l.b16 %v601
      %v732 = vpack.c.b16 %v716, %v715
      %v733 = vpack.c.b16 %v718, %v717
      %v734 = vpack.c.b16 %v720, %v719
      %v735 = vpack.c.b16 %v722, %v721
      %v736 = vpack.c.b16 %v724, %v723
      %v737 = vpack.c.b16 %v726, %v725
      %v738 = vpack.c.b16 %v728, %v727
      %v739 = vpack.c.b16 %v730, %v729
      %v740 = vpack.c.b16 %v731, %v731
      %vm749 = vcmask 64512
      %v751 = vsel %vm749, %v655, 0
      %v754 = vsel %vm749, %v671, 0
      %v757 = vsel %vm749, %v687, 0
      %v760 = vsel %vm749, %v693, 0
      %vm762 = vcmask 1043456
      %v764 = vsel %vm762, %v740, 0
      %766 = vmatprep.subr.bf16.mxu0 0
      %767 = vmatpush1.bf16.msra.mxu0 %v732
      %768 = vmatprep.subr.bf16.mxu0 0
      %769 = vmatpush1.bf16.msra.mxu0 %v733
      %770 = vmatprep.subr.bf16.mxu0 0
      %771 = vmatpush1.bf16.msra.mxu0 %v734
      %772 = vmatprep.subr.bf16.mxu0 0
      %773 = vmatpush1.bf16.msra.mxu0 %v735
      %774 = vmatprep.subr.bf16.mxu0 0
      %775 = vmatpush1.bf16.msra.mxu0 %v736
      %776 = vmatprep.subr.bf16.mxu0 0
      %777 = vmatpush1.bf16.msra.mxu0 %v737
      %778 = vmatprep.subr.bf16.mxu0 0
      %779 = vmatpush1.bf16.msra.mxu0 %v738
      %780 = vmatprep.subr.bf16.mxu0 0
      %781 = vmatpush1.bf16.msra.mxu0 %v739
      %782 = vmatprep.subr.bf16.mxu0 0
      %783 = vmatpush1.bf16.msra.mxu0 %v764
      %784 = vmatprep.subr.bf16.mxu0 0
      %785 = vmatpush1.bf16.msra.mxu0 0
      %786 = vmatprep.subr.bf16.mxu0 0
      %787 = vmatpush1.bf16.msra.mxu0 0
      %788 = vmatprep.subr.bf16.mxu0 0
      %789 = vmatpush1.bf16.msra.mxu0 0
      %790 = vmatprep.subr.bf16.mxu0 0
      %791 = vmatpush1.bf16.msra.mxu0 0
      %792 = vmatprep.subr.bf16.mxu0 0
      %793 = vmatpush1.bf16.msra.mxu0 0
      %794 = vmatprep.subr.bf16.mxu0 0
      %795 = vmatpush1.bf16.msra.mxu0 0
      %796 = vmatprep.subr.bf16.mxu0 0
      %797 = vmatpush1.bf16.msra.mxu0 0
      %798 = vmatprep.mubr.bf16.mxu0 %v751
      %799 = vmatmul.mubr.bf16.gmra.mrb[0].mxu0 %v643
      %v800 = vpop.f32.mrb[0].mxu0
      %v801 = vadd.f32 0.0, %v800
      %v802 = vpop.f32.mrb[0].mxu0
      %v803 = vpop.f32.mrb[0].mxu0
      %v804 = vadd.f32 0.0, %v803
      %v805 = vpop.f32.mrb[0].mxu0
      %806 = vmatprep.mubr.bf16.mxu0 %v754
      %807 = vmatmul.mubr.bf16.gmra.mrb[0].mxu0 %v663
      %v808 = vpop.f32.mrb[0].mxu0
      %v809 = vadd.f32 0.0, %v808
      %v810 = vpop.f32.mrb[0].mxu0
      %v811 = vpop.f32.mrb[0].mxu0
      %v812 = vadd.f32 0.0, %v811
      %v813 = vpop.f32.mrb[0].mxu0
      %814 = vmatprep.mubr.bf16.mxu0 %v757
      %815 = vmatmul.mubr.bf16.gmra.mrb[0].mxu0 %v679
      %v816 = vpop.f32.mrb[0].mxu0
      %v817 = vadd.f32 0.0, %v816
      %v818 = vpop.f32.mrb[0].mxu0
      %v819 = vpop.f32.mrb[0].mxu0
      %v820 = vadd.f32 0.0, %v819
      %v821 = vpop.f32.mrb[0].mxu0
      %822 = vmatprep.mubr.bf16.mxu0 %v760
      %823 = vmatmul.mubr.bf16.gmra.mrb[0].mxu0 %v690
      %v824 = vpop.f32.mrb[0].mxu0
      %v825 = vadd.f32 0.0, %v824
      %v826 = vpop.f32.mrb[0].mxu0
      %v827 = vpop.f32.mrb[0].mxu0
      %v828 = vpop.f32.mrb[0].mxu0
      %829 = vdwg.mxu0
      %v831 = vunpack.c.l.b16 %v565
      %v832 = vunpack.c.h.b16 %v565
      %v833 = vpack.c.b16 %v831, %v831
      %v834 = vpack.c.b16 %v832, %v832
      %v856 = vunpack.c.l.b16 %v566
      %v857 = vunpack.c.l.b16 %v567
      %v858 = vunpack.c.l.b16 %v568
      %v859 = vunpack.c.l.b16 %v569
      %v860 = vunpack.c.l.b16 %v570
      %v861 = vunpack.c.l.b16 %v571
      %v862 = vunpack.c.l.b16 %v572
      %v863 = vunpack.c.l.b16 %v573
      %v864 = vunpack.c.l.b16 %v574
      %v865 = vunpack.c.l.b16 %v575
      %v866 = vunpack.c.l.b16 %v576
      %v867 = vunpack.c.l.b16 %v577
      %v868 = vunpack.c.l.b16 %v578
      %v869 = vunpack.c.l.b16 %v579
      %v870 = vunpack.c.l.b16 %v580
      %v871 = vunpack.c.l.b16 %v581
      %v872 = vunpack.c.l.b16 %v582
      %v873 = vpack.c.b16 %v857, %v856
      %v874 = vpack.c.b16 %v859, %v858
      %v875 = vpack.c.b16 %v861, %v860
      %v876 = vpack.c.b16 %v863, %v862
      %v877 = vpack.c.b16 %v865, %v864
      %v878 = vpack.c.b16 %v867, %v866
      %v879 = vpack.c.b16 %v869, %v868
      %v880 = vpack.c.b16 %v871, %v870
      %v881 = vpack.c.b16 %v872, %v872
      %v890 = vsel %vm749, %v624, 0
      %v892 = vsel %vm749, %v626, 0
      %v894 = vsel %vm749, %v628, 0
      %v897 = vsel %vm749, %v834, 0
      %v900 = vsel %vm762, %v881, 0
      %902 = vmatprep.subr.bf16.mxu0 0
      %903 = vmatpush1.bf16.msra.mxu0 %v873
      %904 = vmatprep.subr.bf16.mxu0 0
      %905 = vmatpush1.bf16.msra.mxu0 %v874
      %906 = vmatprep.subr.bf16.mxu0 0
      %907 = vmatpush1.bf16.msra.mxu0 %v875
      %908 = vmatprep.subr.bf16.mxu0 0
      %909 = vmatpush1.bf16.msra.mxu0 %v876
      %910 = vmatprep.subr.bf16.mxu0 0
      %911 = vmatpush1.bf16.msra.mxu0 %v877
      %912 = vmatprep.subr.bf16.mxu0 0
      %913 = vmatpush1.bf16.msra.mxu0 %v878
      %914 = vmatprep.subr.bf16.mxu0 0
      %915 = vmatpush1.bf16.msra.mxu0 %v879
      %916 = vmatprep.subr.bf16.mxu0 0
      %917 = vmatpush1.bf16.msra.mxu0 %v880
      %918 = vmatprep.subr.bf16.mxu0 0
      %919 = vmatpush1.bf16.msra.mxu0 %v900
      %920 = vmatprep.subr.bf16.mxu0 0
      %921 = vmatpush1.bf16.msra.mxu0 0
      %922 = vmatprep.subr.bf16.mxu0 0
      %923 = vmatpush1.bf16.msra.mxu0 0
      %924 = vmatprep.subr.bf16.mxu0 0
      %925 = vmatpush1.bf16.msra.mxu0 0
      %926 = vmatprep.subr.bf16.mxu0 0
      %927 = vmatpush1.bf16.msra.mxu0 0
      %928 = vmatprep.subr.bf16.mxu0 0
      %929 = vmatpush1.bf16.msra.mxu0 0
      %930 = vmatprep.subr.bf16.mxu0 0
      %931 = vmatpush1.bf16.msra.mxu0 0
      %932 = vmatprep.subr.bf16.mxu0 0
      %933 = vmatpush1.bf16.msra.mxu0 0
      %934 = vmatprep.mubr.bf16.mxu0 %v890
      %935 = vmatmul.mubr.bf16.gmra.mrb[0].mxu0 %v623
      %v936 = vpop.f32.mrb[0].mxu0
      %v937 = vadd.f32 %v801, %v936
      %v938 = vpop.f32.mrb[0].mxu0
      %v939 = vpop.f32.mrb[0].mxu0
      %v940 = vadd.f32 %v804, %v939
      %v941 = vpop.f32.mrb[0].mxu0
      %942 = vmatprep.mubr.bf16.mxu0 %v892
      %943 = vmatmul.mubr.bf16.gmra.mrb[0].mxu0 %v625
      %v944 = vpop.f32.mrb[0].mxu0
      %v945 = vadd.f32 %v809, %v944
      %v946 = vpop.f32.mrb[0].mxu0
      %v947 = vpop.f32.mrb[0].mxu0
      %v948 = vadd.f32 %v812, %v947
      %v949 = vpop.f32.mrb[0].mxu0
      %950 = vmatprep.mubr.bf16.mxu0 %v894
      %951 = vmatmul.mubr.bf16.gmra.mrb[0].mxu0 %v627
      %v952 = vpop.f32.mrb[0].mxu0
      %v953 = vadd.f32 %v817, %v952
      %v954 = vpop.f32.mrb[0].mxu0
      %v955 = vpop.f32.mrb[0].mxu0
      %v956 = vadd.f32 %v820, %v955
      %v957 = vpop.f32.mrb[0].mxu0
      %958 = vmatprep.mubr.bf16.mxu0 %v897
      %959 = vmatmul.mubr.bf16.gmra.mrb[0].mxu0 %v833
      %v960 = vpop.f32.mrb[0].mxu0
      %v961 = vadd.f32 %v825, %v960
      %v962 = vpop.f32.mrb[0].mxu0
      %v963 = vpop.f32.mrb[0].mxu0
      %v964 = vpop.f32.mrb[0].mxu0
      %965 = vdwg.mxu0
      %v966 = vld [vmem:[#allocation2] sm:$0xee]
      %s967 = scalar_lea.vmem %s1, 136
      %v968 = vld [vmem:[%s967] sm:$0xf]
      %v969 = vld [vmem:[%s967 + $0x4] sm:$0xf]
      %v970 = vld [vmem:[%s967 + $0x8] sm:$0xf]
      %v971 = vld [vmem:[%s967 + $0xc] sm:$0xf]
      %v972 = vld [vmem:[%s967 + $0x10] sm:$0xf]
      %v973 = vld [vmem:[%s967 + $0x14] sm:$0xf]
      %v974 = vld [vmem:[%s967 + $0x18] sm:$0xf]
      %v975 = vld [vmem:[%s967 + $0x1c] sm:$0xf]
      %v976 = vld [vmem:[%s967 + $0x20] sm:$0xf]
      %v977 = vld [vmem:[%s967 + $0x24] sm:$0xf]
      %v978 = vld [vmem:[%s967 + $0x28] sm:$0xf]
      %v979 = vld [vmem:[%s967 + $0x2c] sm:$0xf]
      %v980 = vld [vmem:[%s967 + $0x30] sm:$0xf]
      %v981 = vld [vmem:[%s967 + $0x34] sm:$0xf]
      %v982 = vld [vmem:[%s967 + $0x38] sm:$0xf]
      %v983 = vld [vmem:[%s967 + $0x3c] sm:$0xf]
      %v984 = vld [vmem:[%s967 + $0x40] sm:$0xf]
      %v986 = vunpack.c.l.b16 %v966
      %v987 = vunpack.c.h.b16 %v966
      %v988 = vpack.c.b16 %v611, %v986
      %v989 = vpack.c.b16 %v612, %v987
      %vm990 = vcmask 1046528
      %v991 = vrot.slane %v988, 1
      %v992 = vrot.slane %v625, 1
      %v993 = vsel %vm990, %v991, %v992
      %v994 = vrot.slane %v989, 1
      %v995 = vrot.slane %v626, 1
      %v996 = vsel %vm990, %v994, %v995
      %v997 = vrot.slane %v627, 1
      %v998 = vsel %vm990, %v992, %v997
      %v999 = vrot.slane %v628, 1
      %v1000 = vsel %vm990, %v995, %v999
      %v1001 = vrot.slane %v629, 1
      %v1002 = vsel %vm990, %v997, %v1001
      %v1003 = vrot.slane %v630, 1
      %v1004 = vsel %vm990, %v999, %v1003
      %v1026 = vunpack.c.l.b16 %v968
      %v1027 = vunpack.c.l.b16 %v969
      %v1028 = vunpack.c.l.b16 %v970
      %v1029 = vunpack.c.l.b16 %v971
      %v1030 = vunpack.c.l.b16 %v972
      %v1031 = vunpack.c.l.b16 %v973
      %v1032 = vunpack.c.l.b16 %v974
      %v1033 = vunpack.c.l.b16 %v975
      %v1034 = vunpack.c.l.b16 %v976
      %v1035 = vunpack.c.l.b16 %v977
      %v1036 = vunpack.c.l.b16 %v978
      %v1037 = vunpack.c.l.b16 %v979
      %v1038 = vunpack.c.l.b16 %v980
      %v1039 = vunpack.c.l.b16 %v981
      %v1040 = vunpack.c.l.b16 %v982
      %v1041 = vunpack.c.l.b16 %v983
      %v1042 = vunpack.c.l.b16 %v984
      %v1043 = vpack.c.b16 %v1027, %v1026
      %v1044 = vpack.c.b16 %v1029, %v1028
      %v1045 = vpack.c.b16 %v1031, %v1030
      %v1046 = vpack.c.b16 %v1033, %v1032
      %v1047 = vpack.c.b16 %v1035, %v1034
      %v1048 = vpack.c.b16 %v1037, %v1036
      %v1049 = vpack.c.b16 %v1039, %v1038
      %v1050 = vpack.c.b16 %v1041, %v1040
      %v1051 = vpack.c.b16 %v1042, %v1042
      %v1061 = vsel %vm749, %v996, 0
      %v1064 = vsel %vm749, %v1000, 0
      %v1067 = vsel %vm749, %v1004, 0
      %v1070 = vsel %vm749, %v1003, 0
      %v1073 = vsel %vm762, %v1051, 0
      %1075 = vmatprep.subr.bf16.mxu0 0
      %1076 = vmatpush1.bf16.msra.mxu0 %v1043
      %1077 = vmatprep.subr.bf16.mxu0 0
      %1078 = vmatpush1.bf16.msra.mxu0 %v1044
      %1079 = vmatprep.subr.bf16.mxu0 0
      %1080 = vmatpush1.bf16.msra.mxu0 %v1045
      %1081 = vmatprep.subr.bf16.mxu0 0
      %1082 = vmatpush1.bf16.msra.mxu0 %v1046
      %1083 = vmatprep.subr.bf16.mxu0 0
      %1084 = vmatpush1.bf16.msra.mxu0 %v1047
      %1085 = vmatprep.subr.bf16.mxu0 0
      %1086 = vmatpush1.bf16.msra.mxu0 %v1048
      %1087 = vmatprep.subr.bf16.mxu0 0
      %1088 = vmatpush1.bf16.msra.mxu0 %v1049
      %1089 = vmatprep.subr.bf16.mxu0 0
      %1090 = vmatpush1.bf16.msra.mxu0 %v1050
      %1091 = vmatprep.subr.bf16.mxu0 0
      %1092 = vmatpush1.bf16.msra.mxu0 %v1073
      %1093 = vmatprep.subr.bf16.mxu0 0
      %1094 = vmatpush1.bf16.msra.mxu0 0
      %1095 = vmatprep.subr.bf16.mxu0 0
      %1096 = vmatpush1.bf16.msra.mxu0 0
      %1097 = vmatprep.subr.bf16.mxu0 0
      %1098 = vmatpush1.bf16.msra.mxu0 0
      %1099 = vmatprep.subr.bf16.mxu0 0
      %1100 = vmatpush1.bf16.msra.mxu0 0
      %1101 = vmatprep.subr.bf16.mxu0 0
      %1102 = vmatpush1.bf16.msra.mxu0 0
      %1103 = vmatprep.subr.bf16.mxu0 0
      %1104 = vmatpush1.bf16.msra.mxu0 0
      %1105 = vmatprep.subr.bf16.mxu0 0
      %1106 = vmatpush1.bf16.msra.mxu0 0
      %1107 = vmatprep.mubr.bf16.mxu0 %v1061
      %1108 = vmatmul.mubr.bf16.gmra.mrb[0].mxu0 %v993
      %v1109 = vpop.f32.mrb[0].mxu0
      %v1110 = vadd.f32 0.0, %v1109
      %v1111 = vpop.f32.mrb[0].mxu0
      %v1112 = vpop.f32.mrb[0].mxu0
      %v1113 = vadd.f32 0.0, %v1112
      %v1114 = vpop.f32.mrb[0].mxu0
      %1115 = vmatprep.mubr.bf16.mxu0 %v1064
      %1116 = vmatmul.mubr.bf16.gmra.mrb[0].mxu0 %v998
      %v1117 = vpop.f32.mrb[0].mxu0
      %v1118 = vadd.f32 0.0, %v1117
      %v1119 = vpop.f32.mrb[0].mxu0
      %v1120 = vpop.f32.mrb[0].mxu0
      %v1121 = vadd.f32 0.0, %v1120
      %v1122 = vpop.f32.mrb[0].mxu0
      %1123 = vmatprep.mubr.bf16.mxu0 %v1067
      %1124 = vmatmul.mubr.bf16.gmra.mrb[0].mxu0 %v1002
      %v1125 = vpop.f32.mrb[0].mxu0
      %v1126 = vadd.f32 0.0, %v1125
      %v1127 = vpop.f32.mrb[0].mxu0
      %v1128 = vpop.f32.mrb[0].mxu0
      %v1129 = vadd.f32 0.0, %v1128
      %v1130 = vpop.f32.mrb[0].mxu0
      %1131 = vmatprep.mubr.bf16.mxu0 %v1070
      %1132 = vmatmul.mubr.bf16.gmra.mrb[0].mxu0 %v1001
      %v1133 = vpop.f32.mrb[0].mxu0
      %v1134 = vadd.f32 0.0, %v1133
      %v1135 = vpop.f32.mrb[0].mxu0
      %v1136 = vpop.f32.mrb[0].mxu0
      %v1137 = vpop.f32.mrb[0].mxu0
      %1138 = vdwg.mxu0
      %v1139 = vadd.f32 %v937, %v1110
      %v1140 = vadd.f32 %v940, %v1113
      %v1141 = vadd.f32 %v945, %v1118
      %v1142 = vadd.f32 %v948, %v1121
      %v1143 = vadd.f32 %v953, %v1126
      %v1144 = vadd.f32 %v956, %v1129
      %v1145 = vadd.f32 %v961, %v1134
      %v1146 = vld [vmem:[%s2] sm:$0x1]
      %v1148 = vlaneseq
      %v1149 = vshrl.u32 %v1148, 7
      %v1150 = vsub.s32 0, %v1149
      %v1151 = vrot.slane %v1146, %v1150
      %v1153 = vadd.f32 %v1139, %v1151
      %v1154 = vadd.f32 %v1140, %v1151
      %v1155 = vadd.f32 %v1141, %v1151
      %v1156 = vadd.f32 %v1142, %v1151
      %v1157 = vadd.f32 %v1143, %v1151
      %v1158 = vadd.f32 %v1144, %v1151
      %v1159 = vadd.f32 %v1145, %v1151
      %v1160 = vmax.f32 %v1153, 0.0
      %v1161 = vmax.f32 %v1154, 0.0
      %v1162 = vmax.f32 %v1155, 0.0
      %v1163 = vmax.f32 %v1156, 0.0
      %v1164 = vmax.f32 %v1157, 0.0
      %v1165 = vmax.f32 %v1158, 0.0
      %v1166 = vmax.f32 %v1159, 0.0
      %v1167 = vpack.c.bf16 %v1161, %v1160
      %v1169 = vunpack.c.l.b16 %v1167
      %v1170 = vunpack.c.h.b16 %v1167
      %v1171 = vpack.c.b16 %v1169, %v1169
      %v1172 = vpack.c.b16 %v1170, %v1170
      %v1174 = vshrl.u32 %v1171, 16
      %v1176 = vrot.slane %v1174, 7
      %v1177 = vshll.u32 %v1171, 16
      %v1179 = vor.u32 %v1176, %v1177
      %v1180 = vrot.slane %v1176, 4
      %v1182 = vshrl.u32 %v1172, 16
      %v1184 = vrot.slane %v1182, 7
      %v1185 = vshll.u32 %v1172, 16
      %v1187 = vor.u32 %v1184, %v1185
      %v1188 = vsel %vm453, %v1180, %v1187
      %v1189 = vrot.slane %v1184, 4
      %v1193 = vld [vmem:[#allocation3] sm:$0xf]
      %v1194 = vsel %vm475, %v1179, %v1193
      %1195 = vst [vmem:[#allocation3] sm:$0xf] %v1194
      %1196 = vst [vmem:[#allocation3 + $0x8] sm:$0xf] %v1188
      %v1197 = vld [vmem:[#allocation3 + $0x10] sm:$0x1]
      %v1198 = vsel %vm401, %v1189, %v1197
      %1199 = vst [vmem:[#allocation3 + $0x10] sm:$0x1] %v1198
      %v1200 = vpack.c.bf16 %v1163, %v1162
      %v1201 = vpack.c.bf16 %v1164, %v1164
      %v1204 = vunpack.c.l.b16 %v1200
      %v1205 = vunpack.c.h.b16 %v1200
      %v1206 = vunpack.c.l.b16 %v1201
      %v1207 = vpack.c.b16 %v1204, %v1204
      %v1208 = vpack.c.b16 %v1205, %v1205
      %v1209 = vpack.c.b16 %v1206, %v1206
      %v1211 = vshrl.u32 %v1207, 16
      %v1213 = vrot.slane %v1211, 7
      %v1214 = vshll.u32 %v1207, 16
      %v1216 = vor.u32 %v1213, %v1214
      %v1217 = vrot.slane %v1213, 4
      %v1219 = vshrl.u32 %v1208, 16
      %v1221 = vrot.slane %v1219, 7
      %v1222 = vshll.u32 %v1208, 16
      %v1224 = vor.u32 %v1221, %v1222
      %v1225 = vsel %vm453, %v1217, %v1224
      %v1226 = vrot.slane %v1221, 4
      %v1228 = vshrl.u32 %v1209, 16
      %v1230 = vrot.slane %v1228, 7
      %v1231 = vshll.u32 %v1209, 16
      %v1233 = vor.u32 %v1230, %v1231
      %v1234 = vsel %vm453, %v1226, %v1233
      %v1238 = vld [vmem:[#allocation3 + $0x10] sm:$0xe]
      %v1239 = vsel %vm511, %v1216, %v1238
      %1240 = vst [vmem:[#allocation3 + $0x10] sm:$0xe] %v1239
      %1241 = vst [vmem:[#allocation3 + $0x18] sm:$0xf] %v1225
      %v1242 = vld [vmem:[#allocation3 + $0x20] sm:$0x3]
      %v1243 = vsel %vm517, %v1234, %v1242
      %1244 = vst [vmem:[#allocation3 + $0x20] sm:$0x3] %v1243
      %v1245 = vpack.c.bf16 %v1165, %v1164
      %v1246 = vpack.c.bf16 %v1166, %v1166
      %v1249 = vunpack.c.l.b16 %v1245
      %v1250 = vunpack.c.h.b16 %v1245
      %v1251 = vunpack.c.l.b16 %v1246
      %v1252 = vpack.c.b16 %v1249, %v1249
      %v1253 = vpack.c.b16 %v1250, %v1250
      %v1254 = vpack.c.b16 %v1251, %v1251
      %v1256 = vshrl.u32 %v1252, 16
      %v1258 = vrot.slane %v1256, 7
      %v1259 = vshll.u32 %v1252, 16
      %v1261 = vor.u32 %v1258, %v1259
      %v1262 = vrot.slane %v1258, 4
      %v1264 = vshrl.u32 %v1253, 16
      %v1266 = vrot.slane %v1264, 7
      %v1267 = vshll.u32 %v1253, 16
      %v1269 = vor.u32 %v1266, %v1267
      %v1270 = vsel %vm453, %v1262, %v1269
      %v1271 = vrot.slane %v1266, 4
      %v1273 = vshrl.u32 %v1254, 16
      %v1275 = vrot.slane %v1273, 7
      %v1276 = vshll.u32 %v1254, 16
      %v1278 = vor.u32 %v1275, %v1276
      %v1279 = vsel %vm453, %v1271, %v1278
      %v1283 = vld [vmem:[#allocation3 + $0x20] sm:$0xc]
      %v1284 = vsel %vm549, %v1261, %v1283
      %1285 = vst [vmem:[#allocation3 + $0x20] sm:$0xc] %v1284
      %1286 = vst [vmem:[#allocation3 + $0x28] sm:$0xf] %v1270
      %v1287 = vld [vmem:[#allocation3 + $0x30] sm:$0x7]
      %v1288 = vsel %vm555, %v1279, %v1287
      %1289 = vst [vmem:[#allocation3 + $0x30] sm:$0x7] %v1288
      %v1290 = vld [vmem:[#allocation3] sm:$0xff]
      %v1291 = vld [vmem:[#allocation3 + $0x8] sm:$0xff]
      %v1292 = vld [vmem:[#allocation3 + $0x10] sm:$0xff]
      %v1293 = vld [vmem:[#allocation3 + $0x18] sm:$0xff]
      %v1294 = vld [vmem:[#allocation3 + $0x20] sm:$0xff]
      %v1295 = vld [vmem:[#allocation3 + $0x28] sm:$0xff]
      %v1296 = vld [vmem:[#allocation3 + $0x30] sm:$0x33]
      %v1297 = vld [vmem:[%s3] sm:$0xf]
      %v1298 = vld [vmem:[%s3 + $0x4] sm:$0xf]
      %v1299 = vld [vmem:[%s3 + $0x8] sm:$0xf]
      %v1300 = vld [vmem:[%s3 + $0xc] sm:$0xf]
      %v1301 = vld [vmem:[%s3 + $0x10] sm:$0xf]
      %v1302 = vld [vmem:[%s3 + $0x14] sm:$0xf]
      %v1303 = vld [vmem:[%s3 + $0x18] sm:$0xf]
      %v1304 = vld [vmem:[%s3 + $0x1c] sm:$0xf]
      %v1305 = vld [vmem:[%s3 + $0x20] sm:$0xf]
      %v1306 = vld [vmem:[%s3 + $0x24] sm:$0xf]
      %v1307 = vld [vmem:[%s3 + $0x28] sm:$0xf]
      %v1308 = vld [vmem:[%s3 + $0x2c] sm:$0xf]
      %v1309 = vld [vmem:[%s3 + $0x30] sm:$0xf]
      %v1310 = vld [vmem:[%s3 + $0x34] sm:$0xf]
      %v1311 = vld [vmem:[%s3 + $0x38] sm:$0xf]
      %v1312 = vld [vmem:[%s3 + $0x3c] sm:$0xf]
      %v1313 = vld [vmem:[%s3 + $0x40] sm:$0xf]
      %v1314 = vld [vmem:[#allocation3 + $0x30] sm:$0x77]
      %s1315 = scalar_lea.vmem %s3, 68
      %v1316 = vld [vmem:[%s1315] sm:$0xf]
      %v1317 = vld [vmem:[%s1315 + $0x4] sm:$0xf]
      %v1318 = vld [vmem:[%s1315 + $0x8] sm:$0xf]
      %v1319 = vld [vmem:[%s1315 + $0xc] sm:$0xf]
      %v1320 = vld [vmem:[%s1315 + $0x10] sm:$0xf]
      %v1321 = vld [vmem:[%s1315 + $0x14] sm:$0xf]
      %v1322 = vld [vmem:[%s1315 + $0x18] sm:$0xf]
      %v1323 = vld [vmem:[%s1315 + $0x1c] sm:$0xf]
      %v1324 = vld [vmem:[%s1315 + $0x20] sm:$0xf]
      %v1325 = vld [vmem:[%s1315 + $0x24] sm:$0xf]
      %v1326 = vld [vmem:[%s1315 + $0x28] sm:$0xf]
      %v1327 = vld [vmem:[%s1315 + $0x2c] sm:$0xf]
      %v1328 = vld [vmem:[%s1315 + $0x30] sm:$0xf]
      %v1329 = vld [vmem:[%s1315 + $0x34] sm:$0xf]
      %v1330 = vld [vmem:[%s1315 + $0x38] sm:$0xf]
      %v1331 = vld [vmem:[%s1315 + $0x3c] sm:$0xf]
      %v1332 = vld [vmem:[%s1315 + $0x40] sm:$0xf]
      %v1340 = vunpack.c.l.b16 %v1290
      %v1341 = vunpack.c.h.b16 %v1290
      %v1342 = vunpack.c.l.b16 %v1291
      %v1343 = vunpack.c.h.b16 %v1291
      %v1344 = vunpack.c.l.b16 %v1292
      %v1345 = vunpack.c.h.b16 %v1292
      %v1346 = vunpack.c.l.b16 %v1293
      %v1347 = vunpack.c.h.b16 %v1293
      %v1348 = vunpack.c.l.b16 %v1294
      %v1349 = vunpack.c.h.b16 %v1294
      %v1350 = vunpack.c.l.b16 %v1295
      %v1351 = vunpack.c.h.b16 %v1295
      %v1352 = vunpack.c.l.b16 %v1314
      %v1353 = vunpack.c.h.b16 %v1314
      %v1354 = vpack.c.b16 %v1342, %v1340
      %v1355 = vpack.c.b16 %v1343, %v1341
      %v1356 = vpack.c.b16 %v1346, %v1344
      %v1357 = vpack.c.b16 %v1347, %v1345
      %v1358 = vpack.c.b16 %v1350, %v1348
      %v1359 = vpack.c.b16 %v1351, %v1349
      %v1360 = vpack.c.b16 %v1352, %v1352
      %v1361 = vpack.c.b16 %v1353, %v1353
      %v1363 = vshrl.u32 %v1354, 16
      %v1365 = vshll.u32 %v1354, 16
      %v1367 = vrot.slane %v1365, 1
      %v1368 = vor.u32 %v1363, %v1367
      %v1370 = vshll.u32 %v1356, 16
      %v1372 = vrot.slane %v1370, 1
      %v1373 = vsel %vm631, %v1368, %v1372
      %v1375 = vshrl.u32 %v1355, 16
      %v1377 = vshll.u32 %v1355, 16
      %v1379 = vrot.slane %v1377, 1
      %v1380 = vor.u32 %v1375, %v1379
      %v1382 = vshll.u32 %v1357, 16
      %v1384 = vrot.slane %v1382, 1
      %v1385 = vsel %vm631, %v1380, %v1384
      %v1386 = vshrl.u32 %v1356, 16
      %v1388 = vor.u32 %v1386, %v1372
      %v1390 = vshll.u32 %v1358, 16
      %v1392 = vrot.slane %v1390, 1
      %v1393 = vsel %vm631, %v1388, %v1392
      %v1394 = vshrl.u32 %v1357, 16
      %v1396 = vor.u32 %v1394, %v1384
      %v1398 = vshll.u32 %v1359, 16
      %v1400 = vrot.slane %v1398, 1
      %v1401 = vsel %vm631, %v1396, %v1400
      %v1402 = vshrl.u32 %v1358, 16
      %v1404 = vor.u32 %v1402, %v1392
      %v1406 = vshll.u32 %v1360, 16
      %v1408 = vrot.slane %v1406, 1
      %v1409 = vsel %vm631, %v1404, %v1408
      %v1410 = vshrl.u32 %v1359, 16
      %v1412 = vor.u32 %v1410, %v1400
      %v1414 = vshll.u32 %v1361, 16
      %v1416 = vrot.slane %v1414, 1
      %v1417 = vsel %vm631, %v1412, %v1416
      %v1418 = vshrl.u32 %v1360, 16
      %v1420 = vor.u32 %v1418, %v1408
      %v1421 = vshrl.u32 %v1361, 16
      %v1423 = vor.u32 %v1421, %v1416
      %v1445 = vunpack.c.l.b16 %v1316
      %v1446 = vunpack.c.l.b16 %v1317
      %v1447 = vunpack.c.l.b16 %v1318
      %v1448 = vunpack.c.l.b16 %v1319
      %v1449 = vunpack.c.l.b16 %v1320
      %v1450 = vunpack.c.l.b16 %v1321
      %v1451 = vunpack.c.l.b16 %v1322
      %v1452 = vunpack.c.l.b16 %v1323
      %v1453 = vunpack.c.l.b16 %v1324
      %v1454 = vunpack.c.l.b16 %v1325
      %v1455 = vunpack.c.l.b16 %v1326
      %v1456 = vunpack.c.l.b16 %v1327
      %v1457 = vunpack.c.l.b16 %v1328
      %v1458 = vunpack.c.l.b16 %v1329
      %v1459 = vunpack.c.l.b16 %v1330
      %v1460 = vunpack.c.l.b16 %v1331
      %v1461 = vunpack.c.l.b16 %v1332
      %v1462 = vpack.c.b16 %v1446, %v1445
      %v1463 = vpack.c.b16 %v1448, %v1447
      %v1464 = vpack.c.b16 %v1450, %v1449
      %v1465 = vpack.c.b16 %v1452, %v1451
      %v1466 = vpack.c.b16 %v1454, %v1453
      %v1467 = vpack.c.b16 %v1456, %v1455
      %v1468 = vpack.c.b16 %v1458, %v1457
      %v1469 = vpack.c.b16 %v1460, %v1459
      %v1470 = vpack.c.b16 %v1461, %v1461
      %v1480 = vsel %vm749, %v1385, 0
      %v1483 = vsel %vm749, %v1401, 0
      %v1486 = vsel %vm749, %v1417, 0
      %v1489 = vsel %vm749, %v1423, 0
      %v1492 = vsel %vm762, %v1470, 0
      %1494 = vmatprep.subr.bf16.mxu0 0
      %1495 = vmatpush1.bf16.msra.mxu0 %v1462
      %1496 = vmatprep.subr.bf16.mxu0 0
      %1497 = vmatpush1.bf16.msra.mxu0 %v1463
      %1498 = vmatprep.subr.bf16.mxu0 0
      %1499 = vmatpush1.bf16.msra.mxu0 %v1464
      %1500 = vmatprep.subr.bf16.mxu0 0
      %1501 = vmatpush1.bf16.msra.mxu0 %v1465
      %1502 = vmatprep.subr.bf16.mxu0 0
      %1503 = vmatpush1.bf16.msra.mxu0 %v1466
      %1504 = vmatprep.subr.bf16.mxu0 0
      %1505 = vmatpush1.bf16.msra.mxu0 %v1467
      %1506 = vmatprep.subr.bf16.mxu0 0
      %1507 = vmatpush1.bf16.msra.mxu0 %v1468
      %1508 = vmatprep.subr.bf16.mxu0 0
      %1509 = vmatpush1.bf16.msra.mxu0 %v1469
      %1510 = vmatprep.subr.bf16.mxu0 0
      %1511 = vmatpush1.bf16.msra.mxu0 %v1492
      %1512 = vmatprep.subr.bf16.mxu0 0
      %1513 = vmatpush1.bf16.msra.mxu0 0
      %1514 = vmatprep.subr.bf16.mxu0 0
      %1515 = vmatpush1.bf16.msra.mxu0 0
      %1516 = vmatprep.subr.bf16.mxu0 0
      %1517 = vmatpush1.bf16.msra.mxu0 0
      %1518 = vmatprep.subr.bf16.mxu0 0
      %1519 = vmatpush1.bf16.msra.mxu0 0
      %1520 = vmatprep.subr.bf16.mxu0 0
      %1521 = vmatpush1.bf16.msra.mxu0 0
      %1522 = vmatprep.subr.bf16.mxu0 0
      %1523 = vmatpush1.bf16.msra.mxu0 0
      %1524 = vmatprep.subr.bf16.mxu0 0
      %1525 = vmatpush1.bf16.msra.mxu0 0
      %1526 = vmatprep.mubr.bf16.mxu0 %v1480
      %1527 = vmatmul.mubr.bf16.gmra.mrb[0].mxu0 %v1373
      %v1528 = vpop.f32.mrb[0].mxu0
      %v1529 = vadd.f32 0.0, %v1528
      %v1530 = vpop.f32.mrb[0].mxu0
      %v1531 = vpop.f32.mrb[0].mxu0
      %v1532 = vadd.f32 0.0, %v1531
      %v1533 = vpop.f32.mrb[0].mxu0
      %1534 = vmatprep.mubr.bf16.mxu0 %v1483
      %1535 = vmatmul.mubr.bf16.gmra.mrb[0].mxu0 %v1393
      %v1536 = vpop.f32.mrb[0].mxu0
      %v1537 = vadd.f32 0.0, %v1536
      %v1538 = vpop.f32.mrb[0].mxu0
      %v1539 = vpop.f32.mrb[0].mxu0
      %v1540 = vadd.f32 0.0, %v1539
      %v1541 = vpop.f32.mrb[0].mxu0
      %1542 = vmatprep.mubr.bf16.mxu0 %v1486
      %1543 = vmatmul.mubr.bf16.gmra.mrb[0].mxu0 %v1409
      %v1544 = vpop.f32.mrb[0].mxu0
      %v1545 = vadd.f32 0.0, %v1544
      %v1546 = vpop.f32.mrb[0].mxu0
      %v1547 = vpop.f32.mrb[0].mxu0
      %v1548 = vadd.f32 0.0, %v1547
      %v1549 = vpop.f32.mrb[0].mxu0
      %1550 = vmatprep.mubr.bf16.mxu0 %v1489
      %1551 = vmatmul.mubr.bf16.gmra.mrb[0].mxu0 %v1420
      %v1552 = vpop.f32.mrb[0].mxu0
      %v1553 = vadd.f32 0.0, %v1552
      %v1554 = vpop.f32.mrb[0].mxu0
      %v1555 = vpop.f32.mrb[0].mxu0
      %v1556 = vpop.f32.mrb[0].mxu0
      %1557 = vdwg.mxu0
      %v1559 = vunpack.c.l.b16 %v1296
      %v1560 = vunpack.c.h.b16 %v1296
      %v1561 = vpack.c.b16 %v1559, %v1559
      %v1562 = vpack.c.b16 %v1560, %v1560
      %v1584 = vunpack.c.l.b16 %v1297
      %v1585 = vunpack.c.l.b16 %v1298
      %v1586 = vunpack.c.l.b16 %v1299
      %v1587 = vunpack.c.l.b16 %v1300
      %v1588 = vunpack.c.l.b16 %v1301
      %v1589 = vunpack.c.l.b16 %v1302
      %v1590 = vunpack.c.l.b16 %v1303
      %v1591 = vunpack.c.l.b16 %v1304
      %v1592 = vunpack.c.l.b16 %v1305
      %v1593 = vunpack.c.l.b16 %v1306
      %v1594 = vunpack.c.l.b16 %v1307
      %v1595 = vunpack.c.l.b16 %v1308
      %v1596 = vunpack.c.l.b16 %v1309
      %v1597 = vunpack.c.l.b16 %v1310
      %v1598 = vunpack.c.l.b16 %v1311
      %v1599 = vunpack.c.l.b16 %v1312
      %v1600 = vunpack.c.l.b16 %v1313
      %v1601 = vpack.c.b16 %v1585, %v1584
      %v1602 = vpack.c.b16 %v1587, %v1586
      %v1603 = vpack.c.b16 %v1589, %v1588
      %v1604 = vpack.c.b16 %v1591, %v1590
      %v1605 = vpack.c.b16 %v1593, %v1592
      %v1606 = vpack.c.b16 %v1595, %v1594
      %v1607 = vpack.c.b16 %v1597, %v1596
      %v1608 = vpack.c.b16 %v1599, %v1598
      %v1609 = vpack.c.b16 %v1600, %v1600
      %v1618 = vsel %vm749, %v1355, 0
      %v1620 = vsel %vm749, %v1357, 0
      %v1622 = vsel %vm749, %v1359, 0
      %v1625 = vsel %vm749, %v1562, 0
      %v1628 = vsel %vm762, %v1609, 0
      %1630 = vmatprep.subr.bf16.mxu0 0
      %1631 = vmatpush1.bf16.msra.mxu0 %v1601
      %1632 = vmatprep.subr.bf16.mxu0 0
      %1633 = vmatpush1.bf16.msra.mxu0 %v1602
      %1634 = vmatprep.subr.bf16.mxu0 0
      %1635 = vmatpush1.bf16.msra.mxu0 %v1603
      %1636 = vmatprep.subr.bf16.mxu0 0
      %1637 = vmatpush1.bf16.msra.mxu0 %v1604
      %1638 = vmatprep.subr.bf16.mxu0 0
      %1639 = vmatpush1.bf16.msra.mxu0 %v1605
      %1640 = vmatprep.subr.bf16.mxu0 0
      %1641 = vmatpush1.bf16.msra.mxu0 %v1606
      %1642 = vmatprep.subr.bf16.mxu0 0
      %1643 = vmatpush1.bf16.msra.mxu0 %v1607
      %1644 = vmatprep.subr.bf16.mxu0 0
      %1645 = vmatpush1.bf16.msra.mxu0 %v1608
      %1646 = vmatprep.subr.bf16.mxu0 0
      %1647 = vmatpush1.bf16.msra.mxu0 %v1628
      %1648 = vmatprep.subr.bf16.mxu0 0
      %1649 = vmatpush1.bf16.msra.mxu0 0
      %1650 = vmatprep.subr.bf16.mxu0 0
      %1651 = vmatpush1.bf16.msra.mxu0 0
      %1652 = vmatprep.subr.bf16.mxu0 0
      %1653 = vmatpush1.bf16.msra.mxu0 0
      %1654 = vmatprep.subr.bf16.mxu0 0
      %1655 = vmatpush1.bf16.msra.mxu0 0
      %1656 = vmatprep.subr.bf16.mxu0 0
      %1657 = vmatpush1.bf16.msra.mxu0 0
      %1658 = vmatprep.subr.bf16.mxu0 0
      %1659 = vmatpush1.bf16.msra.mxu0 0
      %1660 = vmatprep.subr.bf16.mxu0 0
      %1661 = vmatpush1.bf16.msra.mxu0 0
      %1662 = vmatprep.mubr.bf16.mxu0 %v1618
      %1663 = vmatmul.mubr.bf16.gmra.mrb[0].mxu0 %v1354
      %v1664 = vpop.f32.mrb[0].mxu0
      %v1665 = vadd.f32 %v1529, %v1664
      %v1666 = vpop.f32.mrb[0].mxu0
      %v1667 = vpop.f32.mrb[0].mxu0
      %v1668 = vadd.f32 %v1532, %v1667
      %v1669 = vpop.f32.mrb[0].mxu0
      %1670 = vmatprep.mubr.bf16.mxu0 %v1620
      %1671 = vmatmul.mubr.bf16.gmra.mrb[0].mxu0 %v1356
      %v1672 = vpop.f32.mrb[0].mxu0
      %v1673 = vadd.f32 %v1537, %v1672
      %v1674 = vpop.f32.mrb[0].mxu0
      %v1675 = vpop.f32.mrb[0].mxu0
      %v1676 = vadd.f32 %v1540, %v1675
      %v1677 = vpop.f32.mrb[0].mxu0
      %1678 = vmatprep.mubr.bf16.mxu0 %v1622
      %1679 = vmatmul.mubr.bf16.gmra.mrb[0].mxu0 %v1358
      %v1680 = vpop.f32.mrb[0].mxu0
      %v1681 = vadd.f32 %v1545, %v1680
      %v1682 = vpop.f32.mrb[0].mxu0
      %v1683 = vpop.f32.mrb[0].mxu0
      %v1684 = vadd.f32 %v1548, %v1683
      %v1685 = vpop.f32.mrb[0].mxu0
      %1686 = vmatprep.mubr.bf16.mxu0 %v1625
      %1687 = vmatmul.mubr.bf16.gmra.mrb[0].mxu0 %v1561
      %v1688 = vpop.f32.mrb[0].mxu0
      %v1689 = vadd.f32 %v1553, %v1688
      %v1690 = vpop.f32.mrb[0].mxu0
      %v1691 = vpop.f32.mrb[0].mxu0
      %v1692 = vpop.f32.mrb[0].mxu0
      %1693 = vdwg.mxu0
      %v1694 = vld [vmem:[#allocation3] sm:$0xee]
      %s1695 = scalar_lea.vmem %s3, 136
      %v1696 = vld [vmem:[%s1695] sm:$0xf]
      %v1697 = vld [vmem:[%s1695 + $0x4] sm:$0xf]
      %v1698 = vld [vmem:[%s1695 + $0x8] sm:$0xf]
      %v1699 = vld [vmem:[%s1695 + $0xc] sm:$0xf]
      %v1700 = vld [vmem:[%s1695 + $0x10] sm:$0xf]
      %v1701 = vld [vmem:[%s1695 + $0x14] sm:$0xf]
      %v1702 = vld [vmem:[%s1695 + $0x18] sm:$0xf]
      %v1703 = vld [vmem:[%s1695 + $0x1c] sm:$0xf]
      %v1704 = vld [vmem:[%s1695 + $0x20] sm:$0xf]
      %v1705 = vld [vmem:[%s1695 + $0x24] sm:$0xf]
      %v1706 = vld [vmem:[%s1695 + $0x28] sm:$0xf]
      %v1707 = vld [vmem:[%s1695 + $0x2c] sm:$0xf]
      %v1708 = vld [vmem:[%s1695 + $0x30] sm:$0xf]
      %v1709 = vld [vmem:[%s1695 + $0x34] sm:$0xf]
      %v1710 = vld [vmem:[%s1695 + $0x38] sm:$0xf]
      %v1711 = vld [vmem:[%s1695 + $0x3c] sm:$0xf]
      %v1712 = vld [vmem:[%s1695 + $0x40] sm:$0xf]
      %v1714 = vunpack.c.l.b16 %v1694
      %v1715 = vunpack.c.h.b16 %v1694
      %v1716 = vpack.c.b16 %v1342, %v1714
      %v1717 = vpack.c.b16 %v1343, %v1715
      %v1718 = vrot.slane %v1716, 1
      %v1719 = vrot.slane %v1356, 1
      %v1720 = vsel %vm990, %v1718, %v1719
      %v1721 = vrot.slane %v1717, 1
      %v1722 = vrot.slane %v1357, 1
      %v1723 = vsel %vm990, %v1721, %v1722
      %v1724 = vrot.slane %v1358, 1
      %v1725 = vsel %vm990, %v1719, %v1724
      %v1726 = vrot.slane %v1359, 1
      %v1727 = vsel %vm990, %v1722, %v1726
      %v1728 = vrot.slane %v1360, 1
      %v1729 = vsel %vm990, %v1724, %v1728
      %v1730 = vrot.slane %v1361, 1
      %v1731 = vsel %vm990, %v1726, %v1730
      %v1753 = vunpack.c.l.b16 %v1696
      %v1754 = vunpack.c.l.b16 %v1697
      %v1755 = vunpack.c.l.b16 %v1698
      %v1756 = vunpack.c.l.b16 %v1699
      %v1757 = vunpack.c.l.b16 %v1700
      %v1758 = vunpack.c.l.b16 %v1701
      %v1759 = vunpack.c.l.b16 %v1702
      %v1760 = vunpack.c.l.b16 %v1703
      %v1761 = vunpack.c.l.b16 %v1704
      %v1762 = vunpack.c.l.b16 %v1705
      %v1763 = vunpack.c.l.b16 %v1706
      %v1764 = vunpack.c.l.b16 %v1707
      %v1765 = vunpack.c.l.b16 %v1708
      %v1766 = vunpack.c.l.b16 %v1709
      %v1767 = vunpack.c.l.b16 %v1710
      %v1768 = vunpack.c.l.b16 %v1711
      %v1769 = vunpack.c.l.b16 %v1712
      %v1770 = vpack.c.b16 %v1754, %v1753
      %v1771 = vpack.c.b16 %v1756, %v1755
      %v1772 = vpack.c.b16 %v1758, %v1757
      %v1773 = vpack.c.b16 %v1760, %v1759
      %v1774 = vpack.c.b16 %v1762, %v1761
      %v1775 = vpack.c.b16 %v1764, %v1763
      %v1776 = vpack.c.b16 %v1766, %v1765
      %v1777 = vpack.c.b16 %v1768, %v1767
      %v1778 = vpack.c.b16 %v1769, %v1769
      %v1788 = vsel %vm749, %v1723, 0
      %v1791 = vsel %vm749, %v1727, 0
      %v1794 = vsel %vm749, %v1731, 0
      %v1797 = vsel %vm749, %v1730, 0
      %v1800 = vsel %vm762, %v1778, 0
      %1802 = vmatprep.subr.bf16.mxu0 0
      %1803 = vmatpush1.bf16.msra.mxu0 %v1770
      %1804 = vmatprep.subr.bf16.mxu0 0
      %1805 = vmatpush1.bf16.msra.mxu0 %v1771
      %1806 = vmatprep.subr.bf16.mxu0 0
      %1807 = vmatpush1.bf16.msra.mxu0 %v1772
      %1808 = vmatprep.subr.bf16.mxu0 0
      %1809 = vmatpush1.bf16.msra.mxu0 %v1773
      %1810 = vmatprep.subr.bf16.mxu0 0
      %1811 = vmatpush1.bf16.msra.mxu0 %v1774
      %1812 = vmatprep.subr.bf16.mxu0 0
      %1813 = vmatpush1.bf16.msra.mxu0 %v1775
      %1814 = vmatprep.subr.bf16.mxu0 0
      %1815 = vmatpush1.bf16.msra.mxu0 %v1776
      %1816 = vmatprep.subr.bf16.mxu0 0
      %1817 = vmatpush1.bf16.msra.mxu0 %v1777
      %1818 = vmatprep.subr.bf16.mxu0 0
      %1819 = vmatpush1.bf16.msra.mxu0 %v1800
      %1820 = vmatprep.subr.bf16.mxu0 0
      %1821 = vmatpush1.bf16.msra.mxu0 0
      %1822 = vmatprep.subr.bf16.mxu0 0
      %1823 = vmatpush1.bf16.msra.mxu0 0
      %1824 = vmatprep.subr.bf16.mxu0 0
      %1825 = vmatpush1.bf16.msra.mxu0 0
      %1826 = vmatprep.subr.bf16.mxu0 0
      %1827 = vmatpush1.bf16.msra.mxu0 0
      %1828 = vmatprep.subr.bf16.mxu0 0
      %1829 = vmatpush1.bf16.msra.mxu0 0
      %1830 = vmatprep.subr.bf16.mxu0 0
      %1831 = vmatpush1.bf16.msra.mxu0 0
      %1832 = vmatprep.subr.bf16.mxu0 0
      %1833 = vmatpush1.bf16.msra.mxu0 0
      %1834 = vmatprep.mubr.bf16.mxu0 %v1788
      %1835 = vmatmul.mubr.bf16.gmra.mrb[0].mxu0 %v1720
      %v1836 = vpop.f32.mrb[0].mxu0
      %v1837 = vadd.f32 0.0, %v1836
      %v1838 = vpop.f32.mrb[0].mxu0
      %v1839 = vpop.f32.mrb[0].mxu0
      %v1840 = vadd.f32 0.0, %v1839
      %v1841 = vpop.f32.mrb[0].mxu0
      %1842 = vmatprep.mubr.bf16.mxu0 %v1791
      %1843 = vmatmul.mubr.bf16.gmra.mrb[0].mxu0 %v1725
      %v1844 = vpop.f32.mrb[0].mxu0
      %v1845 = vadd.f32 0.0, %v1844
      %v1846 = vpop.f32.mrb[0].mxu0
      %v1847 = vpop.f32.mrb[0].mxu0
      %v1848 = vadd.f32 0.0, %v1847
      %v1849 = vpop.f32.mrb[0].mxu0
      %1850 = vmatprep.mubr.bf16.mxu0 %v1794
      %1851 = vmatmul.mubr.bf16.gmra.mrb[0].mxu0 %v1729
      %v1852 = vpop.f32.mrb[0].mxu0
      %v1853 = vadd.f32 0.0, %v1852
      %v1854 = vpop.f32.mrb[0].mxu0
      %v1855 = vpop.f32.mrb[0].mxu0
      %v1856 = vadd.f32 0.0, %v1855
      %v1857 = vpop.f32.mrb[0].mxu0
      %1858 = vmatprep.mubr.bf16.mxu0 %v1797
      %1859 = vmatmul.mubr.bf16.gmra.mrb[0].mxu0 %v1728
      %v1860 = vpop.f32.mrb[0].mxu0
      %v1861 = vadd.f32 0.0, %v1860
      %v1862 = vpop.f32.mrb[0].mxu0
      %v1863 = vpop.f32.mrb[0].mxu0
      %v1864 = vpop.f32.mrb[0].mxu0
      %1865 = vdwg.mxu0
      %v1866 = vadd.f32 %v1665, %v1837
      %v1867 = vadd.f32 %v1668, %v1840
      %v1868 = vadd.f32 %v1673, %v1845
      %v1869 = vadd.f32 %v1676, %v1848
      %v1870 = vadd.f32 %v1681, %v1853
      %v1871 = vadd.f32 %v1684, %v1856
      %v1872 = vadd.f32 %v1689, %v1861
      %v1873 = vld [vmem:[%s4] sm:$0x1]
      %v1875 = vlaneseq
      %v1876 = vshrl.u32 %v1875, 7
      %v1877 = vsub.s32 0, %v1876
      %v1878 = vrot.slane %v1873, %v1877
      %v1880 = vadd.f32 %v1866, %v1878
      %v1881 = vadd.f32 %v1867, %v1878
      %v1882 = vadd.f32 %v1868, %v1878
      %v1883 = vadd.f32 %v1869, %v1878
      %v1884 = vadd.f32 %v1870, %v1878
      %v1885 = vadd.f32 %v1871, %v1878
      %v1886 = vadd.f32 %v1872, %v1878
      %v1887 = vmax.f32 %v1880, 0.0
      %v1888 = vmax.f32 %v1881, 0.0
      %v1889 = vmax.f32 %v1882, 0.0
      %v1890 = vmax.f32 %v1883, 0.0
      %v1891 = vmax.f32 %v1884, 0.0
      %v1892 = vmax.f32 %v1885, 0.0
      %v1893 = vmax.f32 %v1886, 0.0
      %v1894 = vpack.c.bf16 %v1888, %v1887
      %v1895 = vpack.c.bf16 %v1890, %v1889
      %v1896 = vpack.c.bf16 %v1892, %v1891
      %v1897 = vpack.c.bf16 %v1893, %v1893
      %v1898 = vld [vmem:[%s5] sm:$0xff]
      %v1899 = vld [vmem:[%s5 + $0x8] sm:$0xff]
      %v1900 = vld [vmem:[%s5 + $0x10] sm:$0xff]
      %v1901 = vld [vmem:[%s5 + $0x18] sm:$0xff]
      %v1902 = vld [vmem:[%s5 + $0x20] sm:$0xff]
      %v1903 = vld [vmem:[%s5 + $0x28] sm:$0xff]
      %v1904 = vld [vmem:[%s5 + $0x30] sm:$0xff]
      %v1905 = vld [vmem:[%s5 + $0x38] sm:$0xff]
      %v1906 = vld [vmem:[%s6] sm:$0x3]
      %v1908 = vlaneseq
      %v1909 = vshrl.u32 %v1908, 7
      %v1910 = vsub.s32 0, %v1909
      %v1911 = vrot.slane %v1906, %v1910
      %v1912 = vlaneseq
      %v1913 = vshrl.u32 %v1912, 7
      %v1914 = vsub.s32 1, %v1913
      %v1915 = vrot.slane %v1906, %v1914
      %v1926 = vunpack.c.l.b16 %v1898
      %v1927 = vunpack.c.h.b16 %v1898
      %v1928 = vunpack.c.l.b16 %v1899
      %v1929 = vunpack.c.h.b16 %v1899
      %v1930 = vunpack.c.l.b16 %v1900
      %v1931 = vunpack.c.h.b16 %v1900
      %v1932 = vunpack.c.l.b16 %v1901
      %v1933 = vunpack.c.h.b16 %v1901
      %v1934 = vunpack.c.l.b16 %v1902
      %v1935 = vunpack.c.h.b16 %v1902
      %v1936 = vunpack.c.l.b16 %v1903
      %v1937 = vunpack.c.h.b16 %v1903
      %v1938 = vunpack.c.l.b16 %v1904
      %v1939 = vunpack.c.h.b16 %v1904
      %v1940 = vunpack.c.l.b16 %v1905
      %v1941 = vunpack.c.h.b16 %v1905
      %v1942 = vpack.c.b16 %v1928, %v1926
      %v1943 = vpack.c.b16 %v1929, %v1927
      %v1944 = vpack.c.b16 %v1932, %v1930
      %v1945 = vpack.c.b16 %v1933, %v1931
      %v1946 = vpack.c.b16 %v1936, %v1934
      %v1947 = vpack.c.b16 %v1937, %v1935
      %v1948 = vpack.c.b16 %v1940, %v1938
      %v1949 = vpack.c.b16 %v1941, %v1939
      %vm1958 = vcmask 523264
      %v1960 = vsel %vm1958, %v1894, 0
      %v1963 = vsel %vm1958, %v1895, 0
      %v1966 = vsel %vm1958, %v1896, 0
      %v1969 = vsel %vm1958, %v1897, 0
      %1971 = vmatprep.subr.bf16.mxu0 %v1943
      %1972 = vmatpush1.bf16.msra.mxu0 %v1942
      %1973 = vmatprep.subr.bf16.mxu0 %v1945
      %1974 = vmatpush1.bf16.msra.mxu0 %v1944
      %1975 = vmatprep.subr.bf16.mxu0 %v1947
      %1976 = vmatpush1.bf16.msra.mxu0 %v1946
      %1977 = vmatprep.subr.bf16.mxu0 %v1949
      %1978 = vmatpush1.bf16.msra.mxu0 %v1948
      %1979 = vmatprep.subr.bf16.mxu0 0
      %1980 = vmatpush1.bf16.msra.mxu0 0
      %1981 = vmatprep.subr.bf16.mxu0 0
      %1982 = vmatpush1.bf16.msra.mxu0 0
      %1983 = vmatprep.subr.bf16.mxu0 0
      %1984 = vmatpush1.bf16.msra.mxu0 0
      %1985 = vmatprep.subr.bf16.mxu0 0
      %1986 = vmatpush1.bf16.msra.mxu0 0
      %1987 = vmatprep.subr.bf16.mxu0 0
      %1988 = vmatpush1.bf16.msra.mxu0 0
      %1989 = vmatprep.subr.bf16.mxu0 0
      %1990 = vmatpush1.bf16.msra.mxu0 0
      %1991 = vmatprep.subr.bf16.mxu0 0
      %1992 = vmatpush1.bf16.msra.mxu0 0
      %1993 = vmatprep.subr.bf16.mxu0 0
      %1994 = vmatpush1.bf16.msra.mxu0 0
      %1995 = vmatprep.subr.bf16.mxu0 0
      %1996 = vmatpush1.bf16.msra.mxu0 0
      %1997 = vmatprep.subr.bf16.mxu0 0
      %1998 = vmatpush1.bf16.msra.mxu0 0
      %1999 = vmatprep.subr.bf16.mxu0 0
      %2000 = vmatpush1.bf16.msra.mxu0 0
      %2001 = vmatprep.subr.bf16.mxu0 0
      %2002 = vmatpush1.bf16.msra.mxu0 0
      %2003 = vmatprep.mubr.bf16.mxu0 0
      %2004 = vmatmul.mubr.bf16.gmra.mrb[0].mxu0 %v1960
      %v2005 = vpop.f32.mrb[0].mxu0
      %v2006 = vadd.f32 %v1911, %v2005
      %v2007 = vpop.f32.mrb[0].mxu0
      %v2008 = vadd.f32 %v1915, %v2007
      %v2009 = vpop.f32.mrb[0].mxu0
      %v2010 = vadd.f32 %v1911, %v2009
      %v2011 = vpop.f32.mrb[0].mxu0
      %v2012 = vadd.f32 %v1915, %v2011
      %2013 = vmatprep.mubr.bf16.mxu0 0
      %2014 = vmatmul.mubr.bf16.gmra.mrb[0].mxu0 %v1963
      %v2015 = vpop.f32.mrb[0].mxu0
      %v2016 = vadd.f32 %v1911, %v2015
      %v2017 = vpop.f32.mrb[0].mxu0
      %v2018 = vadd.f32 %v1915, %v2017
      %v2019 = vpop.f32.mrb[0].mxu0
      %v2020 = vadd.f32 %v1911, %v2019
      %v2021 = vpop.f32.mrb[0].mxu0
      %v2022 = vadd.f32 %v1915, %v2021
      %2023 = vmatprep.mubr.bf16.mxu0 0
      %2024 = vmatmul.mubr.bf16.gmra.mrb[0].mxu0 %v1966
      %v2025 = vpop.f32.mrb[0].mxu0
      %v2026 = vadd.f32 %v1911, %v2025
      %v2027 = vpop.f32.mrb[0].mxu0
      %v2028 = vadd.f32 %v1915, %v2027
      %v2029 = vpop.f32.mrb[0].mxu0
      %v2030 = vadd.f32 %v1911, %v2029
      %v2031 = vpop.f32.mrb[0].mxu0
      %v2032 = vadd.f32 %v1915, %v2031
      %2033 = vmatprep.mubr.bf16.mxu0 0
      %2034 = vmatmul.mubr.bf16.gmra.mrb[0].mxu0 %v1969
      %v2035 = vpop.f32.mrb[0].mxu0
      %v2036 = vadd.f32 %v1911, %v2035
      %v2037 = vpop.f32.mrb[0].mxu0
      %v2038 = vadd.f32 %v1915, %v2037
      %v2039 = vpop.f32.mrb[0].mxu0
      %v2040 = vpop.f32.mrb[0].mxu0
      %2041 = vdwg.mxu0
      %v2042 = vpack.c.bf16 %v2010, %v2006
      %v2043 = vpack.c.bf16 %v2012, %v2008
      %v2046 = vunpack.c.l.b16 %v2042
      %v2047 = vunpack.c.l.b16 %v2043
      %v2048 = vunpack.c.h.b16 %v2042
      %v2049 = vunpack.c.h.b16 %v2043
      %v2050 = vpack.c.b16 %v2047, %v2046
      %v2051 = vpack.c.b16 %v2049, %v2048
      %2054 = vst [vmem:[%s374] sm:$0xff] %v2050
      %2055 = vst [vmem:[%s374 + $0x8] sm:$0xff] %v2051
      %v2056 = vpack.c.bf16 %v2020, %v2016
      %v2057 = vpack.c.bf16 %v2022, %v2018
      %v2058 = vpack.c.bf16 %v2026, %v2026
      %v2059 = vpack.c.bf16 %v2028, %v2028
      %v2064 = vunpack.c.l.b16 %v2056
      %v2065 = vunpack.c.l.b16 %v2057
      %v2066 = vunpack.c.h.b16 %v2056
      %v2067 = vunpack.c.h.b16 %v2057
      %v2068 = vunpack.c.l.b16 %v2058
      %v2069 = vunpack.c.l.b16 %v2059
      %v2070 = vpack.c.b16 %v2065, %v2064
      %v2071 = vpack.c.b16 %v2067, %v2066
      %v2072 = vpack.c.b16 %v2069, %v2068
      %vm2073 = vcmask 1046532
      %vm2074 = vmor %vm554, %vm2073
      %v2075 = vrot.slane %v2070, 5
      %v2076 = vrot.slane %v2075, 4
      %v2077 = vrot.slane %v2071, 5
      %v2078 = vsel %vm2074, %v2076, %v2077
      %v2079 = vrot.slane %v2077, 4
      %v2080 = vrot.slane %v2072, 5
      %v2081 = vsel %vm2074, %v2079, %v2080
      %s2084 = scalar_lea.vmem %s374, 16
      %2085 = vst [vmem:[%s2084] sm:$0xff] %v2078
      %2086 = vst [vmem:[%s2084 + $0x8] sm:$0xff] %v2081
      %v2087 = vpack.c.bf16 %v2030, %v2026
      %v2088 = vpack.c.bf16 %v2032, %v2028
      %v2089 = vpack.c.bf16 %v2036, %v2036
      %v2090 = vpack.c.bf16 %v2038, %v2038
      %v2095 = vunpack.c.l.b16 %v2087
      %v2096 = vunpack.c.l.b16 %v2088
      %v2097 = vunpack.c.h.b16 %v2087
      %v2098 = vunpack.c.h.b16 %v2088
      %v2099 = vunpack.c.l.b16 %v2089
      %v2100 = vunpack.c.l.b16 %v2090
      %v2101 = vpack.c.b16 %v2096, %v2095
      %v2102 = vpack.c.b16 %v2098, %v2097
      %v2103 = vpack.c.b16 %v2100, %v2099
      %vm2104 = vcmask 1045508
      %vm2105 = vmor %vm516, %vm2104
      %v2106 = vrot.slane %v2101, 6
      %v2107 = vrot.slane %v2106, 4
      %v2108 = vrot.slane %v2102, 6
      %v2109 = vsel %vm2105, %v2107, %v2108
      %v2110 = vrot.slane %v2108, 4
      %v2111 = vrot.slane %v2103, 6
      %v2112 = vsel %vm2105, %v2110, %v2111
      %s2115 = scalar_lea.vmem %s374, 32
      %2116 = vst [vmem:[%s2115] sm:$0xff] %v2109
      %2117 = vst [vmem:[%s2115 + $0x8] sm:$0xff] %v2112
      %v2118 = vld [vmem:[%s7] sm:$0xf]
      %v2119 = vld [vmem:[%s7 + $0x4] sm:$0xf]
      %v2120 = vld [vmem:[%s7 + $0x8] sm:$0xf]
      %v2121 = vld [vmem:[%s7 + $0xc] sm:$0xf]
      %v2122 = vld [vmem:[%s7 + $0x10] sm:$0xf]
      %v2123 = vld [vmem:[%s7 + $0x14] sm:$0xf]
      %v2124 = vld [vmem:[%s7 + $0x18] sm:$0xf]
      %v2125 = vld [vmem:[%s7 + $0x1c] sm:$0xf]
      %v2126 = vld [vmem:[%s8] sm:$0x1]
      %v2128 = vlaneseq
      %v2129 = vshrl.u32 %v2128, 7
      %v2130 = vsub.s32 0, %v2129
      %v2131 = vrot.slane %v2126, %v2130
      %v2141 = vunpack.c.l.b16 %v2118
      %v2142 = vunpack.c.l.b16 %v2119
      %v2143 = vunpack.c.l.b16 %v2120
      %v2144 = vunpack.c.l.b16 %v2121
      %v2145 = vunpack.c.l.b16 %v2122
      %v2146 = vunpack.c.l.b16 %v2123
      %v2147 = vunpack.c.l.b16 %v2124
      %v2148 = vunpack.c.l.b16 %v2125
      %v2149 = vpack.c.b16 %v2142, %v2141
      %v2150 = vpack.c.b16 %v2144, %v2143
      %v2151 = vpack.c.b16 %v2146, %v2145
      %v2152 = vpack.c.b16 %v2148, %v2147
      %2157 = vmatprep.subr.bf16.mxu0 0
      %2158 = vmatpush1.bf16.msra.mxu0 %v2149
      %2159 = vmatprep.subr.bf16.mxu0 0
      %2160 = vmatpush1.bf16.msra.mxu0 %v2150
      %2161 = vmatprep.subr.bf16.mxu0 0
      %2162 = vmatpush1.bf16.msra.mxu0 %v2151
      %2163 = vmatprep.subr.bf16.mxu0 0
      %2164 = vmatpush1.bf16.msra.mxu0 %v2152
      %2165 = vmatprep.subr.bf16.mxu0 0
      %2166 = vmatpush1.bf16.msra.mxu0 0
      %2167 = vmatprep.subr.bf16.mxu0 0
      %2168 = vmatpush1.bf16.msra.mxu0 0
      %2169 = vmatprep.subr.bf16.mxu0 0
      %2170 = vmatpush1.bf16.msra.mxu0 0
      %2171 = vmatprep.subr.bf16.mxu0 0
      %2172 = vmatpush1.bf16.msra.mxu0 0
      %2173 = vmatprep.subr.bf16.mxu0 0
      %2174 = vmatpush1.bf16.msra.mxu0 0
      %2175 = vmatprep.subr.bf16.mxu0 0
      %2176 = vmatpush1.bf16.msra.mxu0 0
      %2177 = vmatprep.subr.bf16.mxu0 0
      %2178 = vmatpush1.bf16.msra.mxu0 0
      %2179 = vmatprep.subr.bf16.mxu0 0
      %2180 = vmatpush1.bf16.msra.mxu0 0
      %2181 = vmatprep.subr.bf16.mxu0 0
      %2182 = vmatpush1.bf16.msra.mxu0 0
      %2183 = vmatprep.subr.bf16.mxu0 0
      %2184 = vmatpush1.bf16.msra.mxu0 0
      %2185 = vmatprep.subr.bf16.mxu0 0
      %2186 = vmatpush1.bf16.msra.mxu0 0
      %2187 = vmatprep.subr.bf16.mxu0 0
      %2188 = vmatpush1.bf16.msra.mxu0 0
      %2189 = vmatprep.mubr.bf16.mxu0 0
      %2190 = vmatmul.mubr.bf16.gmra.mrb[0].mxu0 %v1960
      %v2191 = vpop.f32.mrb[0].mxu0
      %v2192 = vadd.f32 %v2131, %v2191
      %v2193 = vpop.f32.mrb[0].mxu0
      %v2194 = vpop.f32.mrb[0].mxu0
      %v2195 = vadd.f32 %v2131, %v2194
      %v2196 = vpop.f32.mrb[0].mxu0
      %2197 = vmatprep.mubr.bf16.mxu0 0
      %2198 = vmatmul.mubr.bf16.gmra.mrb[0].mxu0 %v1963
      %v2199 = vpop.f32.mrb[0].mxu0
      %v2200 = vadd.f32 %v2131, %v2199
      %v2201 = vpop.f32.mrb[0].mxu0
      %v2202 = vpop.f32.mrb[0].mxu0
      %v2203 = vadd.f32 %v2131, %v2202
      %v2204 = vpop.f32.mrb[0].mxu0
      %2205 = vmatprep.mubr.bf16.mxu0 0
      %2206 = vmatmul.mubr.bf16.gmra.mrb[0].mxu0 %v1966
      %v2207 = vpop.f32.mrb[0].mxu0
      %v2208 = vadd.f32 %v2131, %v2207
      %v2209 = vpop.f32.mrb[0].mxu0
      %v2210 = vpop.f32.mrb[0].mxu0
      %v2211 = vadd.f32 %v2131, %v2210
      %v2212 = vpop.f32.mrb[0].mxu0
      %2213 = vmatprep.mubr.bf16.mxu0 0
      %2214 = vmatmul.mubr.bf16.gmra.mrb[0].mxu0 %v1969
      %v2215 = vpop.f32.mrb[0].mxu0
      %v2216 = vadd.f32 %v2131, %v2215
      %v2217 = vpop.f32.mrb[0].mxu0
      %v2218 = vpop.f32.mrb[0].mxu0
      %v2219 = vpop.f32.mrb[0].mxu0
      %2220 = vdwg.mxu0
      %2221 = vst.msk [vmem:[%s380] sm:$0xff] %vm1958, %v2192
      %2222 = vst.msk [vmem:[%s380 + $0x8] sm:$0xff] %vm1958, %v2195
      %vm2223 = vcmask 523266
      %2224 = vst.msk [vmem:[%s380 + $0xe] sm:$0xfc] %vm2223, %v2200
      %2225 = vst.msk [vmem:[%s380 + $0x16] sm:$0xff] %vm1958, %v2203
      %vm2226 = vcmask 517120
      %2227 = vst.msk [vmem:[%s380 + $0x1e] sm:$0x3] %vm2226, %v2208
      %vm2228 = vcmask 523268
      %2229 = vst.msk [vmem:[%s380 + $0x1c] sm:$0xf0] %vm2228, %v2208
      %2230 = vst.msk [vmem:[%s380 + $0x24] sm:$0xff] %vm1958, %v2211
      %vm2231 = vcmask 519168
      %2232 = vst.msk [vmem:[%s380 + $0x2c] sm:$0xf] %vm2231, %v2216
      %s2233 = smul.u32 3, %s22
      %p2234 = scmp.lt.s32.totalorder %s2233, 5
      %s2235 = scalar_select %p2234, %s2233, 5
      %s2236 = smul.addr %s2235, 4
      %s2237 = smul.addr %s2236, 4
      %s2238 = scalar_lea.vmem %s9, %s2237
      %s2239 = smul.u32 6, %s22
      %p2240 = scmp.lt.s32.totalorder %s2239, 11
      %s2241 = scalar_select %p2240, %s2239, 11
      %s2242 = smul.addr %s2241, 8
      %s2243 = scalar_lea.vmem %s10, %s2242
      // Predicated region
      $region57: #{_d_module_forward_nhwc.1} parent=55 // pred_check
        %p2244 = pneg %p234
      $region58: #{_d_module_forward_nhwc.1} parent=55 // pred_check_branch
        %2246 = sbr.rel (%p2244) target = $region60
      $region59: #{_d_module_forward_nhwc.1} parent=55 // pred_region
        %s2247 = smul.u32 3, %s22
      $region60: #{_d_module_forward_nhwc.1} parent=55 // pred_fallthru
        _
      // Predicated region
      $region61: #{_d_module_forward_nhwc.1} parent=55 // pred_check
        %p2248 = pneg %p260
      $region62: #{_d_module_forward_nhwc.1} parent=55 // pred_check_branch
        %2250 = sbr.rel (%p2248) target = $region64
      $region63: #{_d_module_forward_nhwc.1} parent=55 // pred_region
        %s2251 = smul.u32 6, %s22
      $region64: #{_d_module_forward_nhwc.1} parent=55 // pred_fallthru
        _
    $region56: #{_d_module_forward_nhwc.1} parent=5 // pred_fallthru
      _
    %p2252 = scmp.le.s32.totalorder 2, %s17
    // Predicated region
    $region65: #{_d_module_forward_nhwc.1} parent=5 // pred_check
      %p2253 = pneg %p2252
    $region66: #{_d_module_forward_nhwc.1} parent=5 // pred_check_branch
      %2255 = sbr.rel (%p2253) target = $region68
    $region67: #{_d_module_forward_nhwc.1} parent=5 // pred_region
      %s2256 = ssub.s32 %s17, 2
      // Predicated region
      $region69: #{_d_module_forward_nhwc.1} parent=67 // pred_check
        %p2257 = pneg %p240
      $region70: #{_d_module_forward_nhwc.1} parent=67 // pred_check_branch
        %2259 = sbr.rel (%p2257) target = $region72
      $region71: #{_d_module_forward_nhwc.1} parent=67 // pred_region
        %s2260 = smul.u32 3, %s23
        %p2261 = scmp.lt.s32.totalorder %s2260, 5
        %s2262 = scalar_select %p2261, %s2260, 5
        %s2263 = smul.addr %s2262, 4
        %s2264 = smul.addr %s2263, 4
        %s2265 = scalar_lea.vmem %s9, %s2264
      $region72: #{_d_module_forward_nhwc.1} parent=67 // pred_fallthru
        _
      // Predicated region
      $region73: #{_d_module_forward_nhwc.1} parent=67 // pred_check
        %p2266 = pneg %p266
      $region74: #{_d_module_forward_nhwc.1} parent=67 // pred_check_branch
        %2268 = sbr.rel (%p2266) target = $region76
      $region75: #{_d_module_forward_nhwc.1} parent=67 // pred_region
        %s2269 = smul.u32 6, %s23
        %p2270 = scmp.lt.s32.totalorder %s2269, 11
        %s2271 = scalar_select %p2270, %s2269, 11
        %s2272 = smul.addr %s2271, 8
        %s2273 = scalar_lea.vmem %s10, %s2272
      $region76: #{_d_module_forward_nhwc.1} parent=67 // pred_fallthru
        _
    $region68: #{_d_module_forward_nhwc.1} parent=5 // pred_fallthru
      _
  $region6: #{_d_module_forward_nhwc.1} parent=0 // loop_footer
    %s21 = sadd.s32 1, %s17
  $region7: #{_d_module_forward_nhwc.1} parent=0 // loop_footer_branch
    %16 = sbr.rel target = $region3
  $region8: #{_d_module_forward_nhwc.1} parent=0 // loop_exit
    _

</llo_original>
